<compile_context>
chip_gen: v5e
topology: v5e:2x2
jax: 0.10.0
libtpu: 0.0.40
codegen_flags: <defaults>
</compile_context>

<pallas_src>
import math

import jax
import jax.numpy as jnp
import numpy as np
from jax.experimental import pallas as pl

# --- hyperparameters (small, consistent with DecoderLayer __init__) ----------
D_MODEL = 32
NHEAD = 4
HEAD_DIM = D_MODEL // NHEAD
DFF = 64
NUM_LAYERS = 2
LN_EPS = 1e-5

NUM_QUERIES = 8   # decoder sequence length (num object queries)
MEM_LEN = 16      # H*W = 4*4 flattened spatial positions
BATCH = 2

VEC_W = max(2 * D_MODEL, DFF)   # padded row width of the vector slab (= 64)
NEG_INF = -1e30


# --- Pallas kernel: full Decoder stack, whole batch, one invocation -----------
def decoder_kernel(tgt_ref, mem_ref, qpos_ref, pos_ref, w_ref, vec_ref, out_ref):
    f32 = jnp.float32
    D, H, F = D_MODEL, HEAD_DIM, DFF

    x = tgt_ref[...].astype(f32)        # [X, D], X = Q*B, row = q*B + b
    mem = mem_ref[...].astype(f32)      # [Y, D], Y = T*B, row = t*B + b
    qpos = qpos_ref[...].astype(f32)    # [X, D]
    pos = pos_ref[...].astype(f32)      # [Y, D]
    X = x.shape[0]
    Y = mem.shape[0]

    # ---- weight views: static slices of the packed slabs (single VMEM block) --
    w_sa_qk = w_ref[:, 0:2 * D]         # fused self-attn Q|K (Q side pre-scaled)
    wv_s = w_ref[:, 2 * D:3 * D]
    wo_s = w_ref[:, 3 * D:4 * D]
    wq_c = w_ref[:, 4 * D:5 * D]        # cross-attn Q (pre-scaled)
    wk_c = w_ref[:, 5 * D:6 * D]
    wv_c = w_ref[:, 6 * D:7 * D]
    wo_c = w_ref[:, 7 * D:8 * D]
    w1 = w_ref[:, 8 * D:8 * D + F]
    w2t = w_ref[:, 8 * D + F:8 * D + 2 * F]   # FFN down weight, stored transposed

    b_sa_qk = vec_ref[0:1, 0:2 * D]
    bv_s = vec_ref[1:2, 0:D]
    bo_s = vec_ref[2:3, 0:D]
    bq_c = vec_ref[3:4, 0:D]
    bk_c = vec_ref[4:5, 0:D]
    bv_c = vec_ref[5:6, 0:D]
    bo_c = vec_ref[6:7, 0:D]
    g1 = vec_ref[7:8, 0:D]
    be1 = vec_ref[8:9, 0:D]
    g2 = vec_ref[9:10, 0:D]
    be2 = vec_ref[10:11, 0:D]
    g3 = vec_ref[11:12, 0:D]
    be3 = vec_ref[12:13, 0:D]
    bf1 = vec_ref[13:14, 0:F]
    bf2 = vec_ref[14:15, 0:D]

    # ---- additive block-diagonal batch mask (tokens of different batch rows
    # must not attend to each other once batch is folded into the token axis) --
    def batch_ids(shape, axis):
        i = jax.lax.broadcasted_iota(jnp.int32, shape, axis)
        if BATCH & (BATCH - 1) == 0:           # power-of-two batch: cheap AND
            return jnp.bitwise_and(i, BATCH - 1)
        return jax.lax.rem(i, BATCH)

    def batch_bias(nrows, ncols):
        same = batch_ids((nrows, ncols), 0) == batch_ids((nrows, ncols), 1)
        return jnp.where(same, 0.0, NEG_INF).astype(f32)

    bias_self = batch_bias(X, X)     # [X, X]
    bias_cross = batch_bias(X, Y)    # [X, Y]

    def layernorm(v, g, b):
        mu = jnp.mean(v, axis=-1, keepdims=True)
        c = v - mu
        var = jnp.mean(c * c, axis=-1, keepdims=True)
        return c * jax.lax.rsqrt(var + LN_EPS) * g + b

    def attention(q, k, v, bias, wo, bo):
        # q: [X, D] (1/sqrt(head_dim) already folded into the Q projection)
        # k, v: [S, D]; bias: [X, S] additive batch-block mask.
        # Per-head 2-D matmuls on lane slices: no head-split reshape/transpose.
        outs = []
        for n in range(NHEAD):
            sl = slice(n * H, (n + 1) * H)
            s = jax.lax.dot_general(q[:, sl], k[:, sl],
                                    (((1,), (1,)), ((), ())),
                                    preferred_element_type=f32) + bias
            s = s - jnp.max(s, axis=-1, keepdims=True)
            p = jnp.exp(s)
            p = p / jnp.sum(p, axis=-1, keepdims=True)
            outs.append(jnp.dot(p, v[:, sl], preferred_element_type=f32))
        o = jnp.concatenate(outs, axis=-1)                     # [X, D]
        return jnp.dot(o, wo, preferred_element_type=f32) + bo

    # Cross-attention K/V depend only on memory and the (layer-shared) weights:
    # compute once, reuse in every layer.
    k_c = jnp.dot(mem + pos, wk_c, preferred_element_type=f32) + bk_c   # [Y, D]
    v_c = jnp.dot(mem, wv_c, preferred_element_type=f32) + bv_c         # [Y, D]

    for _ in range(NUM_LAYERS):   # static unroll; cloned layers share weights
        # ---- self attention: q = k = x + qpos, value = x ----
        qk = jnp.dot(x + qpos, w_sa_qk,
                     preferred_element_type=f32) + b_sa_qk              # [X, 2D]
        v_s = jnp.dot(x, wv_s, preferred_element_type=f32) + bv_s       # [X, D]
        sa = attention(qk[:, :D], qk[:, D:2 * D], v_s, bias_self, wo_s, bo_s)
        x = layernorm(x + sa, g1, be1)

        # ---- cross attention: q = x + qpos, k = mem + pos, v = mem ----
        q_c = jnp.dot(x + qpos, wq_c, preferred_element_type=f32) + bq_c
        ca = attention(q_c, k_c, v_c, bias_cross, wo_c, bo_c)
        x = layernorm(x + ca, g2, be2)

        # ---- feed-forward ----
        h = jnp.maximum(jnp.dot(x, w1, preferred_element_type=f32) + bf1, 0.0)
        ff = jax.lax.dot_general(h, w2t, (((1,), (1,)), ((), ())),
                                 preferred_element_type=f32) + bf2
        x = layernorm(x + ff, g3, be3)

    out_ref[...] = x.astype(out_ref.dtype)


# --- parameter packing: 26 tensors -> 2 slabs ---------------------------------
def pack_params(p):
    scale = 1.0 / math.sqrt(HEAD_DIM)
    D = D_MODEL

    wmat = jnp.concatenate([
        p['wq_s'] * scale, p['wk_s'],          # fused self-attn QK   [D, 2D]
        p['wv_s'], p['wo_s'],
        p['wq_c'] * scale, p['wk_c'], p['wv_c'], p['wo_c'],
        p['w1'],                               # [D, DFF]
        p['w2'].T,                             # FFN down, transposed [D, DFF]
    ], axis=1)                                 # [D, 8D + 2*DFF]

    def row(v):
        return jnp.pad(v, (0, VEC_W - v.shape[0]))[None, :]   # [1, VEC_W]

    vecs = jnp.concatenate([
        row(jnp.concatenate([p['bq_s'] * scale, p['bk_s']])),  # 0: fused QK bias
        row(p['bv_s']), row(p['bo_s']),                        # 1, 2
        row(p['bq_c'] * scale), row(p['bk_c']),                # 3, 4
        row(p['bv_c']), row(p['bo_c']),                        # 5, 6
        row(p['g1']), row(p['be1']),                           # 7, 8
        row(p['g2']), row(p['be2']),                           # 9, 10
        row(p['g3']), row(p['be3']),                           # 11, 12
        row(p['bf1']), row(p['bf2']),                          # 13, 14
    ], axis=0)                                 # [15, VEC_W]
    return wmat, vecs


def _cost_estimate(B, Q, T, D, F, N, L):
    X, Y = Q * B, T * B
    H = D // N
    per_layer = (
        2 * X * D * (2 * D)          # fused QK projection
        + 4 * (2 * X * D * D)        # v_s, out_s, q_c, out_c projections
        + 4 * N * X * X * H          # self-attn scores + weighted sum
        + 4 * N * X * Y * H          # cross-attn scores + weighted sum
        + 2 * (2 * X * D * F)        # FFN up + down
    )
    flops = L * per_layer + 2 * (2 * Y * D * D)          # + hoisted cross K/V
    transcendentals = L * (N * X * X + N * X * Y + 3 * X)  # exp + rsqrt
    bytes_accessed = 4 * (3 * X * D + 2 * Y * D            # activations in/out
                          + D * (8 * D + 2 * F) + 15 * VEC_W)  # weight slabs
    return pl.CostEstimate(flops=int(flops),
                           transcendentals=int(transcendentals),
                           bytes_accessed=int(bytes_accessed))


# --- wrapper ------------------------------------------------------------------
def decoder_forward_pallas(tgt_sbd, mem_sbd, qpos_sbd, pos_sbd, raw_params):
    # Keep the module's seq-first layout; only flatten (free, row-major) so the
    # kernel sees 2-D token-major slabs. No transposes around the custom call.
    Q, B, D = tgt_sbd.shape
    T = mem_sbd.shape[0]
    wmat, vecs = pack_params(raw_params)

    out = pl.pallas_call(
        decoder_kernel,
        out_shape=jax.ShapeDtypeStruct((Q * B, D), tgt_sbd.dtype),
        cost_estimate=_cost_estimate(B, Q, T, D, DFF, NHEAD, NUM_LAYERS),
    )(tgt_sbd.reshape(Q * B, D), mem_sbd.reshape(T * B, D),
      qpos_sbd.reshape(Q * B, D), pos_sbd.reshape(T * B, D), wmat, vecs)

    # Decoder(norm=None, return_intermediate_dec=False) returns
    # output.unsqueeze(0) -> [1, Q, B, D].  Row order q*B+b matches exactly.
    return out.reshape(1, Q, B, D)


# --- deterministic parameter init (shared by all cloned layers) ---------------
def init_params(key):
    ks = jax.random.split(key, 18)

    def w(k, shape, s=0.08):
        return (s * jax.random.normal(k, shape)).astype(jnp.float32)

    zeros = lambda shape: jnp.zeros(shape, jnp.float32)
    ones = lambda shape: jnp.ones(shape, jnp.float32)
    return {
        'wq_s': w(ks[0], (D_MODEL, D_MODEL)), 'bq_s': w(ks[1], (D_MODEL,), 0.02),
        'wk_s': w(ks[2], (D_MODEL, D_MODEL)), 'bk_s': w(ks[3], (D_MODEL,), 0.02),
        'wv_s': w(ks[4], (D_MODEL, D_MODEL)), 'bv_s': w(ks[5], (D_MODEL,), 0.02),
        'wo_s': w(ks[6], (D_MODEL, D_MODEL)), 'bo_s': zeros((D_MODEL,)),
        'wq_c': w(ks[7], (D_MODEL, D_MODEL)), 'bq_c': w(ks[8], (D_MODEL,), 0.02),
        'wk_c': w(ks[9], (D_MODEL, D_MODEL)), 'bk_c': w(ks[10], (D_MODEL,), 0.02),
        'wv_c': w(ks[11], (D_MODEL, D_MODEL)), 'bv_c': w(ks[12], (D_MODEL,), 0.02),
        'wo_c': w(ks[13], (D_MODEL, D_MODEL)), 'bo_c': zeros((D_MODEL,)),
        'g1': ones((D_MODEL,)), 'be1': zeros((D_MODEL,)),
        'g2': ones((D_MODEL,)), 'be2': zeros((D_MODEL,)),
        'g3': ones((D_MODEL,)), 'be3': zeros((D_MODEL,)),
        'w1': w(ks[14], (D_MODEL, DFF)), 'bf1': w(ks[15], (DFF,), 0.02),
        'w2': w(ks[16], (DFF, D_MODEL)), 'bf2': w(ks[17], (D_MODEL,), 0.02),
    }


# --- pure-JAX reference for correctness check ---------------------------------
def _ref_ln(x, g, b):
    mu = jnp.mean(x, axis=-1, keepdims=True)
    var = jnp.mean(jnp.square(x - mu), axis=-1, keepdims=True)
    return (x - mu) * jax.lax.rsqrt(var + LN_EPS) * g + b


def _ref_mha(q_in, k_in, v_in, wq, bq, wk, bk, wv, bv, wo, bo):
    q = q_in @ wq + bq
    k = k_in @ wk + bk
    v = v_in @ wv + bv
    B, Sq, D = q.shape
    Sk = k.shape[1]
    qh = q.reshape(B, Sq, NHEAD, HEAD_DIM).transpose(0, 2, 1, 3)
    kh = k.reshape(B, Sk, NHEAD, HEAD_DIM).transpose(0, 2, 1, 3)
    vh = v.reshape(B, Sk, NHEAD, HEAD_DIM).transpose(0, 2, 1, 3)
    s = jnp.einsum('bhqd,bhkd->bhqk', qh, kh) / math.sqrt(HEAD_DIM)
    p = jax.nn.softmax(s, axis=-1)
    o = jnp.einsum('bhqk,bhkd->bhqd', p, vh).transpose(0, 2, 1, 3).reshape(B, Sq, D)
    return o @ wo + bo


def reference_decoder(tgt_sbd, mem_sbd, qpos_sbd, pos_sbd, p):
    x = jnp.transpose(tgt_sbd, (1, 0, 2))
    mem = jnp.transpose(mem_sbd, (1, 0, 2))
    qpos = jnp.transpose(qpos_sbd, (1, 0, 2))
    pos = jnp.transpose(pos_sbd, (1, 0, 2))
    for _ in range(NUM_LAYERS):
        sa = _ref_mha(x + qpos, x + qpos, x,
                      p['wq_s'], p['bq_s'], p['wk_s'], p['bk_s'],
                      p['wv_s'], p['bv_s'], p['wo_s'], p['bo_s'])
        x = _ref_ln(x + sa, p['g1'], p['be1'])
        ca = _ref_mha(x + qpos, mem + pos, mem,
                      p['wq_c'], p['bq_c'], p['wk_c'], p['bk_c'],
                      p['wv_c'], p['bv_c'], p['wo_c'], p['bo_c'])
        x = _ref_ln(x + ca, p['g2'], p['be2'])
        ff = jnp.maximum(x @ p['w1'] + p['bf1'], 0.0) @ p['w2'] + p['bf2']
        x = _ref_ln(x + ff, p['g3'], p['be3'])
    # back to seq-first then unsqueeze(0): [1, Q, B, D]
    return jnp.transpose(x, (1, 0, 2))[None]


if __name__ == "__main__":
    key = jax.random.PRNGKey(0)
    ks = jax.random.split(key, 5)

    tgt = jax.random.normal(ks[0], (NUM_QUERIES, BATCH, D_MODEL), dtype=jnp.float32)
    mem = jax.random.normal(ks[1], (MEM_LEN, BATCH, D_MODEL), dtype=jnp.float32)
    qpos = jax.random.normal(ks[2], (NUM_QUERIES, BATCH, D_MODEL), dtype=jnp.float32)
    pos = jax.random.normal(ks[3], (MEM_LEN, BATCH, D_MODEL), dtype=jnp.float32)
    params = init_params(ks[4])

    out = decoder_forward_pallas(tgt, mem, qpos, pos, params)
    out = jax.block_until_ready(out)

    ref = reference_decoder(tgt, mem, qpos, pos, params)
    assert out.shape == (1, NUM_QUERIES, BATCH, D_MODEL)
    np.testing.assert_allclose(np.asarray(out), np.asarray(ref), rtol=2e-2, atol=2e-2)

    print("KERNEL_OK")
</pallas_src>

<mosaic_0001>
module attributes {stable_mosaic.version = 11 : i64} {
  func.func @decoder_kernel(%arg0: memref<16x32xf32, #tpu.memory_space<vmem>>, %arg1: memref<32x32xf32, #tpu.memory_space<vmem>>, %arg2: memref<16x32xf32, #tpu.memory_space<vmem>>, %arg3: memref<32x32xf32, #tpu.memory_space<vmem>>, %arg4: memref<32x384xf32, #tpu.memory_space<vmem>>, %arg5: memref<15x64xf32, #tpu.memory_space<vmem>>, %arg6: memref<16x32xf32, #tpu.memory_space<vmem>>) attributes {dimension_semantics = [], scalar_prefetch = 0 : i64, scratch_operands = 0 : i64, tpu.core_type = #tpu.core_type<tc>} {
    %c0 = arith.constant 0 : index
    %c0_0 = arith.constant 0 : index
    %0 = vector.load %arg0[%c0, %c0_0] : memref<16x32xf32, #tpu.memory_space<vmem>>, vector<16x32xf32>
    %c0_1 = arith.constant 0 : index
    %c0_2 = arith.constant 0 : index
    %1 = vector.load %arg1[%c0_1, %c0_2] : memref<32x32xf32, #tpu.memory_space<vmem>>, vector<32x32xf32>
    %c0_3 = arith.constant 0 : index
    %c0_4 = arith.constant 0 : index
    %2 = vector.load %arg2[%c0_3, %c0_4] : memref<16x32xf32, #tpu.memory_space<vmem>>, vector<16x32xf32>
    %c0_5 = arith.constant 0 : index
    %c0_6 = arith.constant 0 : index
    %3 = vector.load %arg3[%c0_5, %c0_6] : memref<32x32xf32, #tpu.memory_space<vmem>>, vector<32x32xf32>
    %c0_7 = arith.constant 0 : index
    %c0_8 = arith.constant 0 : index
    %4 = vector.load %arg4[%c0_7, %c0_8] : memref<32x384xf32, #tpu.memory_space<vmem>>, vector<32x64xf32>
    %c0_9 = arith.constant 0 : index
    %c64 = arith.constant 64 : index
    %5 = vector.load %arg4[%c0_9, %c64] : memref<32x384xf32, #tpu.memory_space<vmem>>, vector<32x32xf32>
    %c0_10 = arith.constant 0 : index
    %c96 = arith.constant 96 : index
    %6 = vector.load %arg4[%c0_10, %c96] : memref<32x384xf32, #tpu.memory_space<vmem>>, vector<32x32xf32>
    %c0_11 = arith.constant 0 : index
    %c128 = arith.constant 128 : index
    %7 = vector.load %arg4[%c0_11, %c128] : memref<32x384xf32, #tpu.memory_space<vmem>>, vector<32x32xf32>
    %c0_12 = arith.constant 0 : index
    %c160 = arith.constant 160 : index
    %8 = vector.load %arg4[%c0_12, %c160] : memref<32x384xf32, #tpu.memory_space<vmem>>, vector<32x32xf32>
    %c0_13 = arith.constant 0 : index
    %c192 = arith.constant 192 : index
    %9 = vector.load %arg4[%c0_13, %c192] : memref<32x384xf32, #tpu.memory_space<vmem>>, vector<32x32xf32>
    %c0_14 = arith.constant 0 : index
    %c224 = arith.constant 224 : index
    %10 = vector.load %arg4[%c0_14, %c224] : memref<32x384xf32, #tpu.memory_space<vmem>>, vector<32x32xf32>
    %c0_15 = arith.constant 0 : index
    %c256 = arith.constant 256 : index
    %11 = vector.load %arg4[%c0_15, %c256] : memref<32x384xf32, #tpu.memory_space<vmem>>, vector<32x64xf32>
    %c0_16 = arith.constant 0 : index
    %c320 = arith.constant 320 : index
    %12 = vector.load %arg4[%c0_16, %c320] : memref<32x384xf32, #tpu.memory_space<vmem>>, vector<32x64xf32>
    %c0_17 = arith.constant 0 : index
    %c0_18 = arith.constant 0 : index
    %13 = vector.load %arg5[%c0_17, %c0_18] : memref<15x64xf32, #tpu.memory_space<vmem>>, vector<1x64xf32>
    %c1 = arith.constant 1 : index
    %c0_19 = arith.constant 0 : index
    %14 = vector.load %arg5[%c1, %c0_19] : memref<15x64xf32, #tpu.memory_space<vmem>>, vector<1x32xf32>
    %c2 = arith.constant 2 : index
    %c0_20 = arith.constant 0 : index
    %15 = vector.load %arg5[%c2, %c0_20] : memref<15x64xf32, #tpu.memory_space<vmem>>, vector<1x32xf32>
    %c3 = arith.constant 3 : index
    %c0_21 = arith.constant 0 : index
    %16 = vector.load %arg5[%c3, %c0_21] : memref<15x64xf32, #tpu.memory_space<vmem>>, vector<1x32xf32>
    %c4 = arith.constant 4 : index
    %c0_22 = arith.constant 0 : index
    %17 = vector.load %arg5[%c4, %c0_22] : memref<15x64xf32, #tpu.memory_space<vmem>>, vector<1x32xf32>
    %c5 = arith.constant 5 : index
    %c0_23 = arith.constant 0 : index
    %18 = vector.load %arg5[%c5, %c0_23] : memref<15x64xf32, #tpu.memory_space<vmem>>, vector<1x32xf32>
    %c6 = arith.constant 6 : index
    %c0_24 = arith.constant 0 : index
    %19 = vector.load %arg5[%c6, %c0_24] : memref<15x64xf32, #tpu.memory_space<vmem>>, vector<1x32xf32>
    %c7 = arith.constant 7 : index
    %c0_25 = arith.constant 0 : index
    %20 = vector.load %arg5[%c7, %c0_25] : memref<15x64xf32, #tpu.memory_space<vmem>>, vector<1x32xf32>
    %c8 = arith.constant 8 : index
    %c0_26 = arith.constant 0 : index
    %21 = vector.load %arg5[%c8, %c0_26] : memref<15x64xf32, #tpu.memory_space<vmem>>, vector<1x32xf32>
    %c9 = arith.constant 9 : index
    %c0_27 = arith.constant 0 : index
    %22 = vector.load %arg5[%c9, %c0_27] : memref<15x64xf32, #tpu.memory_space<vmem>>, vector<1x32xf32>
    %c10 = arith.constant 10 : index
    %c0_28 = arith.constant 0 : index
    %23 = vector.load %arg5[%c10, %c0_28] : memref<15x64xf32, #tpu.memory_space<vmem>>, vector<1x32xf32>
    %c11 = arith.constant 11 : index
    %c0_29 = arith.constant 0 : index
    %24 = vector.load %arg5[%c11, %c0_29] : memref<15x64xf32, #tpu.memory_space<vmem>>, vector<1x32xf32>
    %c12 = arith.constant 12 : index
    %c0_30 = arith.constant 0 : index
    %25 = vector.load %arg5[%c12, %c0_30] : memref<15x64xf32, #tpu.memory_space<vmem>>, vector<1x32xf32>
    %c13 = arith.constant 13 : index
    %c0_31 = arith.constant 0 : index
    %26 = vector.load %arg5[%c13, %c0_31] : memref<15x64xf32, #tpu.memory_space<vmem>>, vector<1x64xf32>
    %c14 = arith.constant 14 : index
    %c0_32 = arith.constant 0 : index
    %27 = vector.load %arg5[%c14, %c0_32] : memref<15x64xf32, #tpu.memory_space<vmem>>, vector<1x32xf32>
    %28 = tpu.iota {dimensions = array<i32: 0>} : vector<16x16xi32>
    %c1_i32 = arith.constant 1 : i32
    %29 = vector.broadcast %c1_i32 : i32 to vector<16x16xi32>
    %30 = arith.andi %28, %29 : vector<16x16xi32>
    %31 = tpu.iota {dimensions = array<i32: 1>} : vector<16x16xi32>
    %c1_i32_33 = arith.constant 1 : i32
    %32 = vector.broadcast %c1_i32_33 : i32 to vector<16x16xi32>
    %33 = arith.andi %31, %32 : vector<16x16xi32>
    %34 = arith.cmpi eq, %30, %33 : vector<16x16xi32>
    %cst = arith.constant 0.000000e+00 : f32
    %cst_34 = arith.constant -1.000000e+30 : f32
    %35 = vector.broadcast %cst : f32 to vector<16x16xf32>
    %36 = vector.broadcast %cst_34 : f32 to vector<16x16xf32>
    %37 = arith.select %34, %35, %36 : vector<16x16xi1>, vector<16x16xf32>
    %38 = tpu.iota {dimensions = array<i32: 0>} : vector<16x32xi32>
    %c1_i32_35 = arith.constant 1 : i32
    %39 = vector.broadcast %c1_i32_35 : i32 to vector<16x32xi32>
    %40 = arith.andi %38, %39 : vector<16x32xi32>
    %41 = tpu.iota {dimensions = array<i32: 1>} : vector<16x32xi32>
    %c1_i32_36 = arith.constant 1 : i32
    %42 = vector.broadcast %c1_i32_36 : i32 to vector<16x32xi32>
    %43 = arith.andi %41, %42 : vector<16x32xi32>
    %44 = arith.cmpi eq, %40, %43 : vector<16x32xi32>
    %cst_37 = arith.constant 0.000000e+00 : f32
    %cst_38 = arith.constant -1.000000e+30 : f32
    %45 = vector.broadcast %cst_37 : f32 to vector<16x32xf32>
    %46 = vector.broadcast %cst_38 : f32 to vector<16x32xf32>
    %47 = arith.select %44, %45, %46 : vector<16x32xi1>, vector<16x32xf32>
    %48 = arith.addf %1, %3 : vector<32x32xf32>
    %cst_39 = arith.constant dense<0.000000e+00> : vector<32x32xf32>
    %49 = tpu.matmul %48, %8, %cst_39 {dimension_numbers = #tpu.dot_dimension_numbers<[1], [0], [0], [1], [0, 0, 1, 1], [], []>} : vector<32x32xf32>, vector<32x32xf32>, vector<32x32xf32> -> vector<32x32xf32>
    %50 = vector.broadcast %17 : vector<1x32xf32> to vector<32x32xf32>
    %51 = arith.addf %49, %50 : vector<32x32xf32>
    %cst_40 = arith.constant dense<0.000000e+00> : vector<32x32xf32>
    %52 = tpu.matmul %1, %9, %cst_40 {dimension_numbers = #tpu.dot_dimension_numbers<[1], [0], [0], [1], [0, 0, 1, 1], [], []>} : vector<32x32xf32>, vector<32x32xf32>, vector<32x32xf32> -> vector<32x32xf32>
    %53 = vector.broadcast %18 : vector<1x32xf32> to vector<32x32xf32>
    %54 = arith.addf %52, %53 : vector<32x32xf32>
    %55 = arith.addf %0, %2 : vector<16x32xf32>
    %cst_41 = arith.constant dense<0.000000e+00> : vector<16x64xf32>
    %56 = tpu.matmul %55, %4, %cst_41 {dimension_numbers = #tpu.dot_dimension_numbers<[1], [0], [0], [1], [0, 0, 1, 1], [], []>} : vector<16x32xf32>, vector<32x64xf32>, vector<16x64xf32> -> vector<16x64xf32>
    %57 = vector.broadcast %13 : vector<1x64xf32> to vector<16x64xf32>
    %58 = arith.addf %56, %57 : vector<16x64xf32>
    %cst_42 = arith.constant dense<0.000000e+00> : vector<16x32xf32>
    %59 = tpu.matmul %0, %5, %cst_42 {dimension_numbers = #tpu.dot_dimension_numbers<[1], [0], [0], [1], [0, 0, 1, 1], [], []>} : vector<16x32xf32>, vector<32x32xf32>, vector<16x32xf32> -> vector<16x32xf32>
    %60 = vector.broadcast %14 : vector<1x32xf32> to vector<16x32xf32>
    %61 = arith.addf %59, %60 : vector<16x32xf32>
    %62 = vector.extract_strided_slice %58 {offsets = [0, 0], sizes = [16, 32], strides = [1, 1]} : vector<16x64xf32> to vector<16x32xf32>
    %63 = vector.extract_strided_slice %58 {offsets = [0, 32], sizes = [16, 32], strides = [1, 1]} : vector<16x64xf32> to vector<16x32xf32>
    %64 = vector.extract_strided_slice %62 {offsets = [0, 0], sizes = [16, 8], strides = [1, 1]} : vector<16x32xf32> to vector<16x8xf32>
    %65 = vector.extract_strided_slice %63 {offsets = [0, 0], sizes = [16, 8], strides = [1, 1]} : vector<16x32xf32> to vector<16x8xf32>
    %cst_43 = arith.constant dense<0.000000e+00> : vector<16x16xf32>
    %66 = tpu.matmul %64, %65, %cst_43 {dimension_numbers = #tpu.dot_dimension_numbers<[1], [1], [0], [0], [0, 0, 1, 0], [], []>} : vector<16x8xf32>, vector<16x8xf32>, vector<16x16xf32> -> vector<16x16xf32>
    %67 = arith.addf %66, %37 : vector<16x16xf32>
    %cst_44 = arith.constant dense<0xFF800000> : vector<16xf32>
    %68 = vector.multi_reduction <maximumf>, %67, %cst_44 [1] : vector<16x16xf32> to vector<16xf32>
    %69 = vector.shape_cast %68 : vector<16xf32> to vector<16x1xf32>
    %70 = vector.broadcast %69 : vector<16x1xf32> to vector<16x16xf32>
    %71 = arith.subf %67, %70 : vector<16x16xf32>
    %72 = math.exp %71 : vector<16x16xf32>
    %cst_45 = arith.constant dense<0.000000e+00> : vector<16xf32>
    %73 = vector.multi_reduction <add>, %72, %cst_45 [1] : vector<16x16xf32> to vector<16xf32>
    %74 = vector.shape_cast %73 : vector<16xf32> to vector<16x1xf32>
    %75 = vector.broadcast %74 : vector<16x1xf32> to vector<16x16xf32>
    %76 = arith.divf %72, %75 : vector<16x16xf32>
    %77 = vector.extract_strided_slice %61 {offsets = [0, 0], sizes = [16, 8], strides = [1, 1]} : vector<16x32xf32> to vector<16x8xf32>
    %cst_46 = arith.constant dense<0.000000e+00> : vector<16x8xf32>
    %78 = tpu.matmul %76, %77, %cst_46 {dimension_numbers = #tpu.dot_dimension_numbers<[1], [0], [0], [1], [0, 0, 1, 1], [], []>} : vector<16x16xf32>, vector<16x8xf32>, vector<16x8xf32> -> vector<16x8xf32>
    %79 = vector.extract_strided_slice %62 {offsets = [0, 8], sizes = [16, 8], strides = [1, 1]} : vector<16x32xf32> to vector<16x8xf32>
    %80 = vector.extract_strided_slice %63 {offsets = [0, 8], sizes = [16, 8], strides = [1, 1]} : vector<16x32xf32> to vector<16x8xf32>
    %cst_47 = arith.constant dense<0.000000e+00> : vector<16x16xf32>
    %81 = tpu.matmul %79, %80, %cst_47 {dimension_numbers = #tpu.dot_dimension_numbers<[1], [1], [0], [0], [0, 0, 1, 0], [], []>} : vector<16x8xf32>, vector<16x8xf32>, vector<16x16xf32> -> vector<16x16xf32>
    %82 = arith.addf %81, %37 : vector<16x16xf32>
    %cst_48 = arith.constant dense<0xFF800000> : vector<16xf32>
    %83 = vector.multi_reduction <maximumf>, %82, %cst_48 [1] : vector<16x16xf32> to vector<16xf32>
    %84 = vector.shape_cast %83 : vector<16xf32> to vector<16x1xf32>
    %85 = vector.broadcast %84 : vector<16x1xf32> to vector<16x16xf32>
    %86 = arith.subf %82, %85 : vector<16x16xf32>
    %87 = math.exp %86 : vector<16x16xf32>
    %cst_49 = arith.constant dense<0.000000e+00> : vector<16xf32>
    %88 = vector.multi_reduction <add>, %87, %cst_49 [1] : vector<16x16xf32> to vector<16xf32>
    %89 = vector.shape_cast %88 : vector<16xf32> to vector<16x1xf32>
    %90 = vector.broadcast %89 : vector<16x1xf32> to vector<16x16xf32>
    %91 = arith.divf %87, %90 : vector<16x16xf32>
    %92 = vector.extract_strided_slice %61 {offsets = [0, 8], sizes = [16, 8], strides = [1, 1]} : vector<16x32xf32> to vector<16x8xf32>
    %cst_50 = arith.constant dense<0.000000e+00> : vector<16x8xf32>
    %93 = tpu.matmul %91, %92, %cst_50 {dimension_numbers = #tpu.dot_dimension_numbers<[1], [0], [0], [1], [0, 0, 1, 1], [], []>} : vector<16x16xf32>, vector<16x8xf32>, vector<16x8xf32> -> vector<16x8xf32>
    %94 = vector.extract_strided_slice %62 {offsets = [0, 16], sizes = [16, 8], strides = [1, 1]} : vector<16x32xf32> to vector<16x8xf32>
    %95 = vector.extract_strided_slice %63 {offsets = [0, 16], sizes = [16, 8], strides = [1, 1]} : vector<16x32xf32> to vector<16x8xf32>
    %cst_51 = arith.constant dense<0.000000e+00> : vector<16x16xf32>
    %96 = tpu.matmul %94, %95, %cst_51 {dimension_numbers = #tpu.dot_dimension_numbers<[1], [1], [0], [0], [0, 0, 1, 0], [], []>} : vector<16x8xf32>, vector<16x8xf32>, vector<16x16xf32> -> vector<16x16xf32>
    %97 = arith.addf %96, %37 : vector<16x16xf32>
    %cst_52 = arith.constant dense<0xFF800000> : vector<16xf32>
    %98 = vector.multi_reduction <maximumf>, %97, %cst_52 [1] : vector<16x16xf32> to vector<16xf32>
    %99 = vector.shape_cast %98 : vector<16xf32> to vector<16x1xf32>
    %100 = vector.broadcast %99 : vector<16x1xf32> to vector<16x16xf32>
    %101 = arith.subf %97, %100 : vector<16x16xf32>
    %102 = math.exp %101 : vector<16x16xf32>
    %cst_53 = arith.constant dense<0.000000e+00> : vector<16xf32>
    %103 = vector.multi_reduction <add>, %102, %cst_53 [1] : vector<16x16xf32> to vector<16xf32>
    %104 = vector.shape_cast %103 : vector<16xf32> to vector<16x1xf32>
    %105 = vector.broadcast %104 : vector<16x1xf32> to vector<16x16xf32>
    %106 = arith.divf %102, %105 : vector<16x16xf32>
    %107 = vector.extract_strided_slice %61 {offsets = [0, 16], sizes = [16, 8], strides = [1, 1]} : vector<16x32xf32> to vector<16x8xf32>
    %cst_54 = arith.constant dense<0.000000e+00> : vector<16x8xf32>
    %108 = tpu.matmul %106, %107, %cst_54 {dimension_numbers = #tpu.dot_dimension_numbers<[1], [0], [0], [1], [0, 0, 1, 1], [], []>} : vector<16x16xf32>, vector<16x8xf32>, vector<16x8xf32> -> vector<16x8xf32>
    %109 = vector.extract_strided_slice %62 {offsets = [0, 24], sizes = [16, 8], strides = [1, 1]} : vector<16x32xf32> to vector<16x8xf32>
    %110 = vector.extract_strided_slice %63 {offsets = [0, 24], sizes = [16, 8], strides = [1, 1]} : vector<16x32xf32> to vector<16x8xf32>
    %cst_55 = arith.constant dense<0.000000e+00> : vector<16x16xf32>
    %111 = tpu.matmul %109, %110, %cst_55 {dimension_numbers = #tpu.dot_dimension_numbers<[1], [1], [0], [0], [0, 0, 1, 0], [], []>} : vector<16x8xf32>, vector<16x8xf32>, vector<16x16xf32> -> vector<16x16xf32>
    %112 = arith.addf %111, %37 : vector<16x16xf32>
    %cst_56 = arith.constant dense<0xFF800000> : vector<16xf32>
    %113 = vector.multi_reduction <maximumf>, %112, %cst_56 [1] : vector<16x16xf32> to vector<16xf32>
    %114 = vector.shape_cast %113 : vector<16xf32> to vector<16x1xf32>
    %115 = vector.broadcast %114 : vector<16x1xf32> to vector<16x16xf32>
    %116 = arith.subf %112, %115 : vector<16x16xf32>
    %117 = math.exp %116 : vector<16x16xf32>
    %cst_57 = arith.constant dense<0.000000e+00> : vector<16xf32>
    %118 = vector.multi_reduction <add>, %117, %cst_57 [1] : vector<16x16xf32> to vector<16xf32>
    %119 = vector.shape_cast %118 : vector<16xf32> to vector<16x1xf32>
    %120 = vector.broadcast %119 : vector<16x1xf32> to vector<16x16xf32>
    %121 = arith.divf %117, %120 : vector<16x16xf32>
    %122 = vector.extract_strided_slice %61 {offsets = [0, 24], sizes = [16, 8], strides = [1, 1]} : vector<16x32xf32> to vector<16x8xf32>
    %cst_58 = arith.constant dense<0.000000e+00> : vector<16x8xf32>
    %123 = tpu.matmul %121, %122, %cst_58 {dimension_numbers = #tpu.dot_dimension_numbers<[1], [0], [0], [1], [0, 0, 1, 1], [], []>} : vector<16x16xf32>, vector<16x8xf32>, vector<16x8xf32> -> vector<16x8xf32>
    %124 = tpu.concatenate %78, %93, %108, %123 in 1 : vector<16x8xf32>, vector<16x8xf32>, vector<16x8xf32>, vector<16x8xf32> -> vector<16x32xf32>
    %cst_59 = arith.constant dense<0.000000e+00> : vector<16x32xf32>
    %125 = tpu.matmul %124, %6, %cst_59 {dimension_numbers = #tpu.dot_dimension_numbers<[1], [0], [0], [1], [0, 0, 1, 1], [], []>} : vector<16x32xf32>, vector<32x32xf32>, vector<16x32xf32> -> vector<16x32xf32>
    %126 = vector.broadcast %15 : vector<1x32xf32> to vector<16x32xf32>
    %127 = arith.addf %125, %126 : vector<16x32xf32>
    %128 = arith.addf %0, %127 : vector<16x32xf32>
    %cst_60 = arith.constant dense<0.000000e+00> : vector<16xf32>
    %129 = vector.multi_reduction <add>, %128, %cst_60 [1] : vector<16x32xf32> to vector<16xf32>
    %130 = vector.shape_cast %129 : vector<16xf32> to vector<16x1xf32>
    %cst_61 = arith.constant 3.200000e+01 : f32
    %131 = vector.broadcast %cst_61 : f32 to vector<16x1xf32>
    %132 = arith.divf %130, %131 : vector<16x1xf32>
    %133 = vector.broadcast %132 : vector<16x1xf32> to vector<16x32xf32>
    %134 = arith.subf %128, %133 : vector<16x32xf32>
    %135 = arith.mulf %134, %134 : vector<16x32xf32>
    %cst_62 = arith.constant dense<0.000000e+00> : vector<16xf32>
    %136 = vector.multi_reduction <add>, %135, %cst_62 [1] : vector<16x32xf32> to vector<16xf32>
    %137 = vector.shape_cast %136 : vector<16xf32> to vector<16x1xf32>
    %cst_63 = arith.constant 3.200000e+01 : f32
    %138 = vector.broadcast %cst_63 : f32 to vector<16x1xf32>
    %139 = arith.divf %137, %138 : vector<16x1xf32>
    %cst_64 = arith.constant 9.99999974E-6 : f32
    %140 = vector.broadcast %cst_64 : f32 to vector<16x1xf32>
    %141 = arith.addf %139, %140 : vector<16x1xf32>
    %142 = math.rsqrt %141 : vector<16x1xf32>
    %143 = vector.broadcast %142 : vector<16x1xf32> to vector<16x32xf32>
    %144 = arith.mulf %134, %143 : vector<16x32xf32>
    %145 = vector.broadcast %20 : vector<1x32xf32> to vector<16x32xf32>
    %146 = arith.mulf %144, %145 : vector<16x32xf32>
    %147 = vector.broadcast %21 : vector<1x32xf32> to vector<16x32xf32>
    %148 = arith.addf %146, %147 : vector<16x32xf32>
    %149 = arith.addf %148, %2 : vector<16x32xf32>
    %cst_65 = arith.constant dense<0.000000e+00> : vector<16x32xf32>
    %150 = tpu.matmul %149, %7, %cst_65 {dimension_numbers = #tpu.dot_dimension_numbers<[1], [0], [0], [1], [0, 0, 1, 1], [], []>} : vector<16x32xf32>, vector<32x32xf32>, vector<16x32xf32> -> vector<16x32xf32>
    %151 = vector.broadcast %16 : vector<1x32xf32> to vector<16x32xf32>
    %152 = arith.addf %150, %151 : vector<16x32xf32>
    %153 = vector.extract_strided_slice %152 {offsets = [0, 0], sizes = [16, 8], strides = [1, 1]} : vector<16x32xf32> to vector<16x8xf32>
    %154 = vector.extract_strided_slice %51 {offsets = [0, 0], sizes = [32, 8], strides = [1, 1]} : vector<32x32xf32> to vector<32x8xf32>
    %cst_66 = arith.constant dense<0.000000e+00> : vector<16x32xf32>
    %155 = tpu.matmul %153, %154, %cst_66 {dimension_numbers = #tpu.dot_dimension_numbers<[1], [1], [0], [0], [0, 0, 1, 0], [], []>} : vector<16x8xf32>, vector<32x8xf32>, vector<16x32xf32> -> vector<16x32xf32>
    %156 = arith.addf %155, %47 : vector<16x32xf32>
    %cst_67 = arith.constant dense<0xFF800000> : vector<16xf32>
    %157 = vector.multi_reduction <maximumf>, %156, %cst_67 [1] : vector<16x32xf32> to vector<16xf32>
    %158 = vector.shape_cast %157 : vector<16xf32> to vector<16x1xf32>
    %159 = vector.broadcast %158 : vector<16x1xf32> to vector<16x32xf32>
    %160 = arith.subf %156, %159 : vector<16x32xf32>
    %161 = math.exp %160 : vector<16x32xf32>
    %cst_68 = arith.constant dense<0.000000e+00> : vector<16xf32>
    %162 = vector.multi_reduction <add>, %161, %cst_68 [1] : vector<16x32xf32> to vector<16xf32>
    %163 = vector.shape_cast %162 : vector<16xf32> to vector<16x1xf32>
    %164 = vector.broadcast %163 : vector<16x1xf32> to vector<16x32xf32>
    %165 = arith.divf %161, %164 : vector<16x32xf32>
    %166 = vector.extract_strided_slice %54 {offsets = [0, 0], sizes = [32, 8], strides = [1, 1]} : vector<32x32xf32> to vector<32x8xf32>
    %cst_69 = arith.constant dense<0.000000e+00> : vector<16x8xf32>
    %167 = tpu.matmul %165, %166, %cst_69 {dimension_numbers = #tpu.dot_dimension_numbers<[1], [0], [0], [1], [0, 0, 1, 1], [], []>} : vector<16x32xf32>, vector<32x8xf32>, vector<16x8xf32> -> vector<16x8xf32>
    %168 = vector.extract_strided_slice %152 {offsets = [0, 8], sizes = [16, 8], strides = [1, 1]} : vector<16x32xf32> to vector<16x8xf32>
    %169 = vector.extract_strided_slice %51 {offsets = [0, 8], sizes = [32, 8], strides = [1, 1]} : vector<32x32xf32> to vector<32x8xf32>
    %cst_70 = arith.constant dense<0.000000e+00> : vector<16x32xf32>
    %170 = tpu.matmul %168, %169, %cst_70 {dimension_numbers = #tpu.dot_dimension_numbers<[1], [1], [0], [0], [0, 0, 1, 0], [], []>} : vector<16x8xf32>, vector<32x8xf32>, vector<16x32xf32> -> vector<16x32xf32>
    %171 = arith.addf %170, %47 : vector<16x32xf32>
    %cst_71 = arith.constant dense<0xFF800000> : vector<16xf32>
    %172 = vector.multi_reduction <maximumf>, %171, %cst_71 [1] : vector<16x32xf32> to vector<16xf32>
    %173 = vector.shape_cast %172 : vector<16xf32> to vector<16x1xf32>
    %174 = vector.broadcast %173 : vector<16x1xf32> to vector<16x32xf32>
    %175 = arith.subf %171, %174 : vector<16x32xf32>
    %176 = math.exp %175 : vector<16x32xf32>
    %cst_72 = arith.constant dense<0.000000e+00> : vector<16xf32>
    %177 = vector.multi_reduction <add>, %176, %cst_72 [1] : vector<16x32xf32> to vector<16xf32>
    %178 = vector.shape_cast %177 : vector<16xf32> to vector<16x1xf32>
    %179 = vector.broadcast %178 : vector<16x1xf32> to vector<16x32xf32>
    %180 = arith.divf %176, %179 : vector<16x32xf32>
    %181 = vector.extract_strided_slice %54 {offsets = [0, 8], sizes = [32, 8], strides = [1, 1]} : vector<32x32xf32> to vector<32x8xf32>
    %cst_73 = arith.constant dense<0.000000e+00> : vector<16x8xf32>
    %182 = tpu.matmul %180, %181, %cst_73 {dimension_numbers = #tpu.dot_dimension_numbers<[1], [0], [0], [1], [0, 0, 1, 1], [], []>} : vector<16x32xf32>, vector<32x8xf32>, vector<16x8xf32> -> vector<16x8xf32>
    %183 = vector.extract_strided_slice %152 {offsets = [0, 16], sizes = [16, 8], strides = [1, 1]} : vector<16x32xf32> to vector<16x8xf32>
    %184 = vector.extract_strided_slice %51 {offsets = [0, 16], sizes = [32, 8], strides = [1, 1]} : vector<32x32xf32> to vector<32x8xf32>
    %cst_74 = arith.constant dense<0.000000e+00> : vector<16x32xf32>
    %185 = tpu.matmul %183, %184, %cst_74 {dimension_numbers = #tpu.dot_dimension_numbers<[1], [1], [0], [0], [0, 0, 1, 0], [], []>} : vector<16x8xf32>, vector<32x8xf32>, vector<16x32xf32> -> vector<16x32xf32>
    %186 = arith.addf %185, %47 : vector<16x32xf32>
    %cst_75 = arith.constant dense<0xFF800000> : vector<16xf32>
    %187 = vector.multi_reduction <maximumf>, %186, %cst_75 [1] : vector<16x32xf32> to vector<16xf32>
    %188 = vector.shape_cast %187 : vector<16xf32> to vector<16x1xf32>
    %189 = vector.broadcast %188 : vector<16x1xf32> to vector<16x32xf32>
    %190 = arith.subf %186, %189 : vector<16x32xf32>
    %191 = math.exp %190 : vector<16x32xf32>
    %cst_76 = arith.constant dense<0.000000e+00> : vector<16xf32>
    %192 = vector.multi_reduction <add>, %191, %cst_76 [1] : vector<16x32xf32> to vector<16xf32>
    %193 = vector.shape_cast %192 : vector<16xf32> to vector<16x1xf32>
    %194 = vector.broadcast %193 : vector<16x1xf32> to vector<16x32xf32>
    %195 = arith.divf %191, %194 : vector<16x32xf32>
    %196 = vector.extract_strided_slice %54 {offsets = [0, 16], sizes = [32, 8], strides = [1, 1]} : vector<32x32xf32> to vector<32x8xf32>
    %cst_77 = arith.constant dense<0.000000e+00> : vector<16x8xf32>
    %197 = tpu.matmul %195, %196, %cst_77 {dimension_numbers = #tpu.dot_dimension_numbers<[1], [0], [0], [1], [0, 0, 1, 1], [], []>} : vector<16x32xf32>, vector<32x8xf32>, vector<16x8xf32> -> vector<16x8xf32>
    %198 = vector.extract_strided_slice %152 {offsets = [0, 24], sizes = [16, 8], strides = [1, 1]} : vector<16x32xf32> to vector<16x8xf32>
    %199 = vector.extract_strided_slice %51 {offsets = [0, 24], sizes = [32, 8], strides = [1, 1]} : vector<32x32xf32> to vector<32x8xf32>
    %cst_78 = arith.constant dense<0.000000e+00> : vector<16x32xf32>
    %200 = tpu.matmul %198, %199, %cst_78 {dimension_numbers = #tpu.dot_dimension_numbers<[1], [1], [0], [0], [0, 0, 1, 0], [], []>} : vector<16x8xf32>, vector<32x8xf32>, vector<16x32xf32> -> vector<16x32xf32>
    %201 = arith.addf %200, %47 : vector<16x32xf32>
    %cst_79 = arith.constant dense<0xFF800000> : vector<16xf32>
    %202 = vector.multi_reduction <maximumf>, %201, %cst_79 [1] : vector<16x32xf32> to vector<16xf32>
    %203 = vector.shape_cast %202 : vector<16xf32> to vector<16x1xf32>
    %204 = vector.broadcast %203 : vector<16x1xf32> to vector<16x32xf32>
    %205 = arith.subf %201, %204 : vector<16x32xf32>
    %206 = math.exp %205 : vector<16x32xf32>
    %cst_80 = arith.constant dense<0.000000e+00> : vector<16xf32>
    %207 = vector.multi_reduction <add>, %206, %cst_80 [1] : vector<16x32xf32> to vector<16xf32>
    %208 = vector.shape_cast %207 : vector<16xf32> to vector<16x1xf32>
    %209 = vector.broadcast %208 : vector<16x1xf32> to vector<16x32xf32>
    %210 = arith.divf %206, %209 : vector<16x32xf32>
    %211 = vector.extract_strided_slice %54 {offsets = [0, 24], sizes = [32, 8], strides = [1, 1]} : vector<32x32xf32> to vector<32x8xf32>
    %cst_81 = arith.constant dense<0.000000e+00> : vector<16x8xf32>
    %212 = tpu.matmul %210, %211, %cst_81 {dimension_numbers = #tpu.dot_dimension_numbers<[1], [0], [0], [1], [0, 0, 1, 1], [], []>} : vector<16x32xf32>, vector<32x8xf32>, vector<16x8xf32> -> vector<16x8xf32>
    %213 = tpu.concatenate %167, %182, %197, %212 in 1 : vector<16x8xf32>, vector<16x8xf32>, vector<16x8xf32>, vector<16x8xf32> -> vector<16x32xf32>
    %cst_82 = arith.constant dense<0.000000e+00> : vector<16x32xf32>
    %214 = tpu.matmul %213, %10, %cst_82 {dimension_numbers = #tpu.dot_dimension_numbers<[1], [0], [0], [1], [0, 0, 1, 1], [], []>} : vector<16x32xf32>, vector<32x32xf32>, vector<16x32xf32> -> vector<16x32xf32>
    %215 = vector.broadcast %19 : vector<1x32xf32> to vector<16x32xf32>
    %216 = arith.addf %214, %215 : vector<16x32xf32>
    %217 = arith.addf %148, %216 : vector<16x32xf32>
    %cst_83 = arith.constant dense<0.000000e+00> : vector<16xf32>
    %218 = vector.multi_reduction <add>, %217, %cst_83 [1] : vector<16x32xf32> to vector<16xf32>
    %219 = vector.shape_cast %218 : vector<16xf32> to vector<16x1xf32>
    %cst_84 = arith.constant 3.200000e+01 : f32
    %220 = vector.broadcast %cst_84 : f32 to vector<16x1xf32>
    %221 = arith.divf %219, %220 : vector<16x1xf32>
    %222 = vector.broadcast %221 : vector<16x1xf32> to vector<16x32xf32>
    %223 = arith.subf %217, %222 : vector<16x32xf32>
    %224 = arith.mulf %223, %223 : vector<16x32xf32>
    %cst_85 = arith.constant dense<0.000000e+00> : vector<16xf32>
    %225 = vector.multi_reduction <add>, %224, %cst_85 [1] : vector<16x32xf32> to vector<16xf32>
    %226 = vector.shape_cast %225 : vector<16xf32> to vector<16x1xf32>
    %cst_86 = arith.constant 3.200000e+01 : f32
    %227 = vector.broadcast %cst_86 : f32 to vector<16x1xf32>
    %228 = arith.divf %226, %227 : vector<16x1xf32>
    %cst_87 = arith.constant 9.99999974E-6 : f32
    %229 = vector.broadcast %cst_87 : f32 to vector<16x1xf32>
    %230 = arith.addf %228, %229 : vector<16x1xf32>
    %231 = math.rsqrt %230 : vector<16x1xf32>
    %232 = vector.broadcast %231 : vector<16x1xf32> to vector<16x32xf32>
    %233 = arith.mulf %223, %232 : vector<16x32xf32>
    %234 = vector.broadcast %22 : vector<1x32xf32> to vector<16x32xf32>
    %235 = arith.mulf %233, %234 : vector<16x32xf32>
    %236 = vector.broadcast %23 : vector<1x32xf32> to vector<16x32xf32>
    %237 = arith.addf %235, %236 : vector<16x32xf32>
    %cst_88 = arith.constant dense<0.000000e+00> : vector<16x64xf32>
    %238 = tpu.matmul %237, %11, %cst_88 {dimension_numbers = #tpu.dot_dimension_numbers<[1], [0], [0], [1], [0, 0, 1, 1], [], []>} : vector<16x32xf32>, vector<32x64xf32>, vector<16x64xf32> -> vector<16x64xf32>
    %239 = vector.broadcast %26 : vector<1x64xf32> to vector<16x64xf32>
    %240 = arith.addf %238, %239 : vector<16x64xf32>
    %cst_89 = arith.constant 0.000000e+00 : f32
    %241 = vector.broadcast %cst_89 : f32 to vector<16x64xf32>
    %242 = arith.maximumf %240, %241 : vector<16x64xf32>
    %cst_90 = arith.constant dense<0.000000e+00> : vector<16x32xf32>
    %243 = tpu.matmul %242, %12, %cst_90 {dimension_numbers = #tpu.dot_dimension_numbers<[1], [1], [0], [0], [0, 0, 1, 0], [], []>} : vector<16x64xf32>, vector<32x64xf32>, vector<16x32xf32> -> vector<16x32xf32>
    %244 = vector.broadcast %27 : vector<1x32xf32> to vector<16x32xf32>
    %245 = arith.addf %243, %244 : vector<16x32xf32>
    %246 = arith.addf %237, %245 : vector<16x32xf32>
    %cst_91 = arith.constant dense<0.000000e+00> : vector<16xf32>
    %247 = vector.multi_reduction <add>, %246, %cst_91 [1] : vector<16x32xf32> to vector<16xf32>
    %248 = vector.shape_cast %247 : vector<16xf32> to vector<16x1xf32>
    %cst_92 = arith.constant 3.200000e+01 : f32
    %249 = vector.broadcast %cst_92 : f32 to vector<16x1xf32>
    %250 = arith.divf %248, %249 : vector<16x1xf32>
    %251 = vector.broadcast %250 : vector<16x1xf32> to vector<16x32xf32>
    %252 = arith.subf %246, %251 : vector<16x32xf32>
    %253 = arith.mulf %252, %252 : vector<16x32xf32>
    %cst_93 = arith.constant dense<0.000000e+00> : vector<16xf32>
    %254 = vector.multi_reduction <add>, %253, %cst_93 [1] : vector<16x32xf32> to vector<16xf32>
    %255 = vector.shape_cast %254 : vector<16xf32> to vector<16x1xf32>
    %cst_94 = arith.constant 3.200000e+01 : f32
    %256 = vector.broadcast %cst_94 : f32 to vector<16x1xf32>
    %257 = arith.divf %255, %256 : vector<16x1xf32>
    %cst_95 = arith.constant 9.99999974E-6 : f32
    %258 = vector.broadcast %cst_95 : f32 to vector<16x1xf32>
    %259 = arith.addf %257, %258 : vector<16x1xf32>
    %260 = math.rsqrt %259 : vector<16x1xf32>
    %261 = vector.broadcast %260 : vector<16x1xf32> to vector<16x32xf32>
    %262 = arith.mulf %252, %261 : vector<16x32xf32>
    %263 = vector.broadcast %24 : vector<1x32xf32> to vector<16x32xf32>
    %264 = arith.mulf %262, %263 : vector<16x32xf32>
    %265 = vector.broadcast %25 : vector<1x32xf32> to vector<16x32xf32>
    %266 = arith.addf %264, %265 : vector<16x32xf32>
    %267 = arith.addf %266, %2 : vector<16x32xf32>
    %cst_96 = arith.constant dense<0.000000e+00> : vector<16x64xf32>
    %268 = tpu.matmul %267, %4, %cst_96 {dimension_numbers = #tpu.dot_dimension_numbers<[1], [0], [0], [1], [0, 0, 1, 1], [], []>} : vector<16x32xf32>, vector<32x64xf32>, vector<16x64xf32> -> vector<16x64xf32>
    %269 = vector.broadcast %13 : vector<1x64xf32> to vector<16x64xf32>
    %270 = arith.addf %268, %269 : vector<16x64xf32>
    %cst_97 = arith.constant dense<0.000000e+00> : vector<16x32xf32>
    %271 = tpu.matmul %266, %5, %cst_97 {dimension_numbers = #tpu.dot_dimension_numbers<[1], [0], [0], [1], [0, 0, 1, 1], [], []>} : vector<16x32xf32>, vector<32x32xf32>, vector<16x32xf32> -> vector<16x32xf32>
    %272 = vector.broadcast %14 : vector<1x32xf32> to vector<16x32xf32>
    %273 = arith.addf %271, %272 : vector<16x32xf32>
    %274 = vector.extract_strided_slice %270 {offsets = [0, 0], sizes = [16, 32], strides = [1, 1]} : vector<16x64xf32> to vector<16x32xf32>
    %275 = vector.extract_strided_slice %270 {offsets = [0, 32], sizes = [16, 32], strides = [1, 1]} : vector<16x64xf32> to vector<16x32xf32>
    %276 = vector.extract_strided_slice %274 {offsets = [0, 0], sizes = [16, 8], strides = [1, 1]} : vector<16x32xf32> to vector<16x8xf32>
    %277 = vector.extract_strided_slice %275 {offsets = [0, 0], sizes = [16, 8], strides = [1, 1]} : vector<16x32xf32> to vector<16x8xf32>
    %cst_98 = arith.constant dense<0.000000e+00> : vector<16x16xf32>
    %278 = tpu.matmul %276, %277, %cst_98 {dimension_numbers = #tpu.dot_dimension_numbers<[1], [1], [0], [0], [0, 0, 1, 0], [], []>} : vector<16x8xf32>, vector<16x8xf32>, vector<16x16xf32> -> vector<16x16xf32>
    %279 = arith.addf %278, %37 : vector<16x16xf32>
    %cst_99 = arith.constant dense<0xFF800000> : vector<16xf32>
    %280 = vector.multi_reduction <maximumf>, %279, %cst_99 [1] : vector<16x16xf32> to vector<16xf32>
    %281 = vector.shape_cast %280 : vector<16xf32> to vector<16x1xf32>
    %282 = vector.broadcast %281 : vector<16x1xf32> to vector<16x16xf32>
    %283 = arith.subf %279, %282 : vector<16x16xf32>
    %284 = math.exp %283 : vector<16x16xf32>
    %cst_100 = arith.constant dense<0.000000e+00> : vector<16xf32>
    %285 = vector.multi_reduction <add>, %284, %cst_100 [1] : vector<16x16xf32> to vector<16xf32>
    %286 = vector.shape_cast %285 : vector<16xf32> to vector<16x1xf32>
    %287 = vector.broadcast %286 : vector<16x1xf32> to vector<16x16xf32>
    %288 = arith.divf %284, %287 : vector<16x16xf32>
    %289 = vector.extract_strided_slice %273 {offsets = [0, 0], sizes = [16, 8], strides = [1, 1]} : vector<16x32xf32> to vector<16x8xf32>
    %cst_101 = arith.constant dense<0.000000e+00> : vector<16x8xf32>
    %290 = tpu.matmul %288, %289, %cst_101 {dimension_numbers = #tpu.dot_dimension_numbers<[1], [0], [0], [1], [0, 0, 1, 1], [], []>} : vector<16x16xf32>, vector<16x8xf32>, vector<16x8xf32> -> vector<16x8xf32>
    %291 = vector.extract_strided_slice %274 {offsets = [0, 8], sizes = [16, 8], strides = [1, 1]} : vector<16x32xf32> to vector<16x8xf32>
    %292 = vector.extract_strided_slice %275 {offsets = [0, 8], sizes = [16, 8], strides = [1, 1]} : vector<16x32xf32> to vector<16x8xf32>
    %cst_102 = arith.constant dense<0.000000e+00> : vector<16x16xf32>
    %293 = tpu.matmul %291, %292, %cst_102 {dimension_numbers = #tpu.dot_dimension_numbers<[1], [1], [0], [0], [0, 0, 1, 0], [], []>} : vector<16x8xf32>, vector<16x8xf32>, vector<16x16xf32> -> vector<16x16xf32>
    %294 = arith.addf %293, %37 : vector<16x16xf32>
    %cst_103 = arith.constant dense<0xFF800000> : vector<16xf32>
    %295 = vector.multi_reduction <maximumf>, %294, %cst_103 [1] : vector<16x16xf32> to vector<16xf32>
    %296 = vector.shape_cast %295 : vector<16xf32> to vector<16x1xf32>
    %297 = vector.broadcast %296 : vector<16x1xf32> to vector<16x16xf32>
    %298 = arith.subf %294, %297 : vector<16x16xf32>
    %299 = math.exp %298 : vector<16x16xf32>
    %cst_104 = arith.constant dense<0.000000e+00> : vector<16xf32>
    %300 = vector.multi_reduction <add>, %299, %cst_104 [1] : vector<16x16xf32> to vector<16xf32>
    %301 = vector.shape_cast %300 : vector<16xf32> to vector<16x1xf32>
    %302 = vector.broadcast %301 : vector<16x1xf32> to vector<16x16xf32>
    %303 = arith.divf %299, %302 : vector<16x16xf32>
    %304 = vector.extract_strided_slice %273 {offsets = [0, 8], sizes = [16, 8], strides = [1, 1]} : vector<16x32xf32> to vector<16x8xf32>
    %cst_105 = arith.constant dense<0.000000e+00> : vector<16x8xf32>
    %305 = tpu.matmul %303, %304, %cst_105 {dimension_numbers = #tpu.dot_dimension_numbers<[1], [0], [0], [1], [0, 0, 1, 1], [], []>} : vector<16x16xf32>, vector<16x8xf32>, vector<16x8xf32> -> vector<16x8xf32>
    %306 = vector.extract_strided_slice %274 {offsets = [0, 16], sizes = [16, 8], strides = [1, 1]} : vector<16x32xf32> to vector<16x8xf32>
    %307 = vector.extract_strided_slice %275 {offsets = [0, 16], sizes = [16, 8], strides = [1, 1]} : vector<16x32xf32> to vector<16x8xf32>
    %cst_106 = arith.constant dense<0.000000e+00> : vector<16x16xf32>
    %308 = tpu.matmul %306, %307, %cst_106 {dimension_numbers = #tpu.dot_dimension_numbers<[1], [1], [0], [0], [0, 0, 1, 0], [], []>} : vector<16x8xf32>, vector<16x8xf32>, vector<16x16xf32> -> vector<16x16xf32>
    %309 = arith.addf %308, %37 : vector<16x16xf32>
    %cst_107 = arith.constant dense<0xFF800000> : vector<16xf32>
    %310 = vector.multi_reduction <maximumf>, %309, %cst_107 [1] : vector<16x16xf32> to vector<16xf32>
    %311 = vector.shape_cast %310 : vector<16xf32> to vector<16x1xf32>
    %312 = vector.broadcast %311 : vector<16x1xf32> to vector<16x16xf32>
    %313 = arith.subf %309, %312 : vector<16x16xf32>
    %314 = math.exp %313 : vector<16x16xf32>
    %cst_108 = arith.constant dense<0.000000e+00> : vector<16xf32>
    %315 = vector.multi_reduction <add>, %314, %cst_108 [1] : vector<16x16xf32> to vector<16xf32>
    %316 = vector.shape_cast %315 : vector<16xf32> to vector<16x1xf32>
    %317 = vector.broadcast %316 : vector<16x1xf32> to vector<16x16xf32>
    %318 = arith.divf %314, %317 : vector<16x16xf32>
    %319 = vector.extract_strided_slice %273 {offsets = [0, 16], sizes = [16, 8], strides = [1, 1]} : vector<16x32xf32> to vector<16x8xf32>
    %cst_109 = arith.constant dense<0.000000e+00> : vector<16x8xf32>
    %320 = tpu.matmul %318, %319, %cst_109 {dimension_numbers = #tpu.dot_dimension_numbers<[1], [0], [0], [1], [0, 0, 1, 1], [], []>} : vector<16x16xf32>, vector<16x8xf32>, vector<16x8xf32> -> vector<16x8xf32>
    %321 = vector.extract_strided_slice %274 {offsets = [0, 24], sizes = [16, 8], strides = [1, 1]} : vector<16x32xf32> to vector<16x8xf32>
    %322 = vector.extract_strided_slice %275 {offsets = [0, 24], sizes = [16, 8], strides = [1, 1]} : vector<16x32xf32> to vector<16x8xf32>
    %cst_110 = arith.constant dense<0.000000e+00> : vector<16x16xf32>
    %323 = tpu.matmul %321, %322, %cst_110 {dimension_numbers = #tpu.dot_dimension_numbers<[1], [1], [0], [0], [0, 0, 1, 0], [], []>} : vector<16x8xf32>, vector<16x8xf32>, vector<16x16xf32> -> vector<16x16xf32>
    %324 = arith.addf %323, %37 : vector<16x16xf32>
    %cst_111 = arith.constant dense<0xFF800000> : vector<16xf32>
    %325 = vector.multi_reduction <maximumf>, %324, %cst_111 [1] : vector<16x16xf32> to vector<16xf32>
    %326 = vector.shape_cast %325 : vector<16xf32> to vector<16x1xf32>
    %327 = vector.broadcast %326 : vector<16x1xf32> to vector<16x16xf32>
    %328 = arith.subf %324, %327 : vector<16x16xf32>
    %329 = math.exp %328 : vector<16x16xf32>
    %cst_112 = arith.constant dense<0.000000e+00> : vector<16xf32>
    %330 = vector.multi_reduction <add>, %329, %cst_112 [1] : vector<16x16xf32> to vector<16xf32>
    %331 = vector.shape_cast %330 : vector<16xf32> to vector<16x1xf32>
    %332 = vector.broadcast %331 : vector<16x1xf32> to vector<16x16xf32>
    %333 = arith.divf %329, %332 : vector<16x16xf32>
    %334 = vector.extract_strided_slice %273 {offsets = [0, 24], sizes = [16, 8], strides = [1, 1]} : vector<16x32xf32> to vector<16x8xf32>
    %cst_113 = arith.constant dense<0.000000e+00> : vector<16x8xf32>
    %335 = tpu.matmul %333, %334, %cst_113 {dimension_numbers = #tpu.dot_dimension_numbers<[1], [0], [0], [1], [0, 0, 1, 1], [], []>} : vector<16x16xf32>, vector<16x8xf32>, vector<16x8xf32> -> vector<16x8xf32>
    %336 = tpu.concatenate %290, %305, %320, %335 in 1 : vector<16x8xf32>, vector<16x8xf32>, vector<16x8xf32>, vector<16x8xf32> -> vector<16x32xf32>
    %cst_114 = arith.constant dense<0.000000e+00> : vector<16x32xf32>
    %337 = tpu.matmul %336, %6, %cst_114 {dimension_numbers = #tpu.dot_dimension_numbers<[1], [0], [0], [1], [0, 0, 1, 1], [], []>} : vector<16x32xf32>, vector<32x32xf32>, vector<16x32xf32> -> vector<16x32xf32>
    %338 = vector.broadcast %15 : vector<1x32xf32> to vector<16x32xf32>
    %339 = arith.addf %337, %338 : vector<16x32xf32>
    %340 = arith.addf %266, %339 : vector<16x32xf32>
    %cst_115 = arith.constant dense<0.000000e+00> : vector<16xf32>
    %341 = vector.multi_reduction <add>, %340, %cst_115 [1] : vector<16x32xf32> to vector<16xf32>
    %342 = vector.shape_cast %341 : vector<16xf32> to vector<16x1xf32>
    %cst_116 = arith.constant 3.200000e+01 : f32
    %343 = vector.broadcast %cst_116 : f32 to vector<16x1xf32>
    %344 = arith.divf %342, %343 : vector<16x1xf32>
    %345 = vector.broadcast %344 : vector<16x1xf32> to vector<16x32xf32>
    %346 = arith.subf %340, %345 : vector<16x32xf32>
    %347 = arith.mulf %346, %346 : vector<16x32xf32>
    %cst_117 = arith.constant dense<0.000000e+00> : vector<16xf32>
    %348 = vector.multi_reduction <add>, %347, %cst_117 [1] : vector<16x32xf32> to vector<16xf32>
    %349 = vector.shape_cast %348 : vector<16xf32> to vector<16x1xf32>
    %cst_118 = arith.constant 3.200000e+01 : f32
    %350 = vector.broadcast %cst_118 : f32 to vector<16x1xf32>
    %351 = arith.divf %349, %350 : vector<16x1xf32>
    %cst_119 = arith.constant 9.99999974E-6 : f32
    %352 = vector.broadcast %cst_119 : f32 to vector<16x1xf32>
    %353 = arith.addf %351, %352 : vector<16x1xf32>
    %354 = math.rsqrt %353 : vector<16x1xf32>
    %355 = vector.broadcast %354 : vector<16x1xf32> to vector<16x32xf32>
    %356 = arith.mulf %346, %355 : vector<16x32xf32>
    %357 = vector.broadcast %20 : vector<1x32xf32> to vector<16x32xf32>
    %358 = arith.mulf %356, %357 : vector<16x32xf32>
    %359 = vector.broadcast %21 : vector<1x32xf32> to vector<16x32xf32>
    %360 = arith.addf %358, %359 : vector<16x32xf32>
    %361 = arith.addf %360, %2 : vector<16x32xf32>
    %cst_120 = arith.constant dense<0.000000e+00> : vector<16x32xf32>
    %362 = tpu.matmul %361, %7, %cst_120 {dimension_numbers = #tpu.dot_dimension_numbers<[1], [0], [0], [1], [0, 0, 1, 1], [], []>} : vector<16x32xf32>, vector<32x32xf32>, vector<16x32xf32> -> vector<16x32xf32>
    %363 = vector.broadcast %16 : vector<1x32xf32> to vector<16x32xf32>
    %364 = arith.addf %362, %363 : vector<16x32xf32>
    %365 = vector.extract_strided_slice %364 {offsets = [0, 0], sizes = [16, 8], strides = [1, 1]} : vector<16x32xf32> to vector<16x8xf32>
    %366 = vector.extract_strided_slice %51 {offsets = [0, 0], sizes = [32, 8], strides = [1, 1]} : vector<32x32xf32> to vector<32x8xf32>
    %cst_121 = arith.constant dense<0.000000e+00> : vector<16x32xf32>
    %367 = tpu.matmul %365, %366, %cst_121 {dimension_numbers = #tpu.dot_dimension_numbers<[1], [1], [0], [0], [0, 0, 1, 0], [], []>} : vector<16x8xf32>, vector<32x8xf32>, vector<16x32xf32> -> vector<16x32xf32>
    %368 = arith.addf %367, %47 : vector<16x32xf32>
    %cst_122 = arith.constant dense<0xFF800000> : vector<16xf32>
    %369 = vector.multi_reduction <maximumf>, %368, %cst_122 [1] : vector<16x32xf32> to vector<16xf32>
    %370 = vector.shape_cast %369 : vector<16xf32> to vector<16x1xf32>
    %371 = vector.broadcast %370 : vector<16x1xf32> to vector<16x32xf32>
    %372 = arith.subf %368, %371 : vector<16x32xf32>
    %373 = math.exp %372 : vector<16x32xf32>
    %cst_123 = arith.constant dense<0.000000e+00> : vector<16xf32>
    %374 = vector.multi_reduction <add>, %373, %cst_123 [1] : vector<16x32xf32> to vector<16xf32>
    %375 = vector.shape_cast %374 : vector<16xf32> to vector<16x1xf32>
    %376 = vector.broadcast %375 : vector<16x1xf32> to vector<16x32xf32>
    %377 = arith.divf %373, %376 : vector<16x32xf32>
    %378 = vector.extract_strided_slice %54 {offsets = [0, 0], sizes = [32, 8], strides = [1, 1]} : vector<32x32xf32> to vector<32x8xf32>
    %cst_124 = arith.constant dense<0.000000e+00> : vector<16x8xf32>
    %379 = tpu.matmul %377, %378, %cst_124 {dimension_numbers = #tpu.dot_dimension_numbers<[1], [0], [0], [1], [0, 0, 1, 1], [], []>} : vector<16x32xf32>, vector<32x8xf32>, vector<16x8xf32> -> vector<16x8xf32>
    %380 = vector.extract_strided_slice %364 {offsets = [0, 8], sizes = [16, 8], strides = [1, 1]} : vector<16x32xf32> to vector<16x8xf32>
    %381 = vector.extract_strided_slice %51 {offsets = [0, 8], sizes = [32, 8], strides = [1, 1]} : vector<32x32xf32> to vector<32x8xf32>
    %cst_125 = arith.constant dense<0.000000e+00> : vector<16x32xf32>
    %382 = tpu.matmul %380, %381, %cst_125 {dimension_numbers = #tpu.dot_dimension_numbers<[1], [1], [0], [0], [0, 0, 1, 0], [], []>} : vector<16x8xf32>, vector<32x8xf32>, vector<16x32xf32> -> vector<16x32xf32>
    %383 = arith.addf %382, %47 : vector<16x32xf32>
    %cst_126 = arith.constant dense<0xFF800000> : vector<16xf32>
    %384 = vector.multi_reduction <maximumf>, %383, %cst_126 [1] : vector<16x32xf32> to vector<16xf32>
    %385 = vector.shape_cast %384 : vector<16xf32> to vector<16x1xf32>
    %386 = vector.broadcast %385 : vector<16x1xf32> to vector<16x32xf32>
    %387 = arith.subf %383, %386 : vector<16x32xf32>
    %388 = math.exp %387 : vector<16x32xf32>
    %cst_127 = arith.constant dense<0.000000e+00> : vector<16xf32>
    %389 = vector.multi_reduction <add>, %388, %cst_127 [1] : vector<16x32xf32> to vector<16xf32>
    %390 = vector.shape_cast %389 : vector<16xf32> to vector<16x1xf32>
    %391 = vector.broadcast %390 : vector<16x1xf32> to vector<16x32xf32>
    %392 = arith.divf %388, %391 : vector<16x32xf32>
    %393 = vector.extract_strided_slice %54 {offsets = [0, 8], sizes = [32, 8], strides = [1, 1]} : vector<32x32xf32> to vector<32x8xf32>
    %cst_128 = arith.constant dense<0.000000e+00> : vector<16x8xf32>
    %394 = tpu.matmul %392, %393, %cst_128 {dimension_numbers = #tpu.dot_dimension_numbers<[1], [0], [0], [1], [0, 0, 1, 1], [], []>} : vector<16x32xf32>, vector<32x8xf32>, vector<16x8xf32> -> vector<16x8xf32>
    %395 = vector.extract_strided_slice %364 {offsets = [0, 16], sizes = [16, 8], strides = [1, 1]} : vector<16x32xf32> to vector<16x8xf32>
    %396 = vector.extract_strided_slice %51 {offsets = [0, 16], sizes = [32, 8], strides = [1, 1]} : vector<32x32xf32> to vector<32x8xf32>
    %cst_129 = arith.constant dense<0.000000e+00> : vector<16x32xf32>
    %397 = tpu.matmul %395, %396, %cst_129 {dimension_numbers = #tpu.dot_dimension_numbers<[1], [1], [0], [0], [0, 0, 1, 0], [], []>} : vector<16x8xf32>, vector<32x8xf32>, vector<16x32xf32> -> vector<16x32xf32>
    %398 = arith.addf %397, %47 : vector<16x32xf32>
    %cst_130 = arith.constant dense<0xFF800000> : vector<16xf32>
    %399 = vector.multi_reduction <maximumf>, %398, %cst_130 [1] : vector<16x32xf32> to vector<16xf32>
    %400 = vector.shape_cast %399 : vector<16xf32> to vector<16x1xf32>
    %401 = vector.broadcast %400 : vector<16x1xf32> to vector<16x32xf32>
    %402 = arith.subf %398, %401 : vector<16x32xf32>
    %403 = math.exp %402 : vector<16x32xf32>
    %cst_131 = arith.constant dense<0.000000e+00> : vector<16xf32>
    %404 = vector.multi_reduction <add>, %403, %cst_131 [1] : vector<16x32xf32> to vector<16xf32>
    %405 = vector.shape_cast %404 : vector<16xf32> to vector<16x1xf32>
    %406 = vector.broadcast %405 : vector<16x1xf32> to vector<16x32xf32>
    %407 = arith.divf %403, %406 : vector<16x32xf32>
    %408 = vector.extract_strided_slice %54 {offsets = [0, 16], sizes = [32, 8], strides = [1, 1]} : vector<32x32xf32> to vector<32x8xf32>
    %cst_132 = arith.constant dense<0.000000e+00> : vector<16x8xf32>
    %409 = tpu.matmul %407, %408, %cst_132 {dimension_numbers = #tpu.dot_dimension_numbers<[1], [0], [0], [1], [0, 0, 1, 1], [], []>} : vector<16x32xf32>, vector<32x8xf32>, vector<16x8xf32> -> vector<16x8xf32>
    %410 = vector.extract_strided_slice %364 {offsets = [0, 24], sizes = [16, 8], strides = [1, 1]} : vector<16x32xf32> to vector<16x8xf32>
    %411 = vector.extract_strided_slice %51 {offsets = [0, 24], sizes = [32, 8], strides = [1, 1]} : vector<32x32xf32> to vector<32x8xf32>
    %cst_133 = arith.constant dense<0.000000e+00> : vector<16x32xf32>
    %412 = tpu.matmul %410, %411, %cst_133 {dimension_numbers = #tpu.dot_dimension_numbers<[1], [1], [0], [0], [0, 0, 1, 0], [], []>} : vector<16x8xf32>, vector<32x8xf32>, vector<16x32xf32> -> vector<16x32xf32>
    %413 = arith.addf %412, %47 : vector<16x32xf32>
    %cst_134 = arith.constant dense<0xFF800000> : vector<16xf32>
    %414 = vector.multi_reduction <maximumf>, %413, %cst_134 [1] : vector<16x32xf32> to vector<16xf32>
    %415 = vector.shape_cast %414 : vector<16xf32> to vector<16x1xf32>
    %416 = vector.broadcast %415 : vector<16x1xf32> to vector<16x32xf32>
    %417 = arith.subf %413, %416 : vector<16x32xf32>
    %418 = math.exp %417 : vector<16x32xf32>
    %cst_135 = arith.constant dense<0.000000e+00> : vector<16xf32>
    %419 = vector.multi_reduction <add>, %418, %cst_135 [1] : vector<16x32xf32> to vector<16xf32>
    %420 = vector.shape_cast %419 : vector<16xf32> to vector<16x1xf32>
    %421 = vector.broadcast %420 : vector<16x1xf32> to vector<16x32xf32>
    %422 = arith.divf %418, %421 : vector<16x32xf32>
    %423 = vector.extract_strided_slice %54 {offsets = [0, 24], sizes = [32, 8], strides = [1, 1]} : vector<32x32xf32> to vector<32x8xf32>
    %cst_136 = arith.constant dense<0.000000e+00> : vector<16x8xf32>
    %424 = tpu.matmul %422, %423, %cst_136 {dimension_numbers = #tpu.dot_dimension_numbers<[1], [0], [0], [1], [0, 0, 1, 1], [], []>} : vector<16x32xf32>, vector<32x8xf32>, vector<16x8xf32> -> vector<16x8xf32>
    %425 = tpu.concatenate %379, %394, %409, %424 in 1 : vector<16x8xf32>, vector<16x8xf32>, vector<16x8xf32>, vector<16x8xf32> -> vector<16x32xf32>
    %cst_137 = arith.constant dense<0.000000e+00> : vector<16x32xf32>
    %426 = tpu.matmul %425, %10, %cst_137 {dimension_numbers = #tpu.dot_dimension_numbers<[1], [0], [0], [1], [0, 0, 1, 1], [], []>} : vector<16x32xf32>, vector<32x32xf32>, vector<16x32xf32> -> vector<16x32xf32>
    %427 = vector.broadcast %19 : vector<1x32xf32> to vector<16x32xf32>
    %428 = arith.addf %426, %427 : vector<16x32xf32>
    %429 = arith.addf %360, %428 : vector<16x32xf32>
    %cst_138 = arith.constant dense<0.000000e+00> : vector<16xf32>
    %430 = vector.multi_reduction <add>, %429, %cst_138 [1] : vector<16x32xf32> to vector<16xf32>
    %431 = vector.shape_cast %430 : vector<16xf32> to vector<16x1xf32>
    %cst_139 = arith.constant 3.200000e+01 : f32
    %432 = vector.broadcast %cst_139 : f32 to vector<16x1xf32>
    %433 = arith.divf %431, %432 : vector<16x1xf32>
    %434 = vector.broadcast %433 : vector<16x1xf32> to vector<16x32xf32>
    %435 = arith.subf %429, %434 : vector<16x32xf32>
    %436 = arith.mulf %435, %435 : vector<16x32xf32>
    %cst_140 = arith.constant dense<0.000000e+00> : vector<16xf32>
    %437 = vector.multi_reduction <add>, %436, %cst_140 [1] : vector<16x32xf32> to vector<16xf32>
    %438 = vector.shape_cast %437 : vector<16xf32> to vector<16x1xf32>
    %cst_141 = arith.constant 3.200000e+01 : f32
    %439 = vector.broadcast %cst_141 : f32 to vector<16x1xf32>
    %440 = arith.divf %438, %439 : vector<16x1xf32>
    %cst_142 = arith.constant 9.99999974E-6 : f32
    %441 = vector.broadcast %cst_142 : f32 to vector<16x1xf32>
    %442 = arith.addf %440, %441 : vector<16x1xf32>
    %443 = math.rsqrt %442 : vector<16x1xf32>
    %444 = vector.broadcast %443 : vector<16x1xf32> to vector<16x32xf32>
    %445 = arith.mulf %435, %444 : vector<16x32xf32>
    %446 = vector.broadcast %22 : vector<1x32xf32> to vector<16x32xf32>
    %447 = arith.mulf %445, %446 : vector<16x32xf32>
    %448 = vector.broadcast %23 : vector<1x32xf32> to vector<16x32xf32>
    %449 = arith.addf %447, %448 : vector<16x32xf32>
    %cst_143 = arith.constant dense<0.000000e+00> : vector<16x64xf32>
    %450 = tpu.matmul %449, %11, %cst_143 {dimension_numbers = #tpu.dot_dimension_numbers<[1], [0], [0], [1], [0, 0, 1, 1], [], []>} : vector<16x32xf32>, vector<32x64xf32>, vector<16x64xf32> -> vector<16x64xf32>
    %451 = vector.broadcast %26 : vector<1x64xf32> to vector<16x64xf32>
    %452 = arith.addf %450, %451 : vector<16x64xf32>
    %cst_144 = arith.constant 0.000000e+00 : f32
    %453 = vector.broadcast %cst_144 : f32 to vector<16x64xf32>
    %454 = arith.maximumf %452, %453 : vector<16x64xf32>
    %cst_145 = arith.constant dense<0.000000e+00> : vector<16x32xf32>
    %455 = tpu.matmul %454, %12, %cst_145 {dimension_numbers = #tpu.dot_dimension_numbers<[1], [1], [0], [0], [0, 0, 1, 0], [], []>} : vector<16x64xf32>, vector<32x64xf32>, vector<16x32xf32> -> vector<16x32xf32>
    %456 = vector.broadcast %27 : vector<1x32xf32> to vector<16x32xf32>
    %457 = arith.addf %455, %456 : vector<16x32xf32>
    %458 = arith.addf %449, %457 : vector<16x32xf32>
    %cst_146 = arith.constant dense<0.000000e+00> : vector<16xf32>
    %459 = vector.multi_reduction <add>, %458, %cst_146 [1] : vector<16x32xf32> to vector<16xf32>
    %460 = vector.shape_cast %459 : vector<16xf32> to vector<16x1xf32>
    %cst_147 = arith.constant 3.200000e+01 : f32
    %461 = vector.broadcast %cst_147 : f32 to vector<16x1xf32>
    %462 = arith.divf %460, %461 : vector<16x1xf32>
    %463 = vector.broadcast %462 : vector<16x1xf32> to vector<16x32xf32>
    %464 = arith.subf %458, %463 : vector<16x32xf32>
    %465 = arith.mulf %464, %464 : vector<16x32xf32>
    %cst_148 = arith.constant dense<0.000000e+00> : vector<16xf32>
    %466 = vector.multi_reduction <add>, %465, %cst_148 [1] : vector<16x32xf32> to vector<16xf32>
    %467 = vector.shape_cast %466 : vector<16xf32> to vector<16x1xf32>
    %cst_149 = arith.constant 3.200000e+01 : f32
    %468 = vector.broadcast %cst_149 : f32 to vector<16x1xf32>
    %469 = arith.divf %467, %468 : vector<16x1xf32>
    %cst_150 = arith.constant 9.99999974E-6 : f32
    %470 = vector.broadcast %cst_150 : f32 to vector<16x1xf32>
    %471 = arith.addf %469, %470 : vector<16x1xf32>
    %472 = math.rsqrt %471 : vector<16x1xf32>
    %473 = vector.broadcast %472 : vector<16x1xf32> to vector<16x32xf32>
    %474 = arith.mulf %464, %473 : vector<16x32xf32>
    %475 = vector.broadcast %24 : vector<1x32xf32> to vector<16x32xf32>
    %476 = arith.mulf %474, %475 : vector<16x32xf32>
    %477 = vector.broadcast %25 : vector<1x32xf32> to vector<16x32xf32>
    %478 = arith.addf %476, %477 : vector<16x32xf32>
    %c0_151 = arith.constant 0 : index
    %c0_152 = arith.constant 0 : index
    %479 = vector.load %arg6[%c0_151, %c0_152] : memref<16x32xf32, #tpu.memory_space<vmem>>, vector<16x32xf32>
    tpu.vector_store %arg6[%c0_151, %c0_152], %478 {strides = array<i32>} : memref<16x32xf32, #tpu.memory_space<vmem>>, vector<16x32xf32>,
    return
  }
}

</mosaic_0001>

<llo_original>
// kernel: tpu_custom_call.1
$region0: #{tpu_custom_call.1}
  #allocation0 [shape = 'u32[]', space=smem, size = 0x4, offset = 0x4, fixed_abs, tag = 'smem constant byte address 0x4 - core index']
  #allocation1 [shape = 'u32[72,128]{1,0:T(1,128)}', space=vmem, size = 0x9000, scoped, tag = 'internal scratch']
  %s0 = inlined_call_operand.hbm [shape: f32[16,32], index: 0, kind: input, shape index: {}]
  %s1 = inlined_call_operand.hbm [shape: f32[32,32], index: 1, kind: input, shape index: {}]
  %s2 = inlined_call_operand.hbm [shape: f32[16,32], index: 2, kind: input, shape index: {}]
  %s3 = inlined_call_operand.hbm [shape: f32[32,32], index: 3, kind: input, shape index: {}]
  %s4 = inlined_call_operand.hbm [shape: f32[32,384], index: 4, kind: input, shape index: {}]
  %s5 = inlined_call_operand.hbm [shape: f32[15,64], index: 5, kind: input, shape index: {}]
  %s6 = inlined_call_operand.hbm [shape: f32[16,32], index: 6, kind: output, shape index: {}]
  %s7 = sld [smem:[#allocation0]]
  $region58: #{tpu_custom_call.1} parent=0
    _
  %s9 = ssub.s32 1, %s7
  %s10 = scalar_select 0, %s9, %s7
  $region1: #{tpu_custom_call.1} parent=0
    #allocation2 [shape = 'u8[8192]{0}', space=vmem, size = 0x2000, scoped, tag = 'input window, operand 0, single buffered']
    #allocation3 [shape = 's32[1]{0}', space=sflag, size = 0x4, scoped, tag = 'scoped memory for tpu_custom_call.1']
    #allocation4 [shape = 's32[1]{0}', space=sflag, size = 0x4, scoped, tag = 'scoped memory for tpu_custom_call.1']
    #allocation5 [shape = 'u8[16384]{0}', space=vmem, size = 0x4000, scoped, tag = 'input window, operand 1, single buffered']
    #allocation6 [shape = 's32[1]{0}', space=sflag, size = 0x4, scoped, tag = 'scoped memory for tpu_custom_call.1']
    #allocation7 [shape = 'u8[8192]{0}', space=vmem, size = 0x2000, scoped, tag = 'input window, operand 2, single buffered']
    #allocation8 [shape = 'u8[16384]{0}', space=vmem, size = 0x4000, scoped, tag = 'input window, operand 3, single buffered']
    #allocation9 [shape = 's32[1]{0}', space=sflag, size = 0x4, scoped, tag = 'scoped memory for tpu_custom_call.1']
    #allocation10 [shape = 'u8[49152]{0}', space=vmem, size = 0xc000, scoped, tag = 'input window, operand 4, single buffered']
    #allocation11 [shape = 'u8[8192]{0}', space=vmem, size = 0x2000, scoped, tag = 'input window, operand 5, single buffered']
    #allocation12 [shape = 's32[1]{0}', space=sflag, size = 0x4, scoped, tag = 'scoped memory for tpu_custom_call.1']
    #allocation13 [shape = 'u8[8192]{0}', space=vmem, size = 0x2000, scoped, tag = 'output window, operand 0, single buffered']
    %11 = vsyncpa [#allocation3], 0
    %12 = vsyncpa [#allocation6], 0
    %13 = vsyncpa [#allocation9], 0
    %14 = vsyncpa [#allocation12], 0
    %15 = vsyncpa [#allocation4], 0
    // Predicated region
    $region2: #{tpu_custom_call.1} parent=1 // pred_check
      _
    $region3: #{tpu_custom_call.1} parent=1 // pred_check_branch
      %17 = sbr.rel (0) target = $region5
    $region4: #{tpu_custom_call.1} parent=1 // pred_region
      %19 = vsyncadd [#allocation3], 0
      %s20 = sshll.u32 %s0, 4
      %s21 = int_to_ptr.hbm [resolvable:$true] %s20
      %s22 = sshll.u32 [#allocation2], 4
      %s23 = int_to_ptr.vmem [resolvable:$true] %s22
      %28 = dma.hbm_to_vmem [thread:$0]  %s21, 256, %s23, [#allocation3], 128, 128, 8
    $region5: #{tpu_custom_call.1} parent=1 // pred_fallthru
      _
    // Predicated region
    $region6: #{tpu_custom_call.1} parent=1 // pred_check
      _
    $region7: #{tpu_custom_call.1} parent=1 // pred_check_branch
      %30 = sbr.rel (0) target = $region9
    $region8: #{tpu_custom_call.1} parent=1 // pred_region
      %32 = vsyncadd [#allocation6], 0
      %s33 = sshll.u32 %s1, 4
      %s34 = int_to_ptr.hbm [resolvable:$true] %s33
      %s35 = sshll.u32 [#allocation5], 4
      %s36 = int_to_ptr.vmem [resolvable:$true] %s35
      %41 = dma.hbm_to_vmem [thread:$0]  %s34, 512, %s36, [#allocation6], 128, 128, 8
    $region9: #{tpu_custom_call.1} parent=1 // pred_fallthru
      _
    // Predicated region
    $region10: #{tpu_custom_call.1} parent=1 // pred_check
      _
    $region11: #{tpu_custom_call.1} parent=1 // pred_check_branch
      %43 = sbr.rel (0) target = $region13
    $region12: #{tpu_custom_call.1} parent=1 // pred_region
      %45 = vsyncadd [#allocation6], 0
      %s46 = sshll.u32 %s2, 4
      %s47 = int_to_ptr.hbm [resolvable:$true] %s46
      %s48 = sshll.u32 [#allocation7], 4
      %s49 = int_to_ptr.vmem [resolvable:$true] %s48
      %54 = dma.hbm_to_vmem [thread:$0]  %s47, 256, %s49, [#allocation6], 128, 128, 8
    $region13: #{tpu_custom_call.1} parent=1 // pred_fallthru
      _
    // Predicated region
    $region14: #{tpu_custom_call.1} parent=1 // pred_check
      _
    $region15: #{tpu_custom_call.1} parent=1 // pred_check_branch
      %56 = sbr.rel (0) target = $region17
    $region16: #{tpu_custom_call.1} parent=1 // pred_region
      %58 = vsyncadd [#allocation9], 0
      %s59 = sshll.u32 %s3, 4
      %s60 = int_to_ptr.hbm [resolvable:$true] %s59
      %s61 = sshll.u32 [#allocation8], 4
      %s62 = int_to_ptr.vmem [resolvable:$true] %s61
      %67 = dma.hbm_to_vmem [thread:$0]  %s60, 512, %s62, [#allocation9], 128, 128, 8
    $region17: #{tpu_custom_call.1} parent=1 // pred_fallthru
      _
    // Predicated region
    $region18: #{tpu_custom_call.1} parent=1 // pred_check
      _
    $region19: #{tpu_custom_call.1} parent=1 // pred_check_branch
      %69 = sbr.rel (0) target = $region21
    $region20: #{tpu_custom_call.1} parent=1 // pred_region
      %71 = vsyncadd [#allocation9], 0
      %s72 = sshll.u32 %s4, 4
      %s73 = int_to_ptr.hbm [resolvable:$true] %s72
      %s74 = sshll.u32 [#allocation10], 4
      %s75 = int_to_ptr.vmem [resolvable:$true] %s74
      %80 = dma.hbm_to_vmem [thread:$0]  %s73, 1536, %s75, [#allocation9], 384, 384, 24
    $region21: #{tpu_custom_call.1} parent=1 // pred_fallthru
      _
    // Predicated region
    $region22: #{tpu_custom_call.1} parent=1 // pred_check
      _
    $region23: #{tpu_custom_call.1} parent=1 // pred_check_branch
      %82 = sbr.rel (0) target = $region25
    $region24: #{tpu_custom_call.1} parent=1 // pred_region
      %84 = vsyncadd [#allocation12], 0
      %s85 = sshll.u32 %s5, 4
      %s86 = int_to_ptr.hbm [resolvable:$true] %s85
      %s87 = sshll.u32 [#allocation11], 4
      %s88 = int_to_ptr.vmem [resolvable:$true] %s87
      %93 = dma.hbm_to_vmem [thread:$0]  %s86, 256, %s88, [#allocation12], 128, 128, 8
    $region25: #{tpu_custom_call.1} parent=1 // pred_fallthru
      _
    // Predicated region
    $region26: #{tpu_custom_call.1} parent=1 // pred_check
      _
    $region27: #{tpu_custom_call.1} parent=1 // pred_check_branch
      %95 = sbr.rel (0) target = $region29
    $region28: #{tpu_custom_call.1} parent=1 // pred_region
      %97 = dma.done [#allocation3], 256
    $region29: #{tpu_custom_call.1} parent=1 // pred_fallthru
      _
    // Predicated region
    $region30: #{tpu_custom_call.1} parent=1 // pred_check
      _
    $region31: #{tpu_custom_call.1} parent=1 // pred_check_branch
      %99 = sbr.rel (0) target = $region33
    $region32: #{tpu_custom_call.1} parent=1 // pred_region
      %101 = dma.done [#allocation6], 512
    $region33: #{tpu_custom_call.1} parent=1 // pred_fallthru
      _
    // Predicated region
    $region34: #{tpu_custom_call.1} parent=1 // pred_check
      _
    $region35: #{tpu_custom_call.1} parent=1 // pred_check_branch
      %103 = sbr.rel (0) target = $region37
    $region36: #{tpu_custom_call.1} parent=1 // pred_region
      %105 = dma.done [#allocation6], 256
    $region37: #{tpu_custom_call.1} parent=1 // pred_fallthru
      _
    // Predicated region
    $region38: #{tpu_custom_call.1} parent=1 // pred_check
      _
    $region39: #{tpu_custom_call.1} parent=1 // pred_check_branch
      %107 = sbr.rel (0) target = $region41
    $region40: #{tpu_custom_call.1} parent=1 // pred_region
      %109 = dma.done [#allocation9], 512
    $region41: #{tpu_custom_call.1} parent=1 // pred_fallthru
      _
    // Predicated region
    $region42: #{tpu_custom_call.1} parent=1 // pred_check
      _
    $region43: #{tpu_custom_call.1} parent=1 // pred_check_branch
      %111 = sbr.rel (0) target = $region45
    $region44: #{tpu_custom_call.1} parent=1 // pred_region
      %113 = dma.done [#allocation9], 1536
    $region45: #{tpu_custom_call.1} parent=1 // pred_fallthru
      _
    // Predicated region
    $region46: #{tpu_custom_call.1} parent=1 // pred_check
      _
    $region47: #{tpu_custom_call.1} parent=1 // pred_check_branch
      %115 = sbr.rel (0) target = $region49
    $region48: #{tpu_custom_call.1} parent=1 // pred_region
      %117 = dma.done [#allocation12], 256
    $region49: #{tpu_custom_call.1} parent=1 // pred_fallthru
      _
    %v118 = vld [vmem:[#allocation2] sm:$0xff]
    %v119 = vld [vmem:[#allocation2 + $0x8] sm:$0xff]
    %v120 = vld [vmem:[#allocation5] sm:$0xff]
    %v121 = vld [vmem:[#allocation5 + $0x8] sm:$0xff]
    %v122 = vld [vmem:[#allocation5 + $0x10] sm:$0xff]
    %v123 = vld [vmem:[#allocation5 + $0x18] sm:$0xff]
    %v124 = vld [vmem:[#allocation7] sm:$0xff]
    %v125 = vld [vmem:[#allocation7 + $0x8] sm:$0xff]
    %v126 = vld [vmem:[#allocation8] sm:$0xff]
    %v127 = vld [vmem:[#allocation8 + $0x8] sm:$0xff]
    %v128 = vld [vmem:[#allocation8 + $0x10] sm:$0xff]
    %v129 = vld [vmem:[#allocation8 + $0x18] sm:$0xff]
    %v130 = vld [vmem:[#allocation10] sm:$0xff]
    %v131 = vld [vmem:[#allocation10 + $0x18] sm:$0xff]
    %v132 = vld [vmem:[#allocation10 + $0x30] sm:$0xff]
    %v133 = vld [vmem:[#allocation10 + $0x48] sm:$0xff]
    %v134 = vld [vmem:[#allocation10 + $0x8] sm:$0xff]
    %v135 = vld [vmem:[#allocation10 + $0x20] sm:$0xff]
    %v136 = vld [vmem:[#allocation10 + $0x38] sm:$0xff]
    %v137 = vld [vmem:[#allocation10 + $0x50] sm:$0xff]
    %v138 = vld [vmem:[#allocation10 + $0x10] sm:$0xff]
    %v139 = vld [vmem:[#allocation10 + $0x28] sm:$0xff]
    %v140 = vld [vmem:[#allocation10 + $0x40] sm:$0xff]
    %v141 = vld [vmem:[#allocation10 + $0x58] sm:$0xff]
    %v142 = vld [vmem:[#allocation11] sm:$0x1]
    %v143 = vld [vmem:[#allocation11 + $0x1] sm:$0x1]
    %v144 = vld [vmem:[#allocation11 + $0x2] sm:$0x1]
    %v145 = vld [vmem:[#allocation11 + $0x3] sm:$0x1]
    %v146 = vld [vmem:[#allocation11 + $0x4] sm:$0x1]
    %v147 = vld [vmem:[#allocation11 + $0x5] sm:$0x1]
    %v148 = vld [vmem:[#allocation11 + $0x6] sm:$0x1]
    %v149 = vld [vmem:[#allocation11 + $0x7] sm:$0x1]
    %v150 = vld [vmem:[#allocation11 + $0x8] sm:$0x1]
    %v151 = vld [vmem:[#allocation11 + $0x9] sm:$0x1]
    %v152 = vld [vmem:[#allocation11 + $0xa] sm:$0x1]
    %v153 = vld [vmem:[#allocation11 + $0xb] sm:$0x1]
    %v154 = vld [vmem:[#allocation11 + $0xc] sm:$0x1]
    %v155 = vld [vmem:[#allocation11 + $0xd] sm:$0x1]
    %v156 = vld [vmem:[#allocation11 + $0xe] sm:$0x1]
    %v157 = vlaneseq
    %v158 = vshrl.u32 %v157, 7
    %v159 = vadd.s32 %v158, 8
    %v160 = vand.u32 %v158, 1
    %v161 = vand.u32 %v159, 1
    %v162 = vlaneseq
    %v163 = vand.u32 %v162, 127
    %v164 = vand.u32 %v163, 1
    %vm165 = vcmp.eq.s32.totalorder %v160, %v164
    %vm166 = vcmp.eq.s32.totalorder %v161, %v164
    %v167 = vsel %vm165, 0.0, -1e+30
    %v168 = vsel %vm166, 0.0, -1e+30
    %v169 = vadd.f32 %v120, %v126
    %v170 = vadd.f32 %v121, %v127
    %v171 = vadd.f32 %v122, %v128
    %v172 = vadd.f32 %v123, %v129
    %v173 = vperm.slane %v146, 0
    %178 = vrot.lane.b32.xlu0 %v134, 96
    %v179 = vpop.permute.xlu0 %178
    %180 = vrot.lane.b32.xlu0 %v135, 96
    %v181 = vpop.permute.xlu0 %180
    %182 = vrot.lane.b32.xlu0 %v136, 96
    %v183 = vpop.permute.xlu0 %182
    %184 = vrot.lane.b32.xlu0 %v137, 96
    %v185 = vpop.permute.xlu0 %184
    %vm190 = vcmask 261120
    %v192 = vsel %vm190, %v169, 0
    %v195 = vsel %vm190, %v170, 0
    %v198 = vsel %vm190, %v171, 0
    %v201 = vsel %vm190, %v172, 0
    %203 = vmatpush.msra.mxu0 0.0
    %204 = vmatpush.msra.mxu0 0.0
    %205 = vmatpush.msra.mxu0 0.0
    %206 = vmatpush.msra.mxu0 0.0
    %207 = vmatpush.msra.mxu0 0.0
    %208 = vmatpush.msra.mxu0 0.0
    %209 = vmatpush.msra.mxu0 0.0
    %210 = vmatpush.msra.mxu0 0.0
    %211 = vmatpush.msra.mxu0 0.0
    %212 = vmatpush.msra.mxu0 0.0
    %213 = vmatpush.msra.mxu0 0.0
    %214 = vmatpush.msra.mxu0 0.0
    %215 = vmatpush.msra.mxu0 %v185
    %216 = vmatpush.msra.mxu0 %v183
    %217 = vmatpush.msra.mxu0 %v181
    %218 = vmatpush.msra.mxu0 %v179
    %219 = vmatmul.f32.gmra.mxu0 %v192
    %v220 = vpop.f32.mrf.mxu0
    %v221 = vadd.f32 %v173, %v220
    %222 = vmatmul.f32.gmra.mxu0 %v195
    %v223 = vpop.f32.mrf.mxu0
    %v224 = vadd.f32 %v173, %v223
    %225 = vmatmul.f32.gmra.mxu0 %v198
    %v226 = vpop.f32.mrf.mxu0
    %v227 = vadd.f32 %v173, %v226
    %228 = vmatmul.f32.gmra.mxu0 %v201
    %v229 = vpop.f32.mrf.mxu0
    %v230 = vadd.f32 %v173, %v229
    %231 = vdwg.mxu0
    %v232 = vperm.slane %v147, 0
    %233 = vrot.lane.b32.xlu0 %v134, 64
    %v234 = vpop.permute.xlu0 %233
    %235 = vrot.lane.b32.xlu0 %v135, 64
    %v236 = vpop.permute.xlu0 %235
    %237 = vrot.lane.b32.xlu0 %v136, 64
    %v238 = vpop.permute.xlu0 %237
    %239 = vrot.lane.b32.xlu0 %v137, 64
    %v240 = vpop.permute.xlu0 %239
    %v246 = vsel %vm190, %v120, 0
    %v249 = vsel %vm190, %v121, 0
    %v252 = vsel %vm190, %v122, 0
    %v255 = vsel %vm190, %v123, 0
    %257 = vmatpush.msra.mxu0 0.0
    %258 = vmatpush.msra.mxu0 0.0
    %259 = vmatpush.msra.mxu0 0.0
    %260 = vmatpush.msra.mxu0 0.0
    %261 = vmatpush.msra.mxu0 0.0
    %262 = vmatpush.msra.mxu0 0.0
    %263 = vmatpush.msra.mxu0 0.0
    %264 = vmatpush.msra.mxu0 0.0
    %265 = vmatpush.msra.mxu0 0.0
    %266 = vmatpush.msra.mxu0 0.0
    %267 = vmatpush.msra.mxu0 0.0
    %268 = vmatpush.msra.mxu0 0.0
    %269 = vmatpush.msra.mxu0 %v240
    %270 = vmatpush.msra.mxu0 %v238
    %271 = vmatpush.msra.mxu0 %v236
    %272 = vmatpush.msra.mxu0 %v234
    %273 = vmatmul.f32.gmra.mxu0 %v246
    %v274 = vpop.f32.mrf.mxu0
    %v275 = vadd.f32 %v232, %v274
    %276 = vmatmul.f32.gmra.mxu0 %v249
    %v277 = vpop.f32.mrf.mxu0
    %v278 = vadd.f32 %v232, %v277
    %279 = vmatmul.f32.gmra.mxu0 %v252
    %v280 = vpop.f32.mrf.mxu0
    %v281 = vadd.f32 %v232, %v280
    %282 = vmatmul.f32.gmra.mxu0 %v255
    %v283 = vpop.f32.mrf.mxu0
    %v284 = vadd.f32 %v232, %v283
    %285 = vdwg.mxu0
    %v286 = vadd.f32 %v118, %v124
    %v287 = vadd.f32 %v119, %v125
    %v288 = vperm.slane %v142, 0
    %v290 = vsel %vm190, %v286, 0
    %v293 = vsel %vm190, %v287, 0
    %295 = vmatpush.msra.mxu0 0.0
    %296 = vmatpush.msra.mxu0 0.0
    %297 = vmatpush.msra.mxu0 0.0
    %298 = vmatpush.msra.mxu0 0.0
    %299 = vmatpush.msra.mxu0 0.0
    %300 = vmatpush.msra.mxu0 0.0
    %301 = vmatpush.msra.mxu0 0.0
    %302 = vmatpush.msra.mxu0 0.0
    %303 = vmatpush.msra.mxu0 0.0
    %304 = vmatpush.msra.mxu0 0.0
    %305 = vmatpush.msra.mxu0 0.0
    %306 = vmatpush.msra.mxu0 0.0
    %307 = vmatpush.msra.mxu0 %v133
    %308 = vmatpush.msra.mxu0 %v132
    %309 = vmatpush.msra.mxu0 %v131
    %310 = vmatpush.msra.mxu0 %v130
    %311 = vmatmul.f32.gmra.mxu0 %v290
    %v312 = vpop.f32.mrf.mxu0
    %v313 = vadd.f32 %v288, %v312
    %314 = vmatmul.f32.gmra.mxu0 %v293
    %v315 = vpop.f32.mrf.mxu0
    %v316 = vadd.f32 %v288, %v315
    %317 = vdwg.mxu0
    %v318 = vperm.slane %v143, 0
    %323 = vrot.lane.b32.xlu0 %v130, 64
    %v324 = vpop.permute.xlu0 %323
    %325 = vrot.lane.b32.xlu0 %v131, 64
    %v326 = vpop.permute.xlu0 %325
    %327 = vrot.lane.b32.xlu0 %v132, 64
    %v328 = vpop.permute.xlu0 %327
    %329 = vrot.lane.b32.xlu0 %v133, 64
    %v330 = vpop.permute.xlu0 %329
    %v336 = vsel %vm190, %v118, 0
    %v339 = vsel %vm190, %v119, 0
    %341 = vmatpush.msra.mxu0 0.0
    %342 = vmatpush.msra.mxu0 0.0
    %343 = vmatpush.msra.mxu0 0.0
    %344 = vmatpush.msra.mxu0 0.0
    %345 = vmatpush.msra.mxu0 0.0
    %346 = vmatpush.msra.mxu0 0.0
    %347 = vmatpush.msra.mxu0 0.0
    %348 = vmatpush.msra.mxu0 0.0
    %349 = vmatpush.msra.mxu0 0.0
    %350 = vmatpush.msra.mxu0 0.0
    %351 = vmatpush.msra.mxu0 0.0
    %352 = vmatpush.msra.mxu0 0.0
    %353 = vmatpush.msra.mxu0 %v330
    %354 = vmatpush.msra.mxu0 %v328
    %355 = vmatpush.msra.mxu0 %v326
    %356 = vmatpush.msra.mxu0 %v324
    %357 = vmatmul.f32.gmra.mxu0 %v336
    %v358 = vpop.f32.mrf.mxu0
    %v359 = vadd.f32 %v318, %v358
    %360 = vmatmul.f32.gmra.mxu0 %v339
    %v361 = vpop.f32.mrf.mxu0
    %v362 = vadd.f32 %v318, %v361
    %363 = vdwg.mxu0
    %366 = vrot.lane.b32.xlu0 %v313, 96
    %v367 = vpop.permute.xlu0 %366
    %368 = vrot.lane.b32.xlu0 %v316, 96
    %v369 = vpop.permute.xlu0 %368
    %vm370 = vcmask 64512
    %v371 = vsel %vm370, %v313, 0
    %v373 = vsel %vm370, %v316, 0
    %v375 = vsel %vm370, %v367, 0
    %v377 = vsel %vm370, %v369, 0
    %379 = vmatpush.xpose.msra.mxu0 0.0
    %380 = vmatpush.xpose.msra.mxu0 0.0
    %381 = vmatpush.xpose.msra.mxu0 0.0
    %382 = vmatpush.xpose.msra.mxu0 0.0
    %383 = vmatpush.xpose.msra.mxu0 0.0
    %384 = vmatpush.xpose.msra.mxu0 0.0
    %385 = vmatpush.xpose.msra.mxu0 0.0
    %386 = vmatpush.xpose.msra.mxu0 0.0
    %387 = vmatpush.xpose.msra.mxu0 0.0
    %388 = vmatpush.xpose.msra.mxu0 0.0
    %389 = vmatpush.xpose.msra.mxu0 0.0
    %390 = vmatpush.xpose.msra.mxu0 0.0
    %391 = vmatpush.xpose.msra.mxu0 0.0
    %392 = vmatpush.xpose.msra.mxu0 0.0
    %393 = vmatpush.xpose.msra.mxu0 %v377
    %394 = vmatpush.xpose.msra.mxu0 %v375
    %395 = vmatmul.f32.gmra.mxu0 %v371
    %v396 = vpop.f32.mrf.mxu0
    %v397 = vadd.f32 %v167, %v396
    %398 = vmatmul.f32.gmra.mxu0 %v373
    %v399 = vpop.f32.mrf.mxu0
    %v400 = vadd.f32 %v168, %v399
    %401 = vdwg.mxu0
    %vm402 = vcmask 130048
    %v403 = vsel %vm402, %v397, -inf
    %404 = vmax.xlane.f32.xlu0 %v403
    %v405 = vpop.xlane.xlu0 %404
    %v406 = vsel %vm402, %v400, -inf
    %407 = vmax.xlane.f32.xlu0 %v406
    %v408 = vpop.xlane.xlu0 %407
    %v409 = vsub.f32 %v397, %v405
    %v410 = vsub.f32 %v400, %v408
    %v411 = vmul.f32 %v409, 1.442695
    %v412 = vpow.pop %v411
    %v413 = vmul.f32 %v410, 1.442695
    %v414 = vpow.pop %v413
    %v415 = vsel %vm402, %v412, 0.0
    %416 = vadd.xlane.f32.xlu0 %v415
    %v417 = vpop.xlane.xlu0 %416
    %v418 = vsel %vm402, %v414, 0.0
    %419 = vadd.xlane.f32.xlu0 %v418
    %v420 = vpop.xlane.xlu0 %419
    %v421 = vrcp.pop %v417
    %v422 = vmul.f32 %v417, %v421
    %v423 = vsub.f32 1.0, %v422
    %v424 = vmul.f32 %v421, %v423
    %v425 = vadd.f32 %v421, %v424
    %vm426 = vweird.f32 %v417
    %vm427 = vweird.f32 %v421
    %vm428 = vmor %vm426, %vm427
    %v429 = vsel %vm428, %v421, %v425
    %v430 = vand.u32 2147483647, %v417
    %vm431 = vcmp.eq.f32.partialorder %v430, 8.507059e+37
    %v432 = vand.u32 %v417, 2147483648
    %v433 = vor.u32 1.1754944e-38, %v432
    %v434 = vsel %vm431, %v433, %v429
    %v435 = vmul.f32 %v412, %v434
    %v436 = vrcp.pop %v420
    %v437 = vmul.f32 %v420, %v436
    %v438 = vsub.f32 1.0, %v437
    %v439 = vmul.f32 %v436, %v438
    %v440 = vadd.f32 %v436, %v439
    %vm441 = vweird.f32 %v420
    %vm442 = vweird.f32 %v436
    %vm443 = vmor %vm441, %vm442
    %v444 = vsel %vm443, %v436, %v440
    %v445 = vand.u32 2147483647, %v420
    %vm446 = vcmp.eq.f32.partialorder %v445, 8.507059e+37
    %v447 = vand.u32 %v420, 2147483648
    %v448 = vor.u32 1.1754944e-38, %v447
    %v449 = vsel %vm446, %v448, %v444
    %v450 = vmul.f32 %v414, %v449
    %v452 = vsel %vm402, %v435, 0
    %v455 = vsel %vm402, %v450, 0
    %457 = vmatpush.msra.mxu0 0.0
    %458 = vmatpush.msra.mxu0 0.0
    %459 = vmatpush.msra.mxu0 0.0
    %460 = vmatpush.msra.mxu0 0.0
    %461 = vmatpush.msra.mxu0 0.0
    %462 = vmatpush.msra.mxu0 0.0
    %463 = vmatpush.msra.mxu0 0.0
    %464 = vmatpush.msra.mxu0 0.0
    %465 = vmatpush.msra.mxu0 0.0
    %466 = vmatpush.msra.mxu0 0.0
    %467 = vmatpush.msra.mxu0 0.0
    %468 = vmatpush.msra.mxu0 0.0
    %469 = vmatpush.msra.mxu0 0.0
    %470 = vmatpush.msra.mxu0 0.0
    %471 = vmatpush.msra.mxu0 %v362
    %472 = vmatpush.msra.mxu0 %v359
    %473 = vmatmul.f32.gmra.mxu0 %v452
    %v474 = vpop.f32.mrf.mxu0
    %v475 = vadd.f32 0.0, %v474
    %476 = vmatmul.f32.gmra.mxu0 %v455
    %v477 = vpop.f32.mrf.mxu0
    %v478 = vadd.f32 0.0, %v477
    %479 = vdwg.mxu0
    %480 = vrot.lane.b32.xlu0 %v313, 120
    %v481 = vpop.permute.xlu0 %480
    %482 = vrot.lane.b32.xlu0 %v316, 120
    %v483 = vpop.permute.xlu0 %482
    %484 = vrot.lane.b32.xlu0 %v313, 88
    %v485 = vpop.permute.xlu0 %484
    %486 = vrot.lane.b32.xlu0 %v316, 88
    %v487 = vpop.permute.xlu0 %486
    %v488 = vsel %vm370, %v481, 0
    %v490 = vsel %vm370, %v483, 0
    %v492 = vsel %vm370, %v485, 0
    %v494 = vsel %vm370, %v487, 0
    %496 = vmatpush.xpose.msra.mxu0 0.0
    %497 = vmatpush.xpose.msra.mxu0 0.0
    %498 = vmatpush.xpose.msra.mxu0 0.0
    %499 = vmatpush.xpose.msra.mxu0 0.0
    %500 = vmatpush.xpose.msra.mxu0 0.0
    %501 = vmatpush.xpose.msra.mxu0 0.0
    %502 = vmatpush.xpose.msra.mxu0 0.0
    %503 = vmatpush.xpose.msra.mxu0 0.0
    %504 = vmatpush.xpose.msra.mxu0 0.0
    %505 = vmatpush.xpose.msra.mxu0 0.0
    %506 = vmatpush.xpose.msra.mxu0 0.0
    %507 = vmatpush.xpose.msra.mxu0 0.0
    %508 = vmatpush.xpose.msra.mxu0 0.0
    %509 = vmatpush.xpose.msra.mxu0 0.0
    %510 = vmatpush.xpose.msra.mxu0 %v494
    %511 = vmatpush.xpose.msra.mxu0 %v492
    %512 = vmatmul.f32.gmra.mxu0 %v488
    %v513 = vpop.f32.mrf.mxu0
    %v514 = vadd.f32 %v167, %v513
    %515 = vmatmul.f32.gmra.mxu0 %v490
    %v516 = vpop.f32.mrf.mxu0
    %v517 = vadd.f32 %v168, %v516
    %518 = vdwg.mxu0
    %v519 = vsel %vm402, %v514, -inf
    %520 = vmax.xlane.f32.xlu0 %v519
    %v521 = vpop.xlane.xlu0 %520
    %v522 = vsel %vm402, %v517, -inf
    %523 = vmax.xlane.f32.xlu0 %v522
    %v524 = vpop.xlane.xlu0 %523
    %v525 = vsub.f32 %v514, %v521
    %v526 = vsub.f32 %v517, %v524
    %v527 = vmul.f32 %v525, 1.442695
    %v528 = vpow.pop %v527
    %v529 = vmul.f32 %v526, 1.442695
    %v530 = vpow.pop %v529
    %v531 = vsel %vm402, %v528, 0.0
    %532 = vadd.xlane.f32.xlu0 %v531
    %v533 = vpop.xlane.xlu0 %532
    %v534 = vsel %vm402, %v530, 0.0
    %535 = vadd.xlane.f32.xlu0 %v534
    %v536 = vpop.xlane.xlu0 %535
    %v537 = vrcp.pop %v533
    %v538 = vmul.f32 %v533, %v537
    %v539 = vsub.f32 1.0, %v538
    %v540 = vmul.f32 %v537, %v539
    %v541 = vadd.f32 %v537, %v540
    %vm542 = vweird.f32 %v533
    %vm543 = vweird.f32 %v537
    %vm544 = vmor %vm542, %vm543
    %v545 = vsel %vm544, %v537, %v541
    %v546 = vand.u32 2147483647, %v533
    %vm547 = vcmp.eq.f32.partialorder %v546, 8.507059e+37
    %v548 = vand.u32 %v533, 2147483648
    %v549 = vor.u32 1.1754944e-38, %v548
    %v550 = vsel %vm547, %v549, %v545
    %v551 = vmul.f32 %v528, %v550
    %v552 = vrcp.pop %v536
    %v553 = vmul.f32 %v536, %v552
    %v554 = vsub.f32 1.0, %v553
    %v555 = vmul.f32 %v552, %v554
    %v556 = vadd.f32 %v552, %v555
    %vm557 = vweird.f32 %v536
    %vm558 = vweird.f32 %v552
    %vm559 = vmor %vm557, %vm558
    %v560 = vsel %vm559, %v552, %v556
    %v561 = vand.u32 2147483647, %v536
    %vm562 = vcmp.eq.f32.partialorder %v561, 8.507059e+37
    %v563 = vand.u32 %v536, 2147483648
    %v564 = vor.u32 1.1754944e-38, %v563
    %v565 = vsel %vm562, %v564, %v560
    %v566 = vmul.f32 %v530, %v565
    %569 = vrot.lane.b32.xlu0 %v359, 120
    %v570 = vpop.permute.xlu0 %569
    %571 = vrot.lane.b32.xlu0 %v362, 120
    %v572 = vpop.permute.xlu0 %571
    %v576 = vsel %vm402, %v551, 0
    %v579 = vsel %vm402, %v566, 0
    %581 = vmatpush.msra.mxu0 0.0
    %582 = vmatpush.msra.mxu0 0.0
    %583 = vmatpush.msra.mxu0 0.0
    %584 = vmatpush.msra.mxu0 0.0
    %585 = vmatpush.msra.mxu0 0.0
    %586 = vmatpush.msra.mxu0 0.0
    %587 = vmatpush.msra.mxu0 0.0
    %588 = vmatpush.msra.mxu0 0.0
    %589 = vmatpush.msra.mxu0 0.0
    %590 = vmatpush.msra.mxu0 0.0
    %591 = vmatpush.msra.mxu0 0.0
    %592 = vmatpush.msra.mxu0 0.0
    %593 = vmatpush.msra.mxu0 0.0
    %594 = vmatpush.msra.mxu0 0.0
    %595 = vmatpush.msra.mxu0 %v572
    %596 = vmatpush.msra.mxu0 %v570
    %597 = vmatmul.f32.gmra.mxu0 %v576
    %v598 = vpop.f32.mrf.mxu0
    %v599 = vadd.f32 0.0, %v598
    %600 = vmatmul.f32.gmra.mxu0 %v579
    %v601 = vpop.f32.mrf.mxu0
    %v602 = vadd.f32 0.0, %v601
    %603 = vdwg.mxu0
    %604 = vrot.lane.b32.xlu0 %v313, 112
    %v605 = vpop.permute.xlu0 %604
    %606 = vrot.lane.b32.xlu0 %v316, 112
    %v607 = vpop.permute.xlu0 %606
    %608 = vrot.lane.b32.xlu0 %v313, 80
    %v609 = vpop.permute.xlu0 %608
    %610 = vrot.lane.b32.xlu0 %v316, 80
    %v611 = vpop.permute.xlu0 %610
    %v612 = vsel %vm370, %v605, 0
    %v614 = vsel %vm370, %v607, 0
    %v616 = vsel %vm370, %v609, 0
    %v618 = vsel %vm370, %v611, 0
    %620 = vmatpush.xpose.msra.mxu0 0.0
    %621 = vmatpush.xpose.msra.mxu0 0.0
    %622 = vmatpush.xpose.msra.mxu0 0.0
    %623 = vmatpush.xpose.msra.mxu0 0.0
    %624 = vmatpush.xpose.msra.mxu0 0.0
    %625 = vmatpush.xpose.msra.mxu0 0.0
    %626 = vmatpush.xpose.msra.mxu0 0.0
    %627 = vmatpush.xpose.msra.mxu0 0.0
    %628 = vmatpush.xpose.msra.mxu0 0.0
    %629 = vmatpush.xpose.msra.mxu0 0.0
    %630 = vmatpush.xpose.msra.mxu0 0.0
    %631 = vmatpush.xpose.msra.mxu0 0.0
    %632 = vmatpush.xpose.msra.mxu0 0.0
    %633 = vmatpush.xpose.msra.mxu0 0.0
    %634 = vmatpush.xpose.msra.mxu0 %v618
    %635 = vmatpush.xpose.msra.mxu0 %v616
    %636 = vmatmul.f32.gmra.mxu0 %v612
    %v637 = vpop.f32.mrf.mxu0
    %v638 = vadd.f32 %v167, %v637
    %639 = vmatmul.f32.gmra.mxu0 %v614
    %v640 = vpop.f32.mrf.mxu0
    %v641 = vadd.f32 %v168, %v640
    %642 = vdwg.mxu0
    %v643 = vsel %vm402, %v638, -inf
    %644 = vmax.xlane.f32.xlu0 %v643
    %v645 = vpop.xlane.xlu0 %644
    %v646 = vsel %vm402, %v641, -inf
    %647 = vmax.xlane.f32.xlu0 %v646
    %v648 = vpop.xlane.xlu0 %647
    %v649 = vsub.f32 %v638, %v645
    %v650 = vsub.f32 %v641, %v648
    %v651 = vmul.f32 %v649, 1.442695
    %v652 = vpow.pop %v651
    %v653 = vmul.f32 %v650, 1.442695
    %v654 = vpow.pop %v653
    %v655 = vsel %vm402, %v652, 0.0
    %656 = vadd.xlane.f32.xlu0 %v655
    %v657 = vpop.xlane.xlu0 %656
    %v658 = vsel %vm402, %v654, 0.0
    %659 = vadd.xlane.f32.xlu0 %v658
    %v660 = vpop.xlane.xlu0 %659
    %v661 = vrcp.pop %v657
    %v662 = vmul.f32 %v657, %v661
    %v663 = vsub.f32 1.0, %v662
    %v664 = vmul.f32 %v661, %v663
    %v665 = vadd.f32 %v661, %v664
    %vm666 = vweird.f32 %v657
    %vm667 = vweird.f32 %v661
    %vm668 = vmor %vm666, %vm667
    %v669 = vsel %vm668, %v661, %v665
    %v670 = vand.u32 2147483647, %v657
    %vm671 = vcmp.eq.f32.partialorder %v670, 8.507059e+37
    %v672 = vand.u32 %v657, 2147483648
    %v673 = vor.u32 1.1754944e-38, %v672
    %v674 = vsel %vm671, %v673, %v669
    %v675 = vmul.f32 %v652, %v674
    %v676 = vrcp.pop %v660
    %v677 = vmul.f32 %v660, %v676
    %v678 = vsub.f32 1.0, %v677
    %v679 = vmul.f32 %v676, %v678
    %v680 = vadd.f32 %v676, %v679
    %vm681 = vweird.f32 %v660
    %vm682 = vweird.f32 %v676
    %vm683 = vmor %vm681, %vm682
    %v684 = vsel %vm683, %v676, %v680
    %v685 = vand.u32 2147483647, %v660
    %vm686 = vcmp.eq.f32.partialorder %v685, 8.507059e+37
    %v687 = vand.u32 %v660, 2147483648
    %v688 = vor.u32 1.1754944e-38, %v687
    %v689 = vsel %vm686, %v688, %v684
    %v690 = vmul.f32 %v654, %v689
    %691 = vrot.lane.b32.xlu0 %v359, 112
    %v692 = vpop.permute.xlu0 %691
    %693 = vrot.lane.b32.xlu0 %v362, 112
    %v694 = vpop.permute.xlu0 %693
    %v698 = vsel %vm402, %v675, 0
    %v701 = vsel %vm402, %v690, 0
    %703 = vmatpush.msra.mxu0 0.0
    %704 = vmatpush.msra.mxu0 0.0
    %705 = vmatpush.msra.mxu0 0.0
    %706 = vmatpush.msra.mxu0 0.0
    %707 = vmatpush.msra.mxu0 0.0
    %708 = vmatpush.msra.mxu0 0.0
    %709 = vmatpush.msra.mxu0 0.0
    %710 = vmatpush.msra.mxu0 0.0
    %711 = vmatpush.msra.mxu0 0.0
    %712 = vmatpush.msra.mxu0 0.0
    %713 = vmatpush.msra.mxu0 0.0
    %714 = vmatpush.msra.mxu0 0.0
    %715 = vmatpush.msra.mxu0 0.0
    %716 = vmatpush.msra.mxu0 0.0
    %717 = vmatpush.msra.mxu0 %v694
    %718 = vmatpush.msra.mxu0 %v692
    %719 = vmatmul.f32.gmra.mxu0 %v698
    %v720 = vpop.f32.mrf.mxu0
    %v721 = vadd.f32 0.0, %v720
    %722 = vmatmul.f32.gmra.mxu0 %v701
    %v723 = vpop.f32.mrf.mxu0
    %v724 = vadd.f32 0.0, %v723
    %725 = vdwg.mxu0
    %726 = vrot.lane.b32.xlu0 %v313, 104
    %v727 = vpop.permute.xlu0 %726
    %728 = vrot.lane.b32.xlu0 %v316, 104
    %v729 = vpop.permute.xlu0 %728
    %730 = vrot.lane.b32.xlu0 %v313, 72
    %v731 = vpop.permute.xlu0 %730
    %732 = vrot.lane.b32.xlu0 %v316, 72
    %v733 = vpop.permute.xlu0 %732
    %v734 = vsel %vm370, %v727, 0
    %v736 = vsel %vm370, %v729, 0
    %v738 = vsel %vm370, %v731, 0
    %v740 = vsel %vm370, %v733, 0
    %742 = vmatpush.xpose.msra.mxu0 0.0
    %743 = vmatpush.xpose.msra.mxu0 0.0
    %744 = vmatpush.xpose.msra.mxu0 0.0
    %745 = vmatpush.xpose.msra.mxu0 0.0
    %746 = vmatpush.xpose.msra.mxu0 0.0
    %747 = vmatpush.xpose.msra.mxu0 0.0
    %748 = vmatpush.xpose.msra.mxu0 0.0
    %749 = vmatpush.xpose.msra.mxu0 0.0
    %750 = vmatpush.xpose.msra.mxu0 0.0
    %751 = vmatpush.xpose.msra.mxu0 0.0
    %752 = vmatpush.xpose.msra.mxu0 0.0
    %753 = vmatpush.xpose.msra.mxu0 0.0
    %754 = vmatpush.xpose.msra.mxu0 0.0
    %755 = vmatpush.xpose.msra.mxu0 0.0
    %756 = vmatpush.xpose.msra.mxu0 %v740
    %757 = vmatpush.xpose.msra.mxu0 %v738
    %758 = vmatmul.f32.gmra.mxu0 %v734
    %v759 = vpop.f32.mrf.mxu0
    %v760 = vadd.f32 %v167, %v759
    %761 = vmatmul.f32.gmra.mxu0 %v736
    %v762 = vpop.f32.mrf.mxu0
    %v763 = vadd.f32 %v168, %v762
    %764 = vdwg.mxu0
    %v765 = vsel %vm402, %v760, -inf
    %766 = vmax.xlane.f32.xlu0 %v765
    %v767 = vpop.xlane.xlu0 %766
    %v768 = vsel %vm402, %v763, -inf
    %769 = vmax.xlane.f32.xlu0 %v768
    %v770 = vpop.xlane.xlu0 %769
    %v771 = vsub.f32 %v760, %v767
    %v772 = vsub.f32 %v763, %v770
    %v773 = vmul.f32 %v771, 1.442695
    %v774 = vpow.pop %v773
    %v775 = vmul.f32 %v772, 1.442695
    %v776 = vpow.pop %v775
    %v777 = vsel %vm402, %v774, 0.0
    %778 = vadd.xlane.f32.xlu0 %v777
    %v779 = vpop.xlane.xlu0 %778
    %v780 = vsel %vm402, %v776, 0.0
    %781 = vadd.xlane.f32.xlu0 %v780
    %v782 = vpop.xlane.xlu0 %781
    %v783 = vrcp.pop %v779
    %v784 = vmul.f32 %v779, %v783
    %v785 = vsub.f32 1.0, %v784
    %v786 = vmul.f32 %v783, %v785
    %v787 = vadd.f32 %v783, %v786
    %vm788 = vweird.f32 %v779
    %vm789 = vweird.f32 %v783
    %vm790 = vmor %vm788, %vm789
    %v791 = vsel %vm790, %v783, %v787
    %v792 = vand.u32 2147483647, %v779
    %vm793 = vcmp.eq.f32.partialorder %v792, 8.507059e+37
    %v794 = vand.u32 %v779, 2147483648
    %v795 = vor.u32 1.1754944e-38, %v794
    %v796 = vsel %vm793, %v795, %v791
    %v797 = vmul.f32 %v774, %v796
    %v798 = vrcp.pop %v782
    %v799 = vmul.f32 %v782, %v798
    %v800 = vsub.f32 1.0, %v799
    %v801 = vmul.f32 %v798, %v800
    %v802 = vadd.f32 %v798, %v801
    %vm803 = vweird.f32 %v782
    %vm804 = vweird.f32 %v798
    %vm805 = vmor %vm803, %vm804
    %v806 = vsel %vm805, %v798, %v802
    %v807 = vand.u32 2147483647, %v782
    %vm808 = vcmp.eq.f32.partialorder %v807, 8.507059e+37
    %v809 = vand.u32 %v782, 2147483648
    %v810 = vor.u32 1.1754944e-38, %v809
    %v811 = vsel %vm808, %v810, %v806
    %v812 = vmul.f32 %v776, %v811
    %813 = vrot.lane.b32.xlu0 %v359, 104
    %v814 = vpop.permute.xlu0 %813
    %815 = vrot.lane.b32.xlu0 %v362, 104
    %v816 = vpop.permute.xlu0 %815
    %v820 = vsel %vm402, %v797, 0
    %v823 = vsel %vm402, %v812, 0
    %825 = vmatpush.msra.mxu0 0.0
    %826 = vmatpush.msra.mxu0 0.0
    %827 = vmatpush.msra.mxu0 0.0
    %828 = vmatpush.msra.mxu0 0.0
    %829 = vmatpush.msra.mxu0 0.0
    %830 = vmatpush.msra.mxu0 0.0
    %831 = vmatpush.msra.mxu0 0.0
    %832 = vmatpush.msra.mxu0 0.0
    %833 = vmatpush.msra.mxu0 0.0
    %834 = vmatpush.msra.mxu0 0.0
    %835 = vmatpush.msra.mxu0 0.0
    %836 = vmatpush.msra.mxu0 0.0
    %837 = vmatpush.msra.mxu0 0.0
    %838 = vmatpush.msra.mxu0 0.0
    %839 = vmatpush.msra.mxu0 %v816
    %840 = vmatpush.msra.mxu0 %v814
    %841 = vmatmul.f32.gmra.mxu0 %v820
    %v842 = vpop.f32.mrf.mxu0
    %v843 = vadd.f32 0.0, %v842
    %844 = vmatmul.f32.gmra.mxu0 %v823
    %v845 = vpop.f32.mrf.mxu0
    %v846 = vadd.f32 0.0, %v845
    %847 = vdwg.mxu0
    %850 = vrot.lane.b32.xlu0 %v599, 8
    %v851 = vpop.permute.xlu0 %850
    %852 = vrot.lane.b32.xlu0 %v602, 8
    %v853 = vpop.permute.xlu0 %852
    %858 = vrot.lane.b32.xlu0 %v721, 16
    %v859 = vpop.permute.xlu0 %858
    %860 = vrot.lane.b32.xlu0 %v724, 16
    %v861 = vpop.permute.xlu0 %860
    %866 = vrot.lane.b32.xlu0 %v843, 24
    %v867 = vpop.permute.xlu0 %866
    %868 = vrot.lane.b32.xlu0 %v846, 24
    %v869 = vpop.permute.xlu0 %868
    %v872 = vsel %vm370, %v475, %v851
    %v873 = vsel %vm370, %v478, %v853
    %v874 = vsel %vm402, %v872, %v859
    %v875 = vsel %vm402, %v873, %v861
    %vm876 = vcmask 195584
    %v877 = vsel %vm876, %v874, %v867
    %v878 = vsel %vm876, %v875, %v869
    %v879 = vperm.slane %v144, 0
    %880 = vrot.lane.b32.xlu0 %v130, 32
    %v881 = vpop.permute.xlu0 %880
    %882 = vrot.lane.b32.xlu0 %v131, 32
    %v883 = vpop.permute.xlu0 %882
    %884 = vrot.lane.b32.xlu0 %v132, 32
    %v885 = vpop.permute.xlu0 %884
    %886 = vrot.lane.b32.xlu0 %v133, 32
    %v887 = vpop.permute.xlu0 %886
    %v893 = vsel %vm190, %v877, 0
    %v896 = vsel %vm190, %v878, 0
    %898 = vmatpush.msra.mxu0 0.0
    %899 = vmatpush.msra.mxu0 0.0
    %900 = vmatpush.msra.mxu0 0.0
    %901 = vmatpush.msra.mxu0 0.0
    %902 = vmatpush.msra.mxu0 0.0
    %903 = vmatpush.msra.mxu0 0.0
    %904 = vmatpush.msra.mxu0 0.0
    %905 = vmatpush.msra.mxu0 0.0
    %906 = vmatpush.msra.mxu0 0.0
    %907 = vmatpush.msra.mxu0 0.0
    %908 = vmatpush.msra.mxu0 0.0
    %909 = vmatpush.msra.mxu0 0.0
    %910 = vmatpush.msra.mxu0 %v887
    %911 = vmatpush.msra.mxu0 %v885
    %912 = vmatpush.msra.mxu0 %v883
    %913 = vmatpush.msra.mxu0 %v881
    %914 = vmatmul.f32.gmra.mxu0 %v893
    %v915 = vpop.f32.mrf.mxu0
    %v916 = vadd.f32 %v879, %v915
    %917 = vmatmul.f32.gmra.mxu0 %v896
    %v918 = vpop.f32.mrf.mxu0
    %v919 = vadd.f32 %v879, %v918
    %920 = vdwg.mxu0
    %v921 = vadd.f32 %v118, %v916
    %v922 = vadd.f32 %v119, %v919
    %v923 = vsel %vm190, %v921, 0.0
    %924 = vadd.xlane.f32.xlu0 %v923
    %v925 = vpop.xlane.xlu0 %924
    %v926 = vsel %vm190, %v922, 0.0
    %927 = vadd.xlane.f32.xlu0 %v926
    %v928 = vpop.xlane.xlu0 %927
    %v929 = vrcp.pop 32.0
    %v930 = vmul.f32 32.0, %v929
    %v931 = vsub.f32 1.0, %v930
    %v932 = vmul.f32 %v929, %v931
    %v933 = vadd.f32 %v929, %v932
    %vm934 = vweird.f32 %v929
    %v935 = vsel %vm934, %v929, %v933
    %v936 = vmul.f32 %v925, %v935
    %v937 = vmul.f32 %v928, %v935
    %v938 = vsub.f32 %v921, %v936
    %v939 = vsub.f32 %v922, %v937
    %v940 = vmul.f32 %v938, %v938
    %v941 = vmul.f32 %v939, %v939
    %v942 = vsel %vm190, %v940, 0.0
    %943 = vadd.xlane.f32.xlu0 %v942
    %v944 = vpop.xlane.xlu0 %943
    %v945 = vsel %vm190, %v941, 0.0
    %946 = vadd.xlane.f32.xlu0 %v945
    %v947 = vpop.xlane.xlu0 %946
    %v948 = vmul.f32 %v944, %v935
    %v949 = vmul.f32 %v947, %v935
    %v950 = vadd.f32 %v948, 1e-05
    %v951 = vadd.f32 %v949, 1e-05
    %v952 = vrsqrt.pop %v950
    %v953 = vmul.f32 %v952, %v950
    %v954 = vmul.f32 %v953, %v952
    %v955 = vmul.f32 0.5, %v954
    %v956 = vsub.f32 1.5, %v955
    %v957 = vmul.f32 %v952, %v956
    %vm958 = vweird.f32 %v950
    %vm959 = vweird.f32 %v952
    %vm960 = vmor %vm958, %vm959
    %v961 = vsel %vm960, %v952, %v957
    %v962 = vrsqrt.pop %v951
    %v963 = vmul.f32 %v962, %v951
    %v964 = vmul.f32 %v963, %v962
    %v965 = vmul.f32 0.5, %v964
    %v966 = vsub.f32 1.5, %v965
    %v967 = vmul.f32 %v962, %v966
    %vm968 = vweird.f32 %v951
    %vm969 = vweird.f32 %v962
    %vm970 = vmor %vm968, %vm969
    %v971 = vsel %vm970, %v962, %v967
    %v972 = vmul.f32 %v938, %v961
    %v973 = vmul.f32 %v939, %v971
    %v974 = vperm.slane %v149, 0
    %v975 = vmul.f32 %v972, %v974
    %v976 = vmul.f32 %v973, %v974
    %v977 = vperm.slane %v150, 0
    %v978 = vadd.f32 %v975, %v977
    %v979 = vadd.f32 %v976, %v977
    %v980 = vadd.f32 %v978, %v124
    %v981 = vadd.f32 %v979, %v125
    %v982 = vperm.slane %v145, 0
    %v984 = vsel %vm190, %v980, 0
    %v987 = vsel %vm190, %v981, 0
    %989 = vmatpush.msra.mxu0 0.0
    %990 = vmatpush.msra.mxu0 0.0
    %991 = vmatpush.msra.mxu0 0.0
    %992 = vmatpush.msra.mxu0 0.0
    %993 = vmatpush.msra.mxu0 0.0
    %994 = vmatpush.msra.mxu0 0.0
    %995 = vmatpush.msra.mxu0 0.0
    %996 = vmatpush.msra.mxu0 0.0
    %997 = vmatpush.msra.mxu0 0.0
    %998 = vmatpush.msra.mxu0 0.0
    %999 = vmatpush.msra.mxu0 0.0
    %1000 = vmatpush.msra.mxu0 0.0
    %1001 = vmatpush.msra.mxu0 %v137
    %1002 = vmatpush.msra.mxu0 %v136
    %1003 = vmatpush.msra.mxu0 %v135
    %1004 = vmatpush.msra.mxu0 %v134
    %1005 = vmatmul.f32.gmra.mxu0 %v984
    %v1006 = vpop.f32.mrf.mxu0
    %v1007 = vadd.f32 %v982, %v1006
    %1008 = vmatmul.f32.gmra.mxu0 %v987
    %v1009 = vpop.f32.mrf.mxu0
    %v1010 = vadd.f32 %v982, %v1009
    %1011 = vdwg.mxu0
    %v1013 = vsel %vm370, %v1007, 0
    %v1016 = vsel %vm370, %v1010, 0
    %v1019 = vsel %vm370, %v221, 0
    %v1022 = vsel %vm370, %v224, 0
    %v1025 = vsel %vm370, %v227, 0
    %v1028 = vsel %vm370, %v230, 0
    %1030 = vmatpush.xpose.msra.mxu0 0.0
    %1031 = vmatpush.xpose.msra.mxu0 0.0
    %1032 = vmatpush.xpose.msra.mxu0 0.0
    %1033 = vmatpush.xpose.msra.mxu0 0.0
    %1034 = vmatpush.xpose.msra.mxu0 0.0
    %1035 = vmatpush.xpose.msra.mxu0 0.0
    %1036 = vmatpush.xpose.msra.mxu0 0.0
    %1037 = vmatpush.xpose.msra.mxu0 0.0
    %1038 = vmatpush.xpose.msra.mxu0 0.0
    %1039 = vmatpush.xpose.msra.mxu0 0.0
    %1040 = vmatpush.xpose.msra.mxu0 0.0
    %1041 = vmatpush.xpose.msra.mxu0 0.0
    %1042 = vmatpush.xpose.msra.mxu0 %v1028
    %1043 = vmatpush.xpose.msra.mxu0 %v1025
    %1044 = vmatpush.xpose.msra.mxu0 %v1022
    %1045 = vmatpush.xpose.msra.mxu0 %v1019
    %1046 = vmatmul.f32.gmra.mxu0 %v1013
    %v1047 = vpop.f32.mrf.mxu0
    %v1048 = vadd.f32 %v167, %v1047
    %1049 = vmatmul.f32.gmra.mxu0 %v1016
    %v1050 = vpop.f32.mrf.mxu0
    %v1051 = vadd.f32 %v168, %v1050
    %1052 = vdwg.mxu0
    %v1053 = vsel %vm190, %v1048, -inf
    %1054 = vmax.xlane.f32.xlu0 %v1053
    %v1055 = vpop.xlane.xlu0 %1054
    %v1056 = vsel %vm190, %v1051, -inf
    %1057 = vmax.xlane.f32.xlu0 %v1056
    %v1058 = vpop.xlane.xlu0 %1057
    %v1059 = vsub.f32 %v1048, %v1055
    %v1060 = vsub.f32 %v1051, %v1058
    %v1061 = vmul.f32 %v1059, 1.442695
    %v1062 = vpow.pop %v1061
    %v1063 = vmul.f32 %v1060, 1.442695
    %v1064 = vpow.pop %v1063
    %v1065 = vsel %vm190, %v1062, 0.0
    %1066 = vadd.xlane.f32.xlu0 %v1065
    %v1067 = vpop.xlane.xlu0 %1066
    %v1068 = vsel %vm190, %v1064, 0.0
    %1069 = vadd.xlane.f32.xlu0 %v1068
    %v1070 = vpop.xlane.xlu0 %1069
    %v1071 = vrcp.pop %v1067
    %v1072 = vmul.f32 %v1067, %v1071
    %v1073 = vsub.f32 1.0, %v1072
    %v1074 = vmul.f32 %v1071, %v1073
    %v1075 = vadd.f32 %v1071, %v1074
    %vm1076 = vweird.f32 %v1067
    %vm1077 = vweird.f32 %v1071
    %vm1078 = vmor %vm1076, %vm1077
    %v1079 = vsel %vm1078, %v1071, %v1075
    %v1080 = vand.u32 2147483647, %v1067
    %vm1081 = vcmp.eq.f32.partialorder %v1080, 8.507059e+37
    %v1082 = vand.u32 %v1067, 2147483648
    %v1083 = vor.u32 1.1754944e-38, %v1082
    %v1084 = vsel %vm1081, %v1083, %v1079
    %v1085 = vmul.f32 %v1062, %v1084
    %v1086 = vrcp.pop %v1070
    %v1087 = vmul.f32 %v1070, %v1086
    %v1088 = vsub.f32 1.0, %v1087
    %v1089 = vmul.f32 %v1086, %v1088
    %v1090 = vadd.f32 %v1086, %v1089
    %vm1091 = vweird.f32 %v1070
    %vm1092 = vweird.f32 %v1086
    %vm1093 = vmor %vm1091, %vm1092
    %v1094 = vsel %vm1093, %v1086, %v1090
    %v1095 = vand.u32 2147483647, %v1070
    %vm1096 = vcmp.eq.f32.partialorder %v1095, 8.507059e+37
    %v1097 = vand.u32 %v1070, 2147483648
    %v1098 = vor.u32 1.1754944e-38, %v1097
    %v1099 = vsel %vm1096, %v1098, %v1094
    %v1100 = vmul.f32 %v1064, %v1099
    %v1102 = vsel %vm190, %v1085, 0
    %v1105 = vsel %vm190, %v1100, 0
    %1107 = vmatpush.msra.mxu0 0.0
    %1108 = vmatpush.msra.mxu0 0.0
    %1109 = vmatpush.msra.mxu0 0.0
    %1110 = vmatpush.msra.mxu0 0.0
    %1111 = vmatpush.msra.mxu0 0.0
    %1112 = vmatpush.msra.mxu0 0.0
    %1113 = vmatpush.msra.mxu0 0.0
    %1114 = vmatpush.msra.mxu0 0.0
    %1115 = vmatpush.msra.mxu0 0.0
    %1116 = vmatpush.msra.mxu0 0.0
    %1117 = vmatpush.msra.mxu0 0.0
    %1118 = vmatpush.msra.mxu0 0.0
    %1119 = vmatpush.msra.mxu0 %v284
    %1120 = vmatpush.msra.mxu0 %v281
    %1121 = vmatpush.msra.mxu0 %v278
    %1122 = vmatpush.msra.mxu0 %v275
    %1123 = vmatmul.f32.gmra.mxu0 %v1102
    %v1124 = vpop.f32.mrf.mxu0
    %v1125 = vadd.f32 0.0, %v1124
    %1126 = vmatmul.f32.gmra.mxu0 %v1105
    %v1127 = vpop.f32.mrf.mxu0
    %v1128 = vadd.f32 0.0, %v1127
    %1129 = vdwg.mxu0
    %1130 = vrot.lane.b32.xlu0 %v1007, 120
    %v1131 = vpop.permute.xlu0 %1130
    %1132 = vrot.lane.b32.xlu0 %v1010, 120
    %v1133 = vpop.permute.xlu0 %1132
    %1134 = vrot.lane.b32.xlu0 %v221, 120
    %v1135 = vpop.permute.xlu0 %1134
    %1136 = vrot.lane.b32.xlu0 %v224, 120
    %v1137 = vpop.permute.xlu0 %1136
    %1138 = vrot.lane.b32.xlu0 %v227, 120
    %v1139 = vpop.permute.xlu0 %1138
    %1140 = vrot.lane.b32.xlu0 %v230, 120
    %v1141 = vpop.permute.xlu0 %1140
    %v1142 = vsel %vm370, %v1131, 0
    %v1144 = vsel %vm370, %v1133, 0
    %v1146 = vsel %vm370, %v1135, 0
    %v1148 = vsel %vm370, %v1137, 0
    %v1150 = vsel %vm370, %v1139, 0
    %v1152 = vsel %vm370, %v1141, 0
    %1154 = vmatpush.xpose.msra.mxu0 0.0
    %1155 = vmatpush.xpose.msra.mxu0 0.0
    %1156 = vmatpush.xpose.msra.mxu0 0.0
    %1157 = vmatpush.xpose.msra.mxu0 0.0
    %1158 = vmatpush.xpose.msra.mxu0 0.0
    %1159 = vmatpush.xpose.msra.mxu0 0.0
    %1160 = vmatpush.xpose.msra.mxu0 0.0
    %1161 = vmatpush.xpose.msra.mxu0 0.0
    %1162 = vmatpush.xpose.msra.mxu0 0.0
    %1163 = vmatpush.xpose.msra.mxu0 0.0
    %1164 = vmatpush.xpose.msra.mxu0 0.0
    %1165 = vmatpush.xpose.msra.mxu0 0.0
    %1166 = vmatpush.xpose.msra.mxu0 %v1152
    %1167 = vmatpush.xpose.msra.mxu0 %v1150
    %1168 = vmatpush.xpose.msra.mxu0 %v1148
    %1169 = vmatpush.xpose.msra.mxu0 %v1146
    %1170 = vmatmul.f32.gmra.mxu0 %v1142
    %v1171 = vpop.f32.mrf.mxu0
    %v1172 = vadd.f32 %v167, %v1171
    %1173 = vmatmul.f32.gmra.mxu0 %v1144
    %v1174 = vpop.f32.mrf.mxu0
    %v1175 = vadd.f32 %v168, %v1174
    %1176 = vdwg.mxu0
    %v1177 = vsel %vm190, %v1172, -inf
    %1178 = vmax.xlane.f32.xlu0 %v1177
    %v1179 = vpop.xlane.xlu0 %1178
    %v1180 = vsel %vm190, %v1175, -inf
    %1181 = vmax.xlane.f32.xlu0 %v1180
    %v1182 = vpop.xlane.xlu0 %1181
    %v1183 = vsub.f32 %v1172, %v1179
    %v1184 = vsub.f32 %v1175, %v1182
    %v1185 = vmul.f32 %v1183, 1.442695
    %v1186 = vpow.pop %v1185
    %v1187 = vmul.f32 %v1184, 1.442695
    %v1188 = vpow.pop %v1187
    %v1189 = vsel %vm190, %v1186, 0.0
    %1190 = vadd.xlane.f32.xlu0 %v1189
    %v1191 = vpop.xlane.xlu0 %1190
    %v1192 = vsel %vm190, %v1188, 0.0
    %1193 = vadd.xlane.f32.xlu0 %v1192
    %v1194 = vpop.xlane.xlu0 %1193
    %v1195 = vrcp.pop %v1191
    %v1196 = vmul.f32 %v1191, %v1195
    %v1197 = vsub.f32 1.0, %v1196
    %v1198 = vmul.f32 %v1195, %v1197
    %v1199 = vadd.f32 %v1195, %v1198
    %vm1200 = vweird.f32 %v1191
    %vm1201 = vweird.f32 %v1195
    %vm1202 = vmor %vm1200, %vm1201
    %v1203 = vsel %vm1202, %v1195, %v1199
    %v1204 = vand.u32 2147483647, %v1191
    %vm1205 = vcmp.eq.f32.partialorder %v1204, 8.507059e+37
    %v1206 = vand.u32 %v1191, 2147483648
    %v1207 = vor.u32 1.1754944e-38, %v1206
    %v1208 = vsel %vm1205, %v1207, %v1203
    %v1209 = vmul.f32 %v1186, %v1208
    %v1210 = vrcp.pop %v1194
    %v1211 = vmul.f32 %v1194, %v1210
    %v1212 = vsub.f32 1.0, %v1211
    %v1213 = vmul.f32 %v1210, %v1212
    %v1214 = vadd.f32 %v1210, %v1213
    %vm1215 = vweird.f32 %v1194
    %vm1216 = vweird.f32 %v1210
    %vm1217 = vmor %vm1215, %vm1216
    %v1218 = vsel %vm1217, %v1210, %v1214
    %v1219 = vand.u32 2147483647, %v1194
    %vm1220 = vcmp.eq.f32.partialorder %v1219, 8.507059e+37
    %v1221 = vand.u32 %v1194, 2147483648
    %v1222 = vor.u32 1.1754944e-38, %v1221
    %v1223 = vsel %vm1220, %v1222, %v1218
    %v1224 = vmul.f32 %v1188, %v1223
    %1229 = vrot.lane.b32.xlu0 %v275, 120
    %v1230 = vpop.permute.xlu0 %1229
    %1231 = vrot.lane.b32.xlu0 %v278, 120
    %v1232 = vpop.permute.xlu0 %1231
    %1233 = vrot.lane.b32.xlu0 %v281, 120
    %v1234 = vpop.permute.xlu0 %1233
    %1235 = vrot.lane.b32.xlu0 %v284, 120
    %v1236 = vpop.permute.xlu0 %1235
    %v1242 = vsel %vm190, %v1209, 0
    %v1245 = vsel %vm190, %v1224, 0
    %1247 = vmatpush.msra.mxu0 0.0
    %1248 = vmatpush.msra.mxu0 0.0
    %1249 = vmatpush.msra.mxu0 0.0
    %1250 = vmatpush.msra.mxu0 0.0
    %1251 = vmatpush.msra.mxu0 0.0
    %1252 = vmatpush.msra.mxu0 0.0
    %1253 = vmatpush.msra.mxu0 0.0
    %1254 = vmatpush.msra.mxu0 0.0
    %1255 = vmatpush.msra.mxu0 0.0
    %1256 = vmatpush.msra.mxu0 0.0
    %1257 = vmatpush.msra.mxu0 0.0
    %1258 = vmatpush.msra.mxu0 0.0
    %1259 = vmatpush.msra.mxu0 %v1236
    %1260 = vmatpush.msra.mxu0 %v1234
    %1261 = vmatpush.msra.mxu0 %v1232
    %1262 = vmatpush.msra.mxu0 %v1230
    %1263 = vmatmul.f32.gmra.mxu0 %v1242
    %v1264 = vpop.f32.mrf.mxu0
    %v1265 = vadd.f32 0.0, %v1264
    %1266 = vmatmul.f32.gmra.mxu0 %v1245
    %v1267 = vpop.f32.mrf.mxu0
    %v1268 = vadd.f32 0.0, %v1267
    %1269 = vdwg.mxu0
    %1270 = vrot.lane.b32.xlu0 %v1007, 112
    %v1271 = vpop.permute.xlu0 %1270
    %1272 = vrot.lane.b32.xlu0 %v1010, 112
    %v1273 = vpop.permute.xlu0 %1272
    %1274 = vrot.lane.b32.xlu0 %v221, 112
    %v1275 = vpop.permute.xlu0 %1274
    %1276 = vrot.lane.b32.xlu0 %v224, 112
    %v1277 = vpop.permute.xlu0 %1276
    %1278 = vrot.lane.b32.xlu0 %v227, 112
    %v1279 = vpop.permute.xlu0 %1278
    %1280 = vrot.lane.b32.xlu0 %v230, 112
    %v1281 = vpop.permute.xlu0 %1280
    %v1282 = vsel %vm370, %v1271, 0
    %v1284 = vsel %vm370, %v1273, 0
    %v1286 = vsel %vm370, %v1275, 0
    %v1288 = vsel %vm370, %v1277, 0
    %v1290 = vsel %vm370, %v1279, 0
    %v1292 = vsel %vm370, %v1281, 0
    %1294 = vmatpush.xpose.msra.mxu0 0.0
    %1295 = vmatpush.xpose.msra.mxu0 0.0
    %1296 = vmatpush.xpose.msra.mxu0 0.0
    %1297 = vmatpush.xpose.msra.mxu0 0.0
    %1298 = vmatpush.xpose.msra.mxu0 0.0
    %1299 = vmatpush.xpose.msra.mxu0 0.0
    %1300 = vmatpush.xpose.msra.mxu0 0.0
    %1301 = vmatpush.xpose.msra.mxu0 0.0
    %1302 = vmatpush.xpose.msra.mxu0 0.0
    %1303 = vmatpush.xpose.msra.mxu0 0.0
    %1304 = vmatpush.xpose.msra.mxu0 0.0
    %1305 = vmatpush.xpose.msra.mxu0 0.0
    %1306 = vmatpush.xpose.msra.mxu0 %v1292
    %1307 = vmatpush.xpose.msra.mxu0 %v1290
    %1308 = vmatpush.xpose.msra.mxu0 %v1288
    %1309 = vmatpush.xpose.msra.mxu0 %v1286
    %1310 = vmatmul.f32.gmra.mxu0 %v1282
    %v1311 = vpop.f32.mrf.mxu0
    %v1312 = vadd.f32 %v167, %v1311
    %1313 = vmatmul.f32.gmra.mxu0 %v1284
    %v1314 = vpop.f32.mrf.mxu0
    %v1315 = vadd.f32 %v168, %v1314
    %1316 = vdwg.mxu0
    %v1317 = vsel %vm190, %v1312, -inf
    %1318 = vmax.xlane.f32.xlu0 %v1317
    %v1319 = vpop.xlane.xlu0 %1318
    %v1320 = vsel %vm190, %v1315, -inf
    %1321 = vmax.xlane.f32.xlu0 %v1320
    %v1322 = vpop.xlane.xlu0 %1321
    %v1323 = vsub.f32 %v1312, %v1319
    %v1324 = vsub.f32 %v1315, %v1322
    %v1325 = vmul.f32 %v1323, 1.442695
    %v1326 = vpow.pop %v1325
    %v1327 = vmul.f32 %v1324, 1.442695
    %v1328 = vpow.pop %v1327
    %v1329 = vsel %vm190, %v1326, 0.0
    %1330 = vadd.xlane.f32.xlu0 %v1329
    %v1331 = vpop.xlane.xlu0 %1330
    %v1332 = vsel %vm190, %v1328, 0.0
    %1333 = vadd.xlane.f32.xlu0 %v1332
    %v1334 = vpop.xlane.xlu0 %1333
    %v1335 = vrcp.pop %v1331
    %v1336 = vmul.f32 %v1331, %v1335
    %v1337 = vsub.f32 1.0, %v1336
    %v1338 = vmul.f32 %v1335, %v1337
    %v1339 = vadd.f32 %v1335, %v1338
    %vm1340 = vweird.f32 %v1331
    %vm1341 = vweird.f32 %v1335
    %vm1342 = vmor %vm1340, %vm1341
    %v1343 = vsel %vm1342, %v1335, %v1339
    %v1344 = vand.u32 2147483647, %v1331
    %vm1345 = vcmp.eq.f32.partialorder %v1344, 8.507059e+37
    %v1346 = vand.u32 %v1331, 2147483648
    %v1347 = vor.u32 1.1754944e-38, %v1346
    %v1348 = vsel %vm1345, %v1347, %v1343
    %v1349 = vmul.f32 %v1326, %v1348
    %v1350 = vrcp.pop %v1334
    %v1351 = vmul.f32 %v1334, %v1350
    %v1352 = vsub.f32 1.0, %v1351
    %v1353 = vmul.f32 %v1350, %v1352
    %v1354 = vadd.f32 %v1350, %v1353
    %vm1355 = vweird.f32 %v1334
    %vm1356 = vweird.f32 %v1350
    %vm1357 = vmor %vm1355, %vm1356
    %v1358 = vsel %vm1357, %v1350, %v1354
    %v1359 = vand.u32 2147483647, %v1334
    %vm1360 = vcmp.eq.f32.partialorder %v1359, 8.507059e+37
    %v1361 = vand.u32 %v1334, 2147483648
    %v1362 = vor.u32 1.1754944e-38, %v1361
    %v1363 = vsel %vm1360, %v1362, %v1358
    %v1364 = vmul.f32 %v1328, %v1363
    %1365 = vrot.lane.b32.xlu0 %v275, 112
    %v1366 = vpop.permute.xlu0 %1365
    %1367 = vrot.lane.b32.xlu0 %v278, 112
    %v1368 = vpop.permute.xlu0 %1367
    %1369 = vrot.lane.b32.xlu0 %v281, 112
    %v1370 = vpop.permute.xlu0 %1369
    %1371 = vrot.lane.b32.xlu0 %v284, 112
    %v1372 = vpop.permute.xlu0 %1371
    %v1378 = vsel %vm190, %v1349, 0
    %v1381 = vsel %vm190, %v1364, 0
    %1383 = vmatpush.msra.mxu0 0.0
    %1384 = vmatpush.msra.mxu0 0.0
    %1385 = vmatpush.msra.mxu0 0.0
    %1386 = vmatpush.msra.mxu0 0.0
    %1387 = vmatpush.msra.mxu0 0.0
    %1388 = vmatpush.msra.mxu0 0.0
    %1389 = vmatpush.msra.mxu0 0.0
    %1390 = vmatpush.msra.mxu0 0.0
    %1391 = vmatpush.msra.mxu0 0.0
    %1392 = vmatpush.msra.mxu0 0.0
    %1393 = vmatpush.msra.mxu0 0.0
    %1394 = vmatpush.msra.mxu0 0.0
    %1395 = vmatpush.msra.mxu0 %v1372
    %1396 = vmatpush.msra.mxu0 %v1370
    %1397 = vmatpush.msra.mxu0 %v1368
    %1398 = vmatpush.msra.mxu0 %v1366
    %1399 = vmatmul.f32.gmra.mxu0 %v1378
    %v1400 = vpop.f32.mrf.mxu0
    %v1401 = vadd.f32 0.0, %v1400
    %1402 = vmatmul.f32.gmra.mxu0 %v1381
    %v1403 = vpop.f32.mrf.mxu0
    %v1404 = vadd.f32 0.0, %v1403
    %1405 = vdwg.mxu0
    %1406 = vrot.lane.b32.xlu0 %v1007, 104
    %v1407 = vpop.permute.xlu0 %1406
    %1408 = vrot.lane.b32.xlu0 %v1010, 104
    %v1409 = vpop.permute.xlu0 %1408
    %1410 = vrot.lane.b32.xlu0 %v221, 104
    %v1411 = vpop.permute.xlu0 %1410
    %1412 = vrot.lane.b32.xlu0 %v224, 104
    %v1413 = vpop.permute.xlu0 %1412
    %1414 = vrot.lane.b32.xlu0 %v227, 104
    %v1415 = vpop.permute.xlu0 %1414
    %1416 = vrot.lane.b32.xlu0 %v230, 104
    %v1417 = vpop.permute.xlu0 %1416
    %v1418 = vsel %vm370, %v1407, 0
    %v1420 = vsel %vm370, %v1409, 0
    %v1422 = vsel %vm370, %v1411, 0
    %v1424 = vsel %vm370, %v1413, 0
    %v1426 = vsel %vm370, %v1415, 0
    %v1428 = vsel %vm370, %v1417, 0
    %1430 = vmatpush.xpose.msra.mxu0 0.0
    %1431 = vmatpush.xpose.msra.mxu0 0.0
    %1432 = vmatpush.xpose.msra.mxu0 0.0
    %1433 = vmatpush.xpose.msra.mxu0 0.0
    %1434 = vmatpush.xpose.msra.mxu0 0.0
    %1435 = vmatpush.xpose.msra.mxu0 0.0
    %1436 = vmatpush.xpose.msra.mxu0 0.0
    %1437 = vmatpush.xpose.msra.mxu0 0.0
    %1438 = vmatpush.xpose.msra.mxu0 0.0
    %1439 = vmatpush.xpose.msra.mxu0 0.0
    %1440 = vmatpush.xpose.msra.mxu0 0.0
    %1441 = vmatpush.xpose.msra.mxu0 0.0
    %1442 = vmatpush.xpose.msra.mxu0 %v1428
    %1443 = vmatpush.xpose.msra.mxu0 %v1426
    %1444 = vmatpush.xpose.msra.mxu0 %v1424
    %1445 = vmatpush.xpose.msra.mxu0 %v1422
    %1446 = vmatmul.f32.gmra.mxu0 %v1418
    %v1447 = vpop.f32.mrf.mxu0
    %v1448 = vadd.f32 %v167, %v1447
    %1449 = vmatmul.f32.gmra.mxu0 %v1420
    %v1450 = vpop.f32.mrf.mxu0
    %v1451 = vadd.f32 %v168, %v1450
    %1452 = vdwg.mxu0
    %v1453 = vsel %vm190, %v1448, -inf
    %1454 = vmax.xlane.f32.xlu0 %v1453
    %v1455 = vpop.xlane.xlu0 %1454
    %v1456 = vsel %vm190, %v1451, -inf
    %1457 = vmax.xlane.f32.xlu0 %v1456
    %v1458 = vpop.xlane.xlu0 %1457
    %v1459 = vsub.f32 %v1448, %v1455
    %v1460 = vsub.f32 %v1451, %v1458
    %v1461 = vmul.f32 %v1459, 1.442695
    %v1462 = vpow.pop %v1461
    %v1463 = vmul.f32 %v1460, 1.442695
    %v1464 = vpow.pop %v1463
    %v1465 = vsel %vm190, %v1462, 0.0
    %1466 = vadd.xlane.f32.xlu0 %v1465
    %v1467 = vpop.xlane.xlu0 %1466
    %v1468 = vsel %vm190, %v1464, 0.0
    %1469 = vadd.xlane.f32.xlu0 %v1468
    %v1470 = vpop.xlane.xlu0 %1469
    %v1471 = vrcp.pop %v1467
    %v1472 = vmul.f32 %v1467, %v1471
    %v1473 = vsub.f32 1.0, %v1472
    %v1474 = vmul.f32 %v1471, %v1473
    %v1475 = vadd.f32 %v1471, %v1474
    %vm1476 = vweird.f32 %v1467
    %vm1477 = vweird.f32 %v1471
    %vm1478 = vmor %vm1476, %vm1477
    %v1479 = vsel %vm1478, %v1471, %v1475
    %v1480 = vand.u32 2147483647, %v1467
    %vm1481 = vcmp.eq.f32.partialorder %v1480, 8.507059e+37
    %v1482 = vand.u32 %v1467, 2147483648
    %v1483 = vor.u32 1.1754944e-38, %v1482
    %v1484 = vsel %vm1481, %v1483, %v1479
    %v1485 = vmul.f32 %v1462, %v1484
    %v1486 = vrcp.pop %v1470
    %v1487 = vmul.f32 %v1470, %v1486
    %v1488 = vsub.f32 1.0, %v1487
    %v1489 = vmul.f32 %v1486, %v1488
    %v1490 = vadd.f32 %v1486, %v1489
    %vm1491 = vweird.f32 %v1470
    %vm1492 = vweird.f32 %v1486
    %vm1493 = vmor %vm1491, %vm1492
    %v1494 = vsel %vm1493, %v1486, %v1490
    %v1495 = vand.u32 2147483647, %v1470
    %vm1496 = vcmp.eq.f32.partialorder %v1495, 8.507059e+37
    %v1497 = vand.u32 %v1470, 2147483648
    %v1498 = vor.u32 1.1754944e-38, %v1497
    %v1499 = vsel %vm1496, %v1498, %v1494
    %v1500 = vmul.f32 %v1464, %v1499
    %1501 = vrot.lane.b32.xlu0 %v275, 104
    %v1502 = vpop.permute.xlu0 %1501
    %1503 = vrot.lane.b32.xlu0 %v278, 104
    %v1504 = vpop.permute.xlu0 %1503
    %1505 = vrot.lane.b32.xlu0 %v281, 104
    %v1506 = vpop.permute.xlu0 %1505
    %1507 = vrot.lane.b32.xlu0 %v284, 104
    %v1508 = vpop.permute.xlu0 %1507
    %v1514 = vsel %vm190, %v1485, 0
    %v1517 = vsel %vm190, %v1500, 0
    %1519 = vmatpush.msra.mxu0 0.0
    %1520 = vmatpush.msra.mxu0 0.0
    %1521 = vmatpush.msra.mxu0 0.0
    %1522 = vmatpush.msra.mxu0 0.0
    %1523 = vmatpush.msra.mxu0 0.0
    %1524 = vmatpush.msra.mxu0 0.0
    %1525 = vmatpush.msra.mxu0 0.0
    %1526 = vmatpush.msra.mxu0 0.0
    %1527 = vmatpush.msra.mxu0 0.0
    %1528 = vmatpush.msra.mxu0 0.0
    %1529 = vmatpush.msra.mxu0 0.0
    %1530 = vmatpush.msra.mxu0 0.0
    %1531 = vmatpush.msra.mxu0 %v1508
    %1532 = vmatpush.msra.mxu0 %v1506
    %1533 = vmatpush.msra.mxu0 %v1504
    %1534 = vmatpush.msra.mxu0 %v1502
    %1535 = vmatmul.f32.gmra.mxu0 %v1514
    %v1536 = vpop.f32.mrf.mxu0
    %v1537 = vadd.f32 0.0, %v1536
    %1538 = vmatmul.f32.gmra.mxu0 %v1517
    %v1539 = vpop.f32.mrf.mxu0
    %v1540 = vadd.f32 0.0, %v1539
    %1541 = vdwg.mxu0
    %1544 = vrot.lane.b32.xlu0 %v1265, 8
    %v1545 = vpop.permute.xlu0 %1544
    %1546 = vrot.lane.b32.xlu0 %v1268, 8
    %v1547 = vpop.permute.xlu0 %1546
    %1552 = vrot.lane.b32.xlu0 %v1401, 16
    %v1553 = vpop.permute.xlu0 %1552
    %1554 = vrot.lane.b32.xlu0 %v1404, 16
    %v1555 = vpop.permute.xlu0 %1554
    %1560 = vrot.lane.b32.xlu0 %v1537, 24
    %v1561 = vpop.permute.xlu0 %1560
    %1562 = vrot.lane.b32.xlu0 %v1540, 24
    %v1563 = vpop.permute.xlu0 %1562
    %v1566 = vsel %vm370, %v1125, %v1545
    %v1567 = vsel %vm370, %v1128, %v1547
    %v1568 = vsel %vm402, %v1566, %v1553
    %v1569 = vsel %vm402, %v1567, %v1555
    %v1570 = vsel %vm876, %v1568, %v1561
    %v1571 = vsel %vm876, %v1569, %v1563
    %v1572 = vperm.slane %v148, 0
    %1573 = vrot.lane.b32.xlu0 %v134, 32
    %v1574 = vpop.permute.xlu0 %1573
    %1575 = vrot.lane.b32.xlu0 %v135, 32
    %v1576 = vpop.permute.xlu0 %1575
    %1577 = vrot.lane.b32.xlu0 %v136, 32
    %v1578 = vpop.permute.xlu0 %1577
    %1579 = vrot.lane.b32.xlu0 %v137, 32
    %v1580 = vpop.permute.xlu0 %1579
    %v1586 = vsel %vm190, %v1570, 0
    %v1589 = vsel %vm190, %v1571, 0
    %1591 = vmatpush.msra.mxu0 0.0
    %1592 = vmatpush.msra.mxu0 0.0
    %1593 = vmatpush.msra.mxu0 0.0
    %1594 = vmatpush.msra.mxu0 0.0
    %1595 = vmatpush.msra.mxu0 0.0
    %1596 = vmatpush.msra.mxu0 0.0
    %1597 = vmatpush.msra.mxu0 0.0
    %1598 = vmatpush.msra.mxu0 0.0
    %1599 = vmatpush.msra.mxu0 0.0
    %1600 = vmatpush.msra.mxu0 0.0
    %1601 = vmatpush.msra.mxu0 0.0
    %1602 = vmatpush.msra.mxu0 0.0
    %1603 = vmatpush.msra.mxu0 %v1580
    %1604 = vmatpush.msra.mxu0 %v1578
    %1605 = vmatpush.msra.mxu0 %v1576
    %1606 = vmatpush.msra.mxu0 %v1574
    %1607 = vmatmul.f32.gmra.mxu0 %v1586
    %v1608 = vpop.f32.mrf.mxu0
    %v1609 = vadd.f32 %v1572, %v1608
    %1610 = vmatmul.f32.gmra.mxu0 %v1589
    %v1611 = vpop.f32.mrf.mxu0
    %v1612 = vadd.f32 %v1572, %v1611
    %1613 = vdwg.mxu0
    %v1614 = vadd.f32 %v978, %v1609
    %v1615 = vadd.f32 %v979, %v1612
    %v1616 = vsel %vm190, %v1614, 0.0
    %1617 = vadd.xlane.f32.xlu0 %v1616
    %v1618 = vpop.xlane.xlu0 %1617
    %v1619 = vsel %vm190, %v1615, 0.0
    %1620 = vadd.xlane.f32.xlu0 %v1619
    %v1621 = vpop.xlane.xlu0 %1620
    %v1622 = vmul.f32 %v1618, %v935
    %v1623 = vmul.f32 %v1621, %v935
    %v1624 = vsub.f32 %v1614, %v1622
    %v1625 = vsub.f32 %v1615, %v1623
    %v1626 = vmul.f32 %v1624, %v1624
    %v1627 = vmul.f32 %v1625, %v1625
    %v1628 = vsel %vm190, %v1626, 0.0
    %1629 = vadd.xlane.f32.xlu0 %v1628
    %v1630 = vpop.xlane.xlu0 %1629
    %v1631 = vsel %vm190, %v1627, 0.0
    %1632 = vadd.xlane.f32.xlu0 %v1631
    %v1633 = vpop.xlane.xlu0 %1632
    %v1634 = vmul.f32 %v1630, %v935
    %v1635 = vmul.f32 %v1633, %v935
    %v1636 = vadd.f32 %v1634, 1e-05
    %v1637 = vadd.f32 %v1635, 1e-05
    %v1638 = vrsqrt.pop %v1636
    %v1639 = vmul.f32 %v1638, %v1636
    %v1640 = vmul.f32 %v1639, %v1638
    %v1641 = vmul.f32 0.5, %v1640
    %v1642 = vsub.f32 1.5, %v1641
    %v1643 = vmul.f32 %v1638, %v1642
    %vm1644 = vweird.f32 %v1636
    %vm1645 = vweird.f32 %v1638
    %vm1646 = vmor %vm1644, %vm1645
    %v1647 = vsel %vm1646, %v1638, %v1643
    %v1648 = vrsqrt.pop %v1637
    %v1649 = vmul.f32 %v1648, %v1637
    %v1650 = vmul.f32 %v1649, %v1648
    %v1651 = vmul.f32 0.5, %v1650
    %v1652 = vsub.f32 1.5, %v1651
    %v1653 = vmul.f32 %v1648, %v1652
    %vm1654 = vweird.f32 %v1637
    %vm1655 = vweird.f32 %v1648
    %vm1656 = vmor %vm1654, %vm1655
    %v1657 = vsel %vm1656, %v1648, %v1653
    %v1658 = vmul.f32 %v1624, %v1647
    %v1659 = vmul.f32 %v1625, %v1657
    %v1660 = vperm.slane %v151, 0
    %v1661 = vmul.f32 %v1658, %v1660
    %v1662 = vmul.f32 %v1659, %v1660
    %v1663 = vperm.slane %v152, 0
    %v1664 = vadd.f32 %v1661, %v1663
    %v1665 = vadd.f32 %v1662, %v1663
    %v1666 = vperm.slane %v155, 0
    %v1668 = vsel %vm190, %v1664, 0
    %v1671 = vsel %vm190, %v1665, 0
    %1673 = vmatpush.msra.mxu0 0.0
    %1674 = vmatpush.msra.mxu0 0.0
    %1675 = vmatpush.msra.mxu0 0.0
    %1676 = vmatpush.msra.mxu0 0.0
    %1677 = vmatpush.msra.mxu0 0.0
    %1678 = vmatpush.msra.mxu0 0.0
    %1679 = vmatpush.msra.mxu0 0.0
    %1680 = vmatpush.msra.mxu0 0.0
    %1681 = vmatpush.msra.mxu0 0.0
    %1682 = vmatpush.msra.mxu0 0.0
    %1683 = vmatpush.msra.mxu0 0.0
    %1684 = vmatpush.msra.mxu0 0.0
    %1685 = vmatpush.msra.mxu0 %v141
    %1686 = vmatpush.msra.mxu0 %v140
    %1687 = vmatpush.msra.mxu0 %v139
    %1688 = vmatpush.msra.mxu0 %v138
    %1689 = vmatmul.f32.gmra.mxu0 %v1668
    %v1690 = vpop.f32.mrf.mxu0
    %v1691 = vadd.f32 %v1666, %v1690
    %1692 = vmatmul.f32.gmra.mxu0 %v1671
    %v1693 = vpop.f32.mrf.mxu0
    %v1694 = vadd.f32 %v1666, %v1693
    %1695 = vdwg.mxu0
    %v1696 = vmax.f32 %v1691, 0.0
    %v1697 = vmax.f32 %v1694, 0.0
    %v1698 = vperm.slane %v156, 0
    %1703 = vrot.lane.b32.xlu0 %v138, 64
    %v1704 = vpop.permute.xlu0 %1703
    %1705 = vrot.lane.b32.xlu0 %v139, 64
    %v1706 = vpop.permute.xlu0 %1705
    %1707 = vrot.lane.b32.xlu0 %v140, 64
    %v1708 = vpop.permute.xlu0 %1707
    %1709 = vrot.lane.b32.xlu0 %v141, 64
    %v1710 = vpop.permute.xlu0 %1709
    %vm1711 = vcmask 523264
    %v1713 = vsel %vm1711, %v1696, 0
    %v1716 = vsel %vm1711, %v1697, 0
    %v1718 = vsel %vm1711, %v1704, 0
    %v1720 = vsel %vm1711, %v1706, 0
    %v1722 = vsel %vm1711, %v1708, 0
    %v1724 = vsel %vm1711, %v1710, 0
    %1726 = vmatpush.xpose.msra.mxu0 0.0
    %1727 = vmatpush.xpose.msra.mxu0 0.0
    %1728 = vmatpush.xpose.msra.mxu0 0.0
    %1729 = vmatpush.xpose.msra.mxu0 0.0
    %1730 = vmatpush.xpose.msra.mxu0 0.0
    %1731 = vmatpush.xpose.msra.mxu0 0.0
    %1732 = vmatpush.xpose.msra.mxu0 0.0
    %1733 = vmatpush.xpose.msra.mxu0 0.0
    %1734 = vmatpush.xpose.msra.mxu0 0.0
    %1735 = vmatpush.xpose.msra.mxu0 0.0
    %1736 = vmatpush.xpose.msra.mxu0 0.0
    %1737 = vmatpush.xpose.msra.mxu0 0.0
    %1738 = vmatpush.xpose.msra.mxu0 %v1724
    %1739 = vmatpush.xpose.msra.mxu0 %v1722
    %1740 = vmatpush.xpose.msra.mxu0 %v1720
    %1741 = vmatpush.xpose.msra.mxu0 %v1718
    %1742 = vmatmul.f32.gmra.mxu0 %v1713
    %v1743 = vpop.f32.mrf.mxu0
    %v1744 = vadd.f32 %v1698, %v1743
    %1745 = vmatmul.f32.gmra.mxu0 %v1716
    %v1746 = vpop.f32.mrf.mxu0
    %v1747 = vadd.f32 %v1698, %v1746
    %1748 = vdwg.mxu0
    %v1749 = vadd.f32 %v1664, %v1744
    %v1750 = vadd.f32 %v1665, %v1747
    %v1751 = vsel %vm190, %v1749, 0.0
    %1752 = vadd.xlane.f32.xlu0 %v1751
    %v1753 = vpop.xlane.xlu0 %1752
    %v1754 = vsel %vm190, %v1750, 0.0
    %1755 = vadd.xlane.f32.xlu0 %v1754
    %v1756 = vpop.xlane.xlu0 %1755
    %v1757 = vmul.f32 %v1753, %v935
    %v1758 = vmul.f32 %v1756, %v935
    %v1759 = vsub.f32 %v1749, %v1757
    %v1760 = vsub.f32 %v1750, %v1758
    %v1761 = vmul.f32 %v1759, %v1759
    %v1762 = vmul.f32 %v1760, %v1760
    %v1763 = vsel %vm190, %v1761, 0.0
    %1764 = vadd.xlane.f32.xlu0 %v1763
    %v1765 = vpop.xlane.xlu0 %1764
    %v1766 = vsel %vm190, %v1762, 0.0
    %1767 = vadd.xlane.f32.xlu0 %v1766
    %v1768 = vpop.xlane.xlu0 %1767
    %v1769 = vmul.f32 %v1765, %v935
    %v1770 = vmul.f32 %v1768, %v935
    %v1771 = vadd.f32 %v1769, 1e-05
    %v1772 = vadd.f32 %v1770, 1e-05
    %v1773 = vrsqrt.pop %v1771
    %v1774 = vmul.f32 %v1773, %v1771
    %v1775 = vmul.f32 %v1774, %v1773
    %v1776 = vmul.f32 0.5, %v1775
    %v1777 = vsub.f32 1.5, %v1776
    %v1778 = vmul.f32 %v1773, %v1777
    %vm1779 = vweird.f32 %v1771
    %vm1780 = vweird.f32 %v1773
    %vm1781 = vmor %vm1779, %vm1780
    %v1782 = vsel %vm1781, %v1773, %v1778
    %v1783 = vrsqrt.pop %v1772
    %v1784 = vmul.f32 %v1783, %v1772
    %v1785 = vmul.f32 %v1784, %v1783
    %v1786 = vmul.f32 0.5, %v1785
    %v1787 = vsub.f32 1.5, %v1786
    %v1788 = vmul.f32 %v1783, %v1787
    %vm1789 = vweird.f32 %v1772
    %vm1790 = vweird.f32 %v1783
    %vm1791 = vmor %vm1789, %vm1790
    %v1792 = vsel %vm1791, %v1783, %v1788
    %v1793 = vmul.f32 %v1759, %v1782
    %v1794 = vmul.f32 %v1760, %v1792
    %v1795 = vperm.slane %v153, 0
    %v1796 = vmul.f32 %v1793, %v1795
    %v1797 = vmul.f32 %v1794, %v1795
    %v1798 = vperm.slane %v154, 0
    %v1799 = vadd.f32 %v1796, %v1798
    %v1800 = vadd.f32 %v1797, %v1798
    %v1801 = vadd.f32 %v1799, %v124
    %v1802 = vadd.f32 %v1800, %v125
    %v1804 = vsel %vm190, %v1801, 0
    %v1807 = vsel %vm190, %v1802, 0
    %1809 = vmatpush.msra.mxu0 0.0
    %1810 = vmatpush.msra.mxu0 0.0
    %1811 = vmatpush.msra.mxu0 0.0
    %1812 = vmatpush.msra.mxu0 0.0
    %1813 = vmatpush.msra.mxu0 0.0
    %1814 = vmatpush.msra.mxu0 0.0
    %1815 = vmatpush.msra.mxu0 0.0
    %1816 = vmatpush.msra.mxu0 0.0
    %1817 = vmatpush.msra.mxu0 0.0
    %1818 = vmatpush.msra.mxu0 0.0
    %1819 = vmatpush.msra.mxu0 0.0
    %1820 = vmatpush.msra.mxu0 0.0
    %1821 = vmatpush.msra.mxu0 %v133
    %1822 = vmatpush.msra.mxu0 %v132
    %1823 = vmatpush.msra.mxu0 %v131
    %1824 = vmatpush.msra.mxu0 %v130
    %1825 = vmatmul.f32.gmra.mxu0 %v1804
    %v1826 = vpop.f32.mrf.mxu0
    %v1827 = vadd.f32 %v288, %v1826
    %1828 = vmatmul.f32.gmra.mxu0 %v1807
    %v1829 = vpop.f32.mrf.mxu0
    %v1830 = vadd.f32 %v288, %v1829
    %1831 = vdwg.mxu0
    %v1833 = vsel %vm190, %v1799, 0
    %v1836 = vsel %vm190, %v1800, 0
    %1838 = vmatpush.msra.mxu0 0.0
    %1839 = vmatpush.msra.mxu0 0.0
    %1840 = vmatpush.msra.mxu0 0.0
    %1841 = vmatpush.msra.mxu0 0.0
    %1842 = vmatpush.msra.mxu0 0.0
    %1843 = vmatpush.msra.mxu0 0.0
    %1844 = vmatpush.msra.mxu0 0.0
    %1845 = vmatpush.msra.mxu0 0.0
    %1846 = vmatpush.msra.mxu0 0.0
    %1847 = vmatpush.msra.mxu0 0.0
    %1848 = vmatpush.msra.mxu0 0.0
    %1849 = vmatpush.msra.mxu0 0.0
    %1850 = vmatpush.msra.mxu0 %v330
    %1851 = vmatpush.msra.mxu0 %v328
    %1852 = vmatpush.msra.mxu0 %v326
    %1853 = vmatpush.msra.mxu0 %v324
    %1854 = vmatmul.f32.gmra.mxu0 %v1833
    %v1855 = vpop.f32.mrf.mxu0
    %v1856 = vadd.f32 %v318, %v1855
    %1857 = vmatmul.f32.gmra.mxu0 %v1836
    %v1858 = vpop.f32.mrf.mxu0
    %v1859 = vadd.f32 %v318, %v1858
    %1860 = vdwg.mxu0
    %1863 = vrot.lane.b32.xlu0 %v1827, 96
    %v1864 = vpop.permute.xlu0 %1863
    %1865 = vrot.lane.b32.xlu0 %v1830, 96
    %v1866 = vpop.permute.xlu0 %1865
    %v1867 = vsel %vm370, %v1827, 0
    %v1869 = vsel %vm370, %v1830, 0
    %v1871 = vsel %vm370, %v1864, 0
    %v1873 = vsel %vm370, %v1866, 0
    %1875 = vmatpush.xpose.msra.mxu0 0.0
    %1876 = vmatpush.xpose.msra.mxu0 0.0
    %1877 = vmatpush.xpose.msra.mxu0 0.0
    %1878 = vmatpush.xpose.msra.mxu0 0.0
    %1879 = vmatpush.xpose.msra.mxu0 0.0
    %1880 = vmatpush.xpose.msra.mxu0 0.0
    %1881 = vmatpush.xpose.msra.mxu0 0.0
    %1882 = vmatpush.xpose.msra.mxu0 0.0
    %1883 = vmatpush.xpose.msra.mxu0 0.0
    %1884 = vmatpush.xpose.msra.mxu0 0.0
    %1885 = vmatpush.xpose.msra.mxu0 0.0
    %1886 = vmatpush.xpose.msra.mxu0 0.0
    %1887 = vmatpush.xpose.msra.mxu0 0.0
    %1888 = vmatpush.xpose.msra.mxu0 0.0
    %1889 = vmatpush.xpose.msra.mxu0 %v1873
    %1890 = vmatpush.xpose.msra.mxu0 %v1871
    %1891 = vmatmul.f32.gmra.mxu0 %v1867
    %v1892 = vpop.f32.mrf.mxu0
    %v1893 = vadd.f32 %v167, %v1892
    %1894 = vmatmul.f32.gmra.mxu0 %v1869
    %v1895 = vpop.f32.mrf.mxu0
    %v1896 = vadd.f32 %v168, %v1895
    %1897 = vdwg.mxu0
    %v1898 = vsel %vm402, %v1893, -inf
    %1899 = vmax.xlane.f32.xlu0 %v1898
    %v1900 = vpop.xlane.xlu0 %1899
    %v1901 = vsel %vm402, %v1896, -inf
    %1902 = vmax.xlane.f32.xlu0 %v1901
    %v1903 = vpop.xlane.xlu0 %1902
    %v1904 = vsub.f32 %v1893, %v1900
    %v1905 = vsub.f32 %v1896, %v1903
    %v1906 = vmul.f32 %v1904, 1.442695
    %v1907 = vpow.pop %v1906
    %v1908 = vmul.f32 %v1905, 1.442695
    %v1909 = vpow.pop %v1908
    %v1910 = vsel %vm402, %v1907, 0.0
    %1911 = vadd.xlane.f32.xlu0 %v1910
    %v1912 = vpop.xlane.xlu0 %1911
    %v1913 = vsel %vm402, %v1909, 0.0
    %1914 = vadd.xlane.f32.xlu0 %v1913
    %v1915 = vpop.xlane.xlu0 %1914
    %v1916 = vrcp.pop %v1912
    %v1917 = vmul.f32 %v1912, %v1916
    %v1918 = vsub.f32 1.0, %v1917
    %v1919 = vmul.f32 %v1916, %v1918
    %v1920 = vadd.f32 %v1916, %v1919
    %vm1921 = vweird.f32 %v1912
    %vm1922 = vweird.f32 %v1916
    %vm1923 = vmor %vm1921, %vm1922
    %v1924 = vsel %vm1923, %v1916, %v1920
    %v1925 = vand.u32 2147483647, %v1912
    %vm1926 = vcmp.eq.f32.partialorder %v1925, 8.507059e+37
    %v1927 = vand.u32 %v1912, 2147483648
    %v1928 = vor.u32 1.1754944e-38, %v1927
    %v1929 = vsel %vm1926, %v1928, %v1924
    %v1930 = vmul.f32 %v1907, %v1929
    %v1931 = vrcp.pop %v1915
    %v1932 = vmul.f32 %v1915, %v1931
    %v1933 = vsub.f32 1.0, %v1932
    %v1934 = vmul.f32 %v1931, %v1933
    %v1935 = vadd.f32 %v1931, %v1934
    %vm1936 = vweird.f32 %v1915
    %vm1937 = vweird.f32 %v1931
    %vm1938 = vmor %vm1936, %vm1937
    %v1939 = vsel %vm1938, %v1931, %v1935
    %v1940 = vand.u32 2147483647, %v1915
    %vm1941 = vcmp.eq.f32.partialorder %v1940, 8.507059e+37
    %v1942 = vand.u32 %v1915, 2147483648
    %v1943 = vor.u32 1.1754944e-38, %v1942
    %v1944 = vsel %vm1941, %v1943, %v1939
    %v1945 = vmul.f32 %v1909, %v1944
    %v1947 = vsel %vm402, %v1930, 0
    %v1950 = vsel %vm402, %v1945, 0
    %1952 = vmatpush.msra.mxu0 0.0
    %1953 = vmatpush.msra.mxu0 0.0
    %1954 = vmatpush.msra.mxu0 0.0
    %1955 = vmatpush.msra.mxu0 0.0
    %1956 = vmatpush.msra.mxu0 0.0
    %1957 = vmatpush.msra.mxu0 0.0
    %1958 = vmatpush.msra.mxu0 0.0
    %1959 = vmatpush.msra.mxu0 0.0
    %1960 = vmatpush.msra.mxu0 0.0
    %1961 = vmatpush.msra.mxu0 0.0
    %1962 = vmatpush.msra.mxu0 0.0
    %1963 = vmatpush.msra.mxu0 0.0
    %1964 = vmatpush.msra.mxu0 0.0
    %1965 = vmatpush.msra.mxu0 0.0
    %1966 = vmatpush.msra.mxu0 %v1859
    %1967 = vmatpush.msra.mxu0 %v1856
    %1968 = vmatmul.f32.gmra.mxu0 %v1947
    %v1969 = vpop.f32.mrf.mxu0
    %v1970 = vadd.f32 0.0, %v1969
    %1971 = vmatmul.f32.gmra.mxu0 %v1950
    %v1972 = vpop.f32.mrf.mxu0
    %v1973 = vadd.f32 0.0, %v1972
    %1974 = vdwg.mxu0
    %1975 = vrot.lane.b32.xlu0 %v1827, 120
    %v1976 = vpop.permute.xlu0 %1975
    %1977 = vrot.lane.b32.xlu0 %v1830, 120
    %v1978 = vpop.permute.xlu0 %1977
    %1979 = vrot.lane.b32.xlu0 %v1827, 88
    %v1980 = vpop.permute.xlu0 %1979
    %1981 = vrot.lane.b32.xlu0 %v1830, 88
    %v1982 = vpop.permute.xlu0 %1981
    %v1983 = vsel %vm370, %v1976, 0
    %v1985 = vsel %vm370, %v1978, 0
    %v1987 = vsel %vm370, %v1980, 0
    %v1989 = vsel %vm370, %v1982, 0
    %1991 = vmatpush.xpose.msra.mxu0 0.0
    %1992 = vmatpush.xpose.msra.mxu0 0.0
    %1993 = vmatpush.xpose.msra.mxu0 0.0
    %1994 = vmatpush.xpose.msra.mxu0 0.0
    %1995 = vmatpush.xpose.msra.mxu0 0.0
    %1996 = vmatpush.xpose.msra.mxu0 0.0
    %1997 = vmatpush.xpose.msra.mxu0 0.0
    %1998 = vmatpush.xpose.msra.mxu0 0.0
    %1999 = vmatpush.xpose.msra.mxu0 0.0
    %2000 = vmatpush.xpose.msra.mxu0 0.0
    %2001 = vmatpush.xpose.msra.mxu0 0.0
    %2002 = vmatpush.xpose.msra.mxu0 0.0
    %2003 = vmatpush.xpose.msra.mxu0 0.0
    %2004 = vmatpush.xpose.msra.mxu0 0.0
    %2005 = vmatpush.xpose.msra.mxu0 %v1989
    %2006 = vmatpush.xpose.msra.mxu0 %v1987
    %2007 = vmatmul.f32.gmra.mxu0 %v1983
    %v2008 = vpop.f32.mrf.mxu0
    %v2009 = vadd.f32 %v167, %v2008
    %2010 = vmatmul.f32.gmra.mxu0 %v1985
    %v2011 = vpop.f32.mrf.mxu0
    %v2012 = vadd.f32 %v168, %v2011
    %2013 = vdwg.mxu0
    %v2014 = vsel %vm402, %v2009, -inf
    %2015 = vmax.xlane.f32.xlu0 %v2014
    %v2016 = vpop.xlane.xlu0 %2015
    %v2017 = vsel %vm402, %v2012, -inf
    %2018 = vmax.xlane.f32.xlu0 %v2017
    %v2019 = vpop.xlane.xlu0 %2018
    %v2020 = vsub.f32 %v2009, %v2016
    %v2021 = vsub.f32 %v2012, %v2019
    %v2022 = vmul.f32 %v2020, 1.442695
    %v2023 = vpow.pop %v2022
    %v2024 = vmul.f32 %v2021, 1.442695
    %v2025 = vpow.pop %v2024
    %v2026 = vsel %vm402, %v2023, 0.0
    %2027 = vadd.xlane.f32.xlu0 %v2026
    %v2028 = vpop.xlane.xlu0 %2027
    %v2029 = vsel %vm402, %v2025, 0.0
    %2030 = vadd.xlane.f32.xlu0 %v2029
    %v2031 = vpop.xlane.xlu0 %2030
    %v2032 = vrcp.pop %v2028
    %v2033 = vmul.f32 %v2028, %v2032
    %v2034 = vsub.f32 1.0, %v2033
    %v2035 = vmul.f32 %v2032, %v2034
    %v2036 = vadd.f32 %v2032, %v2035
    %vm2037 = vweird.f32 %v2028
    %vm2038 = vweird.f32 %v2032
    %vm2039 = vmor %vm2037, %vm2038
    %v2040 = vsel %vm2039, %v2032, %v2036
    %v2041 = vand.u32 2147483647, %v2028
    %vm2042 = vcmp.eq.f32.partialorder %v2041, 8.507059e+37
    %v2043 = vand.u32 %v2028, 2147483648
    %v2044 = vor.u32 1.1754944e-38, %v2043
    %v2045 = vsel %vm2042, %v2044, %v2040
    %v2046 = vmul.f32 %v2023, %v2045
    %v2047 = vrcp.pop %v2031
    %v2048 = vmul.f32 %v2031, %v2047
    %v2049 = vsub.f32 1.0, %v2048
    %v2050 = vmul.f32 %v2047, %v2049
    %v2051 = vadd.f32 %v2047, %v2050
    %vm2052 = vweird.f32 %v2031
    %vm2053 = vweird.f32 %v2047
    %vm2054 = vmor %vm2052, %vm2053
    %v2055 = vsel %vm2054, %v2047, %v2051
    %v2056 = vand.u32 2147483647, %v2031
    %vm2057 = vcmp.eq.f32.partialorder %v2056, 8.507059e+37
    %v2058 = vand.u32 %v2031, 2147483648
    %v2059 = vor.u32 1.1754944e-38, %v2058
    %v2060 = vsel %vm2057, %v2059, %v2055
    %v2061 = vmul.f32 %v2025, %v2060
    %2064 = vrot.lane.b32.xlu0 %v1856, 120
    %v2065 = vpop.permute.xlu0 %2064
    %2066 = vrot.lane.b32.xlu0 %v1859, 120
    %v2067 = vpop.permute.xlu0 %2066
    %v2071 = vsel %vm402, %v2046, 0
    %v2074 = vsel %vm402, %v2061, 0
    %2076 = vmatpush.msra.mxu0 0.0
    %2077 = vmatpush.msra.mxu0 0.0
    %2078 = vmatpush.msra.mxu0 0.0
    %2079 = vmatpush.msra.mxu0 0.0
    %2080 = vmatpush.msra.mxu0 0.0
    %2081 = vmatpush.msra.mxu0 0.0
    %2082 = vmatpush.msra.mxu0 0.0
    %2083 = vmatpush.msra.mxu0 0.0
    %2084 = vmatpush.msra.mxu0 0.0
    %2085 = vmatpush.msra.mxu0 0.0
    %2086 = vmatpush.msra.mxu0 0.0
    %2087 = vmatpush.msra.mxu0 0.0
    %2088 = vmatpush.msra.mxu0 0.0
    %2089 = vmatpush.msra.mxu0 0.0
    %2090 = vmatpush.msra.mxu0 %v2067
    %2091 = vmatpush.msra.mxu0 %v2065
    %2092 = vmatmul.f32.gmra.mxu0 %v2071
    %v2093 = vpop.f32.mrf.mxu0
    %v2094 = vadd.f32 0.0, %v2093
    %2095 = vmatmul.f32.gmra.mxu0 %v2074
    %v2096 = vpop.f32.mrf.mxu0
    %v2097 = vadd.f32 0.0, %v2096
    %2098 = vdwg.mxu0
    %2099 = vrot.lane.b32.xlu0 %v1827, 112
    %v2100 = vpop.permute.xlu0 %2099
    %2101 = vrot.lane.b32.xlu0 %v1830, 112
    %v2102 = vpop.permute.xlu0 %2101
    %2103 = vrot.lane.b32.xlu0 %v1827, 80
    %v2104 = vpop.permute.xlu0 %2103
    %2105 = vrot.lane.b32.xlu0 %v1830, 80
    %v2106 = vpop.permute.xlu0 %2105
    %v2107 = vsel %vm370, %v2100, 0
    %v2109 = vsel %vm370, %v2102, 0
    %v2111 = vsel %vm370, %v2104, 0
    %v2113 = vsel %vm370, %v2106, 0
    %2115 = vmatpush.xpose.msra.mxu0 0.0
    %2116 = vmatpush.xpose.msra.mxu0 0.0
    %2117 = vmatpush.xpose.msra.mxu0 0.0
    %2118 = vmatpush.xpose.msra.mxu0 0.0
    %2119 = vmatpush.xpose.msra.mxu0 0.0
    %2120 = vmatpush.xpose.msra.mxu0 0.0
    %2121 = vmatpush.xpose.msra.mxu0 0.0
    %2122 = vmatpush.xpose.msra.mxu0 0.0
    %2123 = vmatpush.xpose.msra.mxu0 0.0
    %2124 = vmatpush.xpose.msra.mxu0 0.0
    %2125 = vmatpush.xpose.msra.mxu0 0.0
    %2126 = vmatpush.xpose.msra.mxu0 0.0
    %2127 = vmatpush.xpose.msra.mxu0 0.0
    %2128 = vmatpush.xpose.msra.mxu0 0.0
    %2129 = vmatpush.xpose.msra.mxu0 %v2113
    %2130 = vmatpush.xpose.msra.mxu0 %v2111
    %2131 = vmatmul.f32.gmra.mxu0 %v2107
    %v2132 = vpop.f32.mrf.mxu0
    %v2133 = vadd.f32 %v167, %v2132
    %2134 = vmatmul.f32.gmra.mxu0 %v2109
    %v2135 = vpop.f32.mrf.mxu0
    %v2136 = vadd.f32 %v168, %v2135
    %2137 = vdwg.mxu0
    %v2138 = vsel %vm402, %v2133, -inf
    %2139 = vmax.xlane.f32.xlu0 %v2138
    %v2140 = vpop.xlane.xlu0 %2139
    %v2141 = vsel %vm402, %v2136, -inf
    %2142 = vmax.xlane.f32.xlu0 %v2141
    %v2143 = vpop.xlane.xlu0 %2142
    %v2144 = vsub.f32 %v2133, %v2140
    %v2145 = vsub.f32 %v2136, %v2143
    %v2146 = vmul.f32 %v2144, 1.442695
    %v2147 = vpow.pop %v2146
    %v2148 = vmul.f32 %v2145, 1.442695
    %v2149 = vpow.pop %v2148
    %v2150 = vsel %vm402, %v2147, 0.0
    %2151 = vadd.xlane.f32.xlu0 %v2150
    %v2152 = vpop.xlane.xlu0 %2151
    %v2153 = vsel %vm402, %v2149, 0.0
    %2154 = vadd.xlane.f32.xlu0 %v2153
    %v2155 = vpop.xlane.xlu0 %2154
    %v2156 = vrcp.pop %v2152
    %v2157 = vmul.f32 %v2152, %v2156
    %v2158 = vsub.f32 1.0, %v2157
    %v2159 = vmul.f32 %v2156, %v2158
    %v2160 = vadd.f32 %v2156, %v2159
    %vm2161 = vweird.f32 %v2152
    %vm2162 = vweird.f32 %v2156
    %vm2163 = vmor %vm2161, %vm2162
    %v2164 = vsel %vm2163, %v2156, %v2160
    %v2165 = vand.u32 2147483647, %v2152
    %vm2166 = vcmp.eq.f32.partialorder %v2165, 8.507059e+37
    %v2167 = vand.u32 %v2152, 2147483648
    %v2168 = vor.u32 1.1754944e-38, %v2167
    %v2169 = vsel %vm2166, %v2168, %v2164
    %v2170 = vmul.f32 %v2147, %v2169
    %v2171 = vrcp.pop %v2155
    %v2172 = vmul.f32 %v2155, %v2171
    %v2173 = vsub.f32 1.0, %v2172
    %v2174 = vmul.f32 %v2171, %v2173
    %v2175 = vadd.f32 %v2171, %v2174
    %vm2176 = vweird.f32 %v2155
    %vm2177 = vweird.f32 %v2171
    %vm2178 = vmor %vm2176, %vm2177
    %v2179 = vsel %vm2178, %v2171, %v2175
    %v2180 = vand.u32 2147483647, %v2155
    %vm2181 = vcmp.eq.f32.partialorder %v2180, 8.507059e+37
    %v2182 = vand.u32 %v2155, 2147483648
    %v2183 = vor.u32 1.1754944e-38, %v2182
    %v2184 = vsel %vm2181, %v2183, %v2179
    %v2185 = vmul.f32 %v2149, %v2184
    %2186 = vrot.lane.b32.xlu0 %v1856, 112
    %v2187 = vpop.permute.xlu0 %2186
    %2188 = vrot.lane.b32.xlu0 %v1859, 112
    %v2189 = vpop.permute.xlu0 %2188
    %v2193 = vsel %vm402, %v2170, 0
    %v2196 = vsel %vm402, %v2185, 0
    %2198 = vmatpush.msra.mxu0 0.0
    %2199 = vmatpush.msra.mxu0 0.0
    %2200 = vmatpush.msra.mxu0 0.0
    %2201 = vmatpush.msra.mxu0 0.0
    %2202 = vmatpush.msra.mxu0 0.0
    %2203 = vmatpush.msra.mxu0 0.0
    %2204 = vmatpush.msra.mxu0 0.0
    %2205 = vmatpush.msra.mxu0 0.0
    %2206 = vmatpush.msra.mxu0 0.0
    %2207 = vmatpush.msra.mxu0 0.0
    %2208 = vmatpush.msra.mxu0 0.0
    %2209 = vmatpush.msra.mxu0 0.0
    %2210 = vmatpush.msra.mxu0 0.0
    %2211 = vmatpush.msra.mxu0 0.0
    %2212 = vmatpush.msra.mxu0 %v2189
    %2213 = vmatpush.msra.mxu0 %v2187
    %2214 = vmatmul.f32.gmra.mxu0 %v2193
    %v2215 = vpop.f32.mrf.mxu0
    %v2216 = vadd.f32 0.0, %v2215
    %2217 = vmatmul.f32.gmra.mxu0 %v2196
    %v2218 = vpop.f32.mrf.mxu0
    %v2219 = vadd.f32 0.0, %v2218
    %2220 = vdwg.mxu0
    %2221 = vrot.lane.b32.xlu0 %v1827, 104
    %v2222 = vpop.permute.xlu0 %2221
    %2223 = vrot.lane.b32.xlu0 %v1830, 104
    %v2224 = vpop.permute.xlu0 %2223
    %2225 = vrot.lane.b32.xlu0 %v1827, 72
    %v2226 = vpop.permute.xlu0 %2225
    %2227 = vrot.lane.b32.xlu0 %v1830, 72
    %v2228 = vpop.permute.xlu0 %2227
    %v2229 = vsel %vm370, %v2222, 0
    %v2231 = vsel %vm370, %v2224, 0
    %v2233 = vsel %vm370, %v2226, 0
    %v2235 = vsel %vm370, %v2228, 0
    %2237 = vmatpush.xpose.msra.mxu0 0.0
    %2238 = vmatpush.xpose.msra.mxu0 0.0
    %2239 = vmatpush.xpose.msra.mxu0 0.0
    %2240 = vmatpush.xpose.msra.mxu0 0.0
    %2241 = vmatpush.xpose.msra.mxu0 0.0
    %2242 = vmatpush.xpose.msra.mxu0 0.0
    %2243 = vmatpush.xpose.msra.mxu0 0.0
    %2244 = vmatpush.xpose.msra.mxu0 0.0
    %2245 = vmatpush.xpose.msra.mxu0 0.0
    %2246 = vmatpush.xpose.msra.mxu0 0.0
    %2247 = vmatpush.xpose.msra.mxu0 0.0
    %2248 = vmatpush.xpose.msra.mxu0 0.0
    %2249 = vmatpush.xpose.msra.mxu0 0.0
    %2250 = vmatpush.xpose.msra.mxu0 0.0
    %2251 = vmatpush.xpose.msra.mxu0 %v2235
    %2252 = vmatpush.xpose.msra.mxu0 %v2233
    %2253 = vmatmul.f32.gmra.mxu0 %v2229
    %v2254 = vpop.f32.mrf.mxu0
    %v2255 = vadd.f32 %v167, %v2254
    %2256 = vmatmul.f32.gmra.mxu0 %v2231
    %v2257 = vpop.f32.mrf.mxu0
    %v2258 = vadd.f32 %v168, %v2257
    %2259 = vdwg.mxu0
    %v2260 = vsel %vm402, %v2255, -inf
    %2261 = vmax.xlane.f32.xlu0 %v2260
    %v2262 = vpop.xlane.xlu0 %2261
    %v2263 = vsel %vm402, %v2258, -inf
    %2264 = vmax.xlane.f32.xlu0 %v2263
    %v2265 = vpop.xlane.xlu0 %2264
    %v2266 = vsub.f32 %v2255, %v2262
    %v2267 = vsub.f32 %v2258, %v2265
    %v2268 = vmul.f32 %v2266, 1.442695
    %v2269 = vpow.pop %v2268
    %v2270 = vmul.f32 %v2267, 1.442695
    %v2271 = vpow.pop %v2270
    %v2272 = vsel %vm402, %v2269, 0.0
    %2273 = vadd.xlane.f32.xlu0 %v2272
    %v2274 = vpop.xlane.xlu0 %2273
    %v2275 = vsel %vm402, %v2271, 0.0
    %2276 = vadd.xlane.f32.xlu0 %v2275
    %v2277 = vpop.xlane.xlu0 %2276
    %v2278 = vrcp.pop %v2274
    %v2279 = vmul.f32 %v2274, %v2278
    %v2280 = vsub.f32 1.0, %v2279
    %v2281 = vmul.f32 %v2278, %v2280
    %v2282 = vadd.f32 %v2278, %v2281
    %vm2283 = vweird.f32 %v2274
    %vm2284 = vweird.f32 %v2278
    %vm2285 = vmor %vm2283, %vm2284
    %v2286 = vsel %vm2285, %v2278, %v2282
    %v2287 = vand.u32 2147483647, %v2274
    %vm2288 = vcmp.eq.f32.partialorder %v2287, 8.507059e+37
    %v2289 = vand.u32 %v2274, 2147483648
    %v2290 = vor.u32 1.1754944e-38, %v2289
    %v2291 = vsel %vm2288, %v2290, %v2286
    %v2292 = vmul.f32 %v2269, %v2291
    %v2293 = vrcp.pop %v2277
    %v2294 = vmul.f32 %v2277, %v2293
    %v2295 = vsub.f32 1.0, %v2294
    %v2296 = vmul.f32 %v2293, %v2295
    %v2297 = vadd.f32 %v2293, %v2296
    %vm2298 = vweird.f32 %v2277
    %vm2299 = vweird.f32 %v2293
    %vm2300 = vmor %vm2298, %vm2299
    %v2301 = vsel %vm2300, %v2293, %v2297
    %v2302 = vand.u32 2147483647, %v2277
    %vm2303 = vcmp.eq.f32.partialorder %v2302, 8.507059e+37
    %v2304 = vand.u32 %v2277, 2147483648
    %v2305 = vor.u32 1.1754944e-38, %v2304
    %v2306 = vsel %vm2303, %v2305, %v2301
    %v2307 = vmul.f32 %v2271, %v2306
    %2308 = vrot.lane.b32.xlu0 %v1856, 104
    %v2309 = vpop.permute.xlu0 %2308
    %2310 = vrot.lane.b32.xlu0 %v1859, 104
    %v2311 = vpop.permute.xlu0 %2310
    %v2315 = vsel %vm402, %v2292, 0
    %v2318 = vsel %vm402, %v2307, 0
    %2320 = vmatpush.msra.mxu0 0.0
    %2321 = vmatpush.msra.mxu0 0.0
    %2322 = vmatpush.msra.mxu0 0.0
    %2323 = vmatpush.msra.mxu0 0.0
    %2324 = vmatpush.msra.mxu0 0.0
    %2325 = vmatpush.msra.mxu0 0.0
    %2326 = vmatpush.msra.mxu0 0.0
    %2327 = vmatpush.msra.mxu0 0.0
    %2328 = vmatpush.msra.mxu0 0.0
    %2329 = vmatpush.msra.mxu0 0.0
    %2330 = vmatpush.msra.mxu0 0.0
    %2331 = vmatpush.msra.mxu0 0.0
    %2332 = vmatpush.msra.mxu0 0.0
    %2333 = vmatpush.msra.mxu0 0.0
    %2334 = vmatpush.msra.mxu0 %v2311
    %2335 = vmatpush.msra.mxu0 %v2309
    %2336 = vmatmul.f32.gmra.mxu0 %v2315
    %v2337 = vpop.f32.mrf.mxu0
    %v2338 = vadd.f32 0.0, %v2337
    %2339 = vmatmul.f32.gmra.mxu0 %v2318
    %v2340 = vpop.f32.mrf.mxu0
    %v2341 = vadd.f32 0.0, %v2340
    %2342 = vdwg.mxu0
    %2345 = vrot.lane.b32.xlu0 %v2094, 8
    %v2346 = vpop.permute.xlu0 %2345
    %2347 = vrot.lane.b32.xlu0 %v2097, 8
    %v2348 = vpop.permute.xlu0 %2347
    %2353 = vrot.lane.b32.xlu0 %v2216, 16
    %v2354 = vpop.permute.xlu0 %2353
    %2355 = vrot.lane.b32.xlu0 %v2219, 16
    %v2356 = vpop.permute.xlu0 %2355
    %2361 = vrot.lane.b32.xlu0 %v2338, 24
    %v2362 = vpop.permute.xlu0 %2361
    %2363 = vrot.lane.b32.xlu0 %v2341, 24
    %v2364 = vpop.permute.xlu0 %2363
    %v2367 = vsel %vm370, %v1970, %v2346
    %v2368 = vsel %vm370, %v1973, %v2348
    %v2369 = vsel %vm402, %v2367, %v2354
    %v2370 = vsel %vm402, %v2368, %v2356
    %v2371 = vsel %vm876, %v2369, %v2362
    %v2372 = vsel %vm876, %v2370, %v2364
    %v2374 = vsel %vm190, %v2371, 0
    %v2377 = vsel %vm190, %v2372, 0
    %2379 = vmatpush.msra.mxu0 0.0
    %2380 = vmatpush.msra.mxu0 0.0
    %2381 = vmatpush.msra.mxu0 0.0
    %2382 = vmatpush.msra.mxu0 0.0
    %2383 = vmatpush.msra.mxu0 0.0
    %2384 = vmatpush.msra.mxu0 0.0
    %2385 = vmatpush.msra.mxu0 0.0
    %2386 = vmatpush.msra.mxu0 0.0
    %2387 = vmatpush.msra.mxu0 0.0
    %2388 = vmatpush.msra.mxu0 0.0
    %2389 = vmatpush.msra.mxu0 0.0
    %2390 = vmatpush.msra.mxu0 0.0
    %2391 = vmatpush.msra.mxu0 %v887
    %2392 = vmatpush.msra.mxu0 %v885
    %2393 = vmatpush.msra.mxu0 %v883
    %2394 = vmatpush.msra.mxu0 %v881
    %2395 = vmatmul.f32.gmra.mxu0 %v2374
    %v2396 = vpop.f32.mrf.mxu0
    %v2397 = vadd.f32 %v879, %v2396
    %2398 = vmatmul.f32.gmra.mxu0 %v2377
    %v2399 = vpop.f32.mrf.mxu0
    %v2400 = vadd.f32 %v879, %v2399
    %2401 = vdwg.mxu0
    %v2402 = vadd.f32 %v1799, %v2397
    %v2403 = vadd.f32 %v1800, %v2400
    %v2404 = vsel %vm190, %v2402, 0.0
    %2405 = vadd.xlane.f32.xlu0 %v2404
    %v2406 = vpop.xlane.xlu0 %2405
    %v2407 = vsel %vm190, %v2403, 0.0
    %2408 = vadd.xlane.f32.xlu0 %v2407
    %v2409 = vpop.xlane.xlu0 %2408
    %v2410 = vmul.f32 %v2406, %v935
    %v2411 = vmul.f32 %v2409, %v935
    %v2412 = vsub.f32 %v2402, %v2410
    %v2413 = vsub.f32 %v2403, %v2411
    %v2414 = vmul.f32 %v2412, %v2412
    %v2415 = vmul.f32 %v2413, %v2413
    %v2416 = vsel %vm190, %v2414, 0.0
    %2417 = vadd.xlane.f32.xlu0 %v2416
    %v2418 = vpop.xlane.xlu0 %2417
    %v2419 = vsel %vm190, %v2415, 0.0
    %2420 = vadd.xlane.f32.xlu0 %v2419
    %v2421 = vpop.xlane.xlu0 %2420
    %v2422 = vmul.f32 %v2418, %v935
    %v2423 = vmul.f32 %v2421, %v935
    %v2424 = vadd.f32 %v2422, 1e-05
    %v2425 = vadd.f32 %v2423, 1e-05
    %v2426 = vrsqrt.pop %v2424
    %v2427 = vmul.f32 %v2426, %v2424
    %v2428 = vmul.f32 %v2427, %v2426
    %v2429 = vmul.f32 0.5, %v2428
    %v2430 = vsub.f32 1.5, %v2429
    %v2431 = vmul.f32 %v2426, %v2430
    %vm2432 = vweird.f32 %v2424
    %vm2433 = vweird.f32 %v2426
    %vm2434 = vmor %vm2432, %vm2433
    %v2435 = vsel %vm2434, %v2426, %v2431
    %v2436 = vrsqrt.pop %v2425
    %v2437 = vmul.f32 %v2436, %v2425
    %v2438 = vmul.f32 %v2437, %v2436
    %v2439 = vmul.f32 0.5, %v2438
    %v2440 = vsub.f32 1.5, %v2439
    %v2441 = vmul.f32 %v2436, %v2440
    %vm2442 = vweird.f32 %v2425
    %vm2443 = vweird.f32 %v2436
    %vm2444 = vmor %vm2442, %vm2443
    %v2445 = vsel %vm2444, %v2436, %v2441
    %v2446 = vmul.f32 %v2412, %v2435
    %v2447 = vmul.f32 %v2413, %v2445
    %v2448 = vmul.f32 %v2446, %v974
    %v2449 = vmul.f32 %v2447, %v974
    %v2450 = vadd.f32 %v2448, %v977
    %v2451 = vadd.f32 %v2449, %v977
    %v2452 = vadd.f32 %v2450, %v124
    %v2453 = vadd.f32 %v2451, %v125
    %v2455 = vsel %vm190, %v2452, 0
    %v2458 = vsel %vm190, %v2453, 0
    %2460 = vmatpush.msra.mxu0 0.0
    %2461 = vmatpush.msra.mxu0 0.0
    %2462 = vmatpush.msra.mxu0 0.0
    %2463 = vmatpush.msra.mxu0 0.0
    %2464 = vmatpush.msra.mxu0 0.0
    %2465 = vmatpush.msra.mxu0 0.0
    %2466 = vmatpush.msra.mxu0 0.0
    %2467 = vmatpush.msra.mxu0 0.0
    %2468 = vmatpush.msra.mxu0 0.0
    %2469 = vmatpush.msra.mxu0 0.0
    %2470 = vmatpush.msra.mxu0 0.0
    %2471 = vmatpush.msra.mxu0 0.0
    %2472 = vmatpush.msra.mxu0 %v137
    %2473 = vmatpush.msra.mxu0 %v136
    %2474 = vmatpush.msra.mxu0 %v135
    %2475 = vmatpush.msra.mxu0 %v134
    %2476 = vmatmul.f32.gmra.mxu0 %v2455
    %v2477 = vpop.f32.mrf.mxu0
    %v2478 = vadd.f32 %v982, %v2477
    %2479 = vmatmul.f32.gmra.mxu0 %v2458
    %v2480 = vpop.f32.mrf.mxu0
    %v2481 = vadd.f32 %v982, %v2480
    %2482 = vdwg.mxu0
    %v2484 = vsel %vm370, %v2478, 0
    %v2487 = vsel %vm370, %v2481, 0
    %2489 = vmatpush.xpose.msra.mxu0 0.0
    %2490 = vmatpush.xpose.msra.mxu0 0.0
    %2491 = vmatpush.xpose.msra.mxu0 0.0
    %2492 = vmatpush.xpose.msra.mxu0 0.0
    %2493 = vmatpush.xpose.msra.mxu0 0.0
    %2494 = vmatpush.xpose.msra.mxu0 0.0
    %2495 = vmatpush.xpose.msra.mxu0 0.0
    %2496 = vmatpush.xpose.msra.mxu0 0.0
    %2497 = vmatpush.xpose.msra.mxu0 0.0
    %2498 = vmatpush.xpose.msra.mxu0 0.0
    %2499 = vmatpush.xpose.msra.mxu0 0.0
    %2500 = vmatpush.xpose.msra.mxu0 0.0
    %2501 = vmatpush.xpose.msra.mxu0 %v1028
    %2502 = vmatpush.xpose.msra.mxu0 %v1025
    %2503 = vmatpush.xpose.msra.mxu0 %v1022
    %2504 = vmatpush.xpose.msra.mxu0 %v1019
    %2505 = vmatmul.f32.gmra.mxu0 %v2484
    %v2506 = vpop.f32.mrf.mxu0
    %v2507 = vadd.f32 %v167, %v2506
    %2508 = vmatmul.f32.gmra.mxu0 %v2487
    %v2509 = vpop.f32.mrf.mxu0
    %v2510 = vadd.f32 %v168, %v2509
    %2511 = vdwg.mxu0
    %v2512 = vsel %vm190, %v2507, -inf
    %2513 = vmax.xlane.f32.xlu0 %v2512
    %v2514 = vpop.xlane.xlu0 %2513
    %v2515 = vsel %vm190, %v2510, -inf
    %2516 = vmax.xlane.f32.xlu0 %v2515
    %v2517 = vpop.xlane.xlu0 %2516
    %v2518 = vsub.f32 %v2507, %v2514
    %v2519 = vsub.f32 %v2510, %v2517
    %v2520 = vmul.f32 %v2518, 1.442695
    %v2521 = vpow.pop %v2520
    %v2522 = vmul.f32 %v2519, 1.442695
    %v2523 = vpow.pop %v2522
    %v2524 = vsel %vm190, %v2521, 0.0
    %2525 = vadd.xlane.f32.xlu0 %v2524
    %v2526 = vpop.xlane.xlu0 %2525
    %v2527 = vsel %vm190, %v2523, 0.0
    %2528 = vadd.xlane.f32.xlu0 %v2527
    %v2529 = vpop.xlane.xlu0 %2528
    %v2530 = vrcp.pop %v2526
    %v2531 = vmul.f32 %v2526, %v2530
    %v2532 = vsub.f32 1.0, %v2531
    %v2533 = vmul.f32 %v2530, %v2532
    %v2534 = vadd.f32 %v2530, %v2533
    %vm2535 = vweird.f32 %v2526
    %vm2536 = vweird.f32 %v2530
    %vm2537 = vmor %vm2535, %vm2536
    %v2538 = vsel %vm2537, %v2530, %v2534
    %v2539 = vand.u32 2147483647, %v2526
    %vm2540 = vcmp.eq.f32.partialorder %v2539, 8.507059e+37
    %v2541 = vand.u32 %v2526, 2147483648
    %v2542 = vor.u32 1.1754944e-38, %v2541
    %v2543 = vsel %vm2540, %v2542, %v2538
    %v2544 = vmul.f32 %v2521, %v2543
    %v2545 = vrcp.pop %v2529
    %v2546 = vmul.f32 %v2529, %v2545
    %v2547 = vsub.f32 1.0, %v2546
    %v2548 = vmul.f32 %v2545, %v2547
    %v2549 = vadd.f32 %v2545, %v2548
    %vm2550 = vweird.f32 %v2529
    %vm2551 = vweird.f32 %v2545
    %vm2552 = vmor %vm2550, %vm2551
    %v2553 = vsel %vm2552, %v2545, %v2549
    %v2554 = vand.u32 2147483647, %v2529
    %vm2555 = vcmp.eq.f32.partialorder %v2554, 8.507059e+37
    %v2556 = vand.u32 %v2529, 2147483648
    %v2557 = vor.u32 1.1754944e-38, %v2556
    %v2558 = vsel %vm2555, %v2557, %v2553
    %v2559 = vmul.f32 %v2523, %v2558
    %v2561 = vsel %vm190, %v2544, 0
    %v2564 = vsel %vm190, %v2559, 0
    %2566 = vmatpush.msra.mxu0 0.0
    %2567 = vmatpush.msra.mxu0 0.0
    %2568 = vmatpush.msra.mxu0 0.0
    %2569 = vmatpush.msra.mxu0 0.0
    %2570 = vmatpush.msra.mxu0 0.0
    %2571 = vmatpush.msra.mxu0 0.0
    %2572 = vmatpush.msra.mxu0 0.0
    %2573 = vmatpush.msra.mxu0 0.0
    %2574 = vmatpush.msra.mxu0 0.0
    %2575 = vmatpush.msra.mxu0 0.0
    %2576 = vmatpush.msra.mxu0 0.0
    %2577 = vmatpush.msra.mxu0 0.0
    %2578 = vmatpush.msra.mxu0 %v284
    %2579 = vmatpush.msra.mxu0 %v281
    %2580 = vmatpush.msra.mxu0 %v278
    %2581 = vmatpush.msra.mxu0 %v275
    %2582 = vmatmul.f32.gmra.mxu0 %v2561
    %v2583 = vpop.f32.mrf.mxu0
    %v2584 = vadd.f32 0.0, %v2583
    %2585 = vmatmul.f32.gmra.mxu0 %v2564
    %v2586 = vpop.f32.mrf.mxu0
    %v2587 = vadd.f32 0.0, %v2586
    %2588 = vdwg.mxu0
    %2589 = vrot.lane.b32.xlu0 %v2478, 120
    %v2590 = vpop.permute.xlu0 %2589
    %2591 = vrot.lane.b32.xlu0 %v2481, 120
    %v2592 = vpop.permute.xlu0 %2591
    %v2593 = vsel %vm370, %v2590, 0
    %v2595 = vsel %vm370, %v2592, 0
    %2597 = vmatpush.xpose.msra.mxu0 0.0
    %2598 = vmatpush.xpose.msra.mxu0 0.0
    %2599 = vmatpush.xpose.msra.mxu0 0.0
    %2600 = vmatpush.xpose.msra.mxu0 0.0
    %2601 = vmatpush.xpose.msra.mxu0 0.0
    %2602 = vmatpush.xpose.msra.mxu0 0.0
    %2603 = vmatpush.xpose.msra.mxu0 0.0
    %2604 = vmatpush.xpose.msra.mxu0 0.0
    %2605 = vmatpush.xpose.msra.mxu0 0.0
    %2606 = vmatpush.xpose.msra.mxu0 0.0
    %2607 = vmatpush.xpose.msra.mxu0 0.0
    %2608 = vmatpush.xpose.msra.mxu0 0.0
    %2609 = vmatpush.xpose.msra.mxu0 %v1152
    %2610 = vmatpush.xpose.msra.mxu0 %v1150
    %2611 = vmatpush.xpose.msra.mxu0 %v1148
    %2612 = vmatpush.xpose.msra.mxu0 %v1146
    %2613 = vmatmul.f32.gmra.mxu0 %v2593
    %v2614 = vpop.f32.mrf.mxu0
    %v2615 = vadd.f32 %v167, %v2614
    %2616 = vmatmul.f32.gmra.mxu0 %v2595
    %v2617 = vpop.f32.mrf.mxu0
    %v2618 = vadd.f32 %v168, %v2617
    %2619 = vdwg.mxu0
    %v2620 = vsel %vm190, %v2615, -inf
    %2621 = vmax.xlane.f32.xlu0 %v2620
    %v2622 = vpop.xlane.xlu0 %2621
    %v2623 = vsel %vm190, %v2618, -inf
    %2624 = vmax.xlane.f32.xlu0 %v2623
    %v2625 = vpop.xlane.xlu0 %2624
    %v2626 = vsub.f32 %v2615, %v2622
    %v2627 = vsub.f32 %v2618, %v2625
    %v2628 = vmul.f32 %v2626, 1.442695
    %v2629 = vpow.pop %v2628
    %v2630 = vmul.f32 %v2627, 1.442695
    %v2631 = vpow.pop %v2630
    %v2632 = vsel %vm190, %v2629, 0.0
    %2633 = vadd.xlane.f32.xlu0 %v2632
    %v2634 = vpop.xlane.xlu0 %2633
    %v2635 = vsel %vm190, %v2631, 0.0
    %2636 = vadd.xlane.f32.xlu0 %v2635
    %v2637 = vpop.xlane.xlu0 %2636
    %v2638 = vrcp.pop %v2634
    %v2639 = vmul.f32 %v2634, %v2638
    %v2640 = vsub.f32 1.0, %v2639
    %v2641 = vmul.f32 %v2638, %v2640
    %v2642 = vadd.f32 %v2638, %v2641
    %vm2643 = vweird.f32 %v2634
    %vm2644 = vweird.f32 %v2638
    %vm2645 = vmor %vm2643, %vm2644
    %v2646 = vsel %vm2645, %v2638, %v2642
    %v2647 = vand.u32 2147483647, %v2634
    %vm2648 = vcmp.eq.f32.partialorder %v2647, 8.507059e+37
    %v2649 = vand.u32 %v2634, 2147483648
    %v2650 = vor.u32 1.1754944e-38, %v2649
    %v2651 = vsel %vm2648, %v2650, %v2646
    %v2652 = vmul.f32 %v2629, %v2651
    %v2653 = vrcp.pop %v2637
    %v2654 = vmul.f32 %v2637, %v2653
    %v2655 = vsub.f32 1.0, %v2654
    %v2656 = vmul.f32 %v2653, %v2655
    %v2657 = vadd.f32 %v2653, %v2656
    %vm2658 = vweird.f32 %v2637
    %vm2659 = vweird.f32 %v2653
    %vm2660 = vmor %vm2658, %vm2659
    %v2661 = vsel %vm2660, %v2653, %v2657
    %v2662 = vand.u32 2147483647, %v2637
    %vm2663 = vcmp.eq.f32.partialorder %v2662, 8.507059e+37
    %v2664 = vand.u32 %v2637, 2147483648
    %v2665 = vor.u32 1.1754944e-38, %v2664
    %v2666 = vsel %vm2663, %v2665, %v2661
    %v2667 = vmul.f32 %v2631, %v2666
    %v2669 = vsel %vm190, %v2652, 0
    %v2672 = vsel %vm190, %v2667, 0
    %2674 = vmatpush.msra.mxu0 0.0
    %2675 = vmatpush.msra.mxu0 0.0
    %2676 = vmatpush.msra.mxu0 0.0
    %2677 = vmatpush.msra.mxu0 0.0
    %2678 = vmatpush.msra.mxu0 0.0
    %2679 = vmatpush.msra.mxu0 0.0
    %2680 = vmatpush.msra.mxu0 0.0
    %2681 = vmatpush.msra.mxu0 0.0
    %2682 = vmatpush.msra.mxu0 0.0
    %2683 = vmatpush.msra.mxu0 0.0
    %2684 = vmatpush.msra.mxu0 0.0
    %2685 = vmatpush.msra.mxu0 0.0
    %2686 = vmatpush.msra.mxu0 %v1236
    %2687 = vmatpush.msra.mxu0 %v1234
    %2688 = vmatpush.msra.mxu0 %v1232
    %2689 = vmatpush.msra.mxu0 %v1230
    %2690 = vmatmul.f32.gmra.mxu0 %v2669
    %v2691 = vpop.f32.mrf.mxu0
    %v2692 = vadd.f32 0.0, %v2691
    %2693 = vmatmul.f32.gmra.mxu0 %v2672
    %v2694 = vpop.f32.mrf.mxu0
    %v2695 = vadd.f32 0.0, %v2694
    %2696 = vdwg.mxu0
    %2697 = vrot.lane.b32.xlu0 %v2478, 112
    %v2698 = vpop.permute.xlu0 %2697
    %2699 = vrot.lane.b32.xlu0 %v2481, 112
    %v2700 = vpop.permute.xlu0 %2699
    %v2701 = vsel %vm370, %v2698, 0
    %v2703 = vsel %vm370, %v2700, 0
    %2705 = vmatpush.xpose.msra.mxu0 0.0
    %2706 = vmatpush.xpose.msra.mxu0 0.0
    %2707 = vmatpush.xpose.msra.mxu0 0.0
    %2708 = vmatpush.xpose.msra.mxu0 0.0
    %2709 = vmatpush.xpose.msra.mxu0 0.0
    %2710 = vmatpush.xpose.msra.mxu0 0.0
    %2711 = vmatpush.xpose.msra.mxu0 0.0
    %2712 = vmatpush.xpose.msra.mxu0 0.0
    %2713 = vmatpush.xpose.msra.mxu0 0.0
    %2714 = vmatpush.xpose.msra.mxu0 0.0
    %2715 = vmatpush.xpose.msra.mxu0 0.0
    %2716 = vmatpush.xpose.msra.mxu0 0.0
    %2717 = vmatpush.xpose.msra.mxu0 %v1292
    %2718 = vmatpush.xpose.msra.mxu0 %v1290
    %2719 = vmatpush.xpose.msra.mxu0 %v1288
    %2720 = vmatpush.xpose.msra.mxu0 %v1286
    %2721 = vmatmul.f32.gmra.mxu0 %v2701
    %v2722 = vpop.f32.mrf.mxu0
    %v2723 = vadd.f32 %v167, %v2722
    %2724 = vmatmul.f32.gmra.mxu0 %v2703
    %v2725 = vpop.f32.mrf.mxu0
    %v2726 = vadd.f32 %v168, %v2725
    %2727 = vdwg.mxu0
    %v2728 = vsel %vm190, %v2723, -inf
    %2729 = vmax.xlane.f32.xlu0 %v2728
    %v2730 = vpop.xlane.xlu0 %2729
    %v2731 = vsel %vm190, %v2726, -inf
    %2732 = vmax.xlane.f32.xlu0 %v2731
    %v2733 = vpop.xlane.xlu0 %2732
    %v2734 = vsub.f32 %v2723, %v2730
    %v2735 = vsub.f32 %v2726, %v2733
    %v2736 = vmul.f32 %v2734, 1.442695
    %v2737 = vpow.pop %v2736
    %v2738 = vmul.f32 %v2735, 1.442695
    %v2739 = vpow.pop %v2738
    %v2740 = vsel %vm190, %v2737, 0.0
    %2741 = vadd.xlane.f32.xlu0 %v2740
    %v2742 = vpop.xlane.xlu0 %2741
    %v2743 = vsel %vm190, %v2739, 0.0
    %2744 = vadd.xlane.f32.xlu0 %v2743
    %v2745 = vpop.xlane.xlu0 %2744
    %v2746 = vrcp.pop %v2742
    %v2747 = vmul.f32 %v2742, %v2746
    %v2748 = vsub.f32 1.0, %v2747
    %v2749 = vmul.f32 %v2746, %v2748
    %v2750 = vadd.f32 %v2746, %v2749
    %vm2751 = vweird.f32 %v2742
    %vm2752 = vweird.f32 %v2746
    %vm2753 = vmor %vm2751, %vm2752
    %v2754 = vsel %vm2753, %v2746, %v2750
    %v2755 = vand.u32 2147483647, %v2742
    %vm2756 = vcmp.eq.f32.partialorder %v2755, 8.507059e+37
    %v2757 = vand.u32 %v2742, 2147483648
    %v2758 = vor.u32 1.1754944e-38, %v2757
    %v2759 = vsel %vm2756, %v2758, %v2754
    %v2760 = vmul.f32 %v2737, %v2759
    %v2761 = vrcp.pop %v2745
    %v2762 = vmul.f32 %v2745, %v2761
    %v2763 = vsub.f32 1.0, %v2762
    %v2764 = vmul.f32 %v2761, %v2763
    %v2765 = vadd.f32 %v2761, %v2764
    %vm2766 = vweird.f32 %v2745
    %vm2767 = vweird.f32 %v2761
    %vm2768 = vmor %vm2766, %vm2767
    %v2769 = vsel %vm2768, %v2761, %v2765
    %v2770 = vand.u32 2147483647, %v2745
    %vm2771 = vcmp.eq.f32.partialorder %v2770, 8.507059e+37
    %v2772 = vand.u32 %v2745, 2147483648
    %v2773 = vor.u32 1.1754944e-38, %v2772
    %v2774 = vsel %vm2771, %v2773, %v2769
    %v2775 = vmul.f32 %v2739, %v2774
    %v2777 = vsel %vm190, %v2760, 0
    %v2780 = vsel %vm190, %v2775, 0
    %2782 = vmatpush.msra.mxu0 0.0
    %2783 = vmatpush.msra.mxu0 0.0
    %2784 = vmatpush.msra.mxu0 0.0
    %2785 = vmatpush.msra.mxu0 0.0
    %2786 = vmatpush.msra.mxu0 0.0
    %2787 = vmatpush.msra.mxu0 0.0
    %2788 = vmatpush.msra.mxu0 0.0
    %2789 = vmatpush.msra.mxu0 0.0
    %2790 = vmatpush.msra.mxu0 0.0
    %2791 = vmatpush.msra.mxu0 0.0
    %2792 = vmatpush.msra.mxu0 0.0
    %2793 = vmatpush.msra.mxu0 0.0
    %2794 = vmatpush.msra.mxu0 %v1372
    %2795 = vmatpush.msra.mxu0 %v1370
    %2796 = vmatpush.msra.mxu0 %v1368
    %2797 = vmatpush.msra.mxu0 %v1366
    %2798 = vmatmul.f32.gmra.mxu0 %v2777
    %v2799 = vpop.f32.mrf.mxu0
    %v2800 = vadd.f32 0.0, %v2799
    %2801 = vmatmul.f32.gmra.mxu0 %v2780
    %v2802 = vpop.f32.mrf.mxu0
    %v2803 = vadd.f32 0.0, %v2802
    %2804 = vdwg.mxu0
    %2805 = vrot.lane.b32.xlu0 %v2478, 104
    %v2806 = vpop.permute.xlu0 %2805
    %2807 = vrot.lane.b32.xlu0 %v2481, 104
    %v2808 = vpop.permute.xlu0 %2807
    %v2809 = vsel %vm370, %v2806, 0
    %v2811 = vsel %vm370, %v2808, 0
    %2813 = vmatpush.xpose.msra.mxu0 0.0
    %2814 = vmatpush.xpose.msra.mxu0 0.0
    %2815 = vmatpush.xpose.msra.mxu0 0.0
    %2816 = vmatpush.xpose.msra.mxu0 0.0
    %2817 = vmatpush.xpose.msra.mxu0 0.0
    %2818 = vmatpush.xpose.msra.mxu0 0.0
    %2819 = vmatpush.xpose.msra.mxu0 0.0
    %2820 = vmatpush.xpose.msra.mxu0 0.0
    %2821 = vmatpush.xpose.msra.mxu0 0.0
    %2822 = vmatpush.xpose.msra.mxu0 0.0
    %2823 = vmatpush.xpose.msra.mxu0 0.0
    %2824 = vmatpush.xpose.msra.mxu0 0.0
    %2825 = vmatpush.xpose.msra.mxu0 %v1428
    %2826 = vmatpush.xpose.msra.mxu0 %v1426
    %2827 = vmatpush.xpose.msra.mxu0 %v1424
    %2828 = vmatpush.xpose.msra.mxu0 %v1422
    %2829 = vmatmul.f32.gmra.mxu0 %v2809
    %v2830 = vpop.f32.mrf.mxu0
    %v2831 = vadd.f32 %v167, %v2830
    %2832 = vmatmul.f32.gmra.mxu0 %v2811
    %v2833 = vpop.f32.mrf.mxu0
    %v2834 = vadd.f32 %v168, %v2833
    %2835 = vdwg.mxu0
    %v2836 = vsel %vm190, %v2831, -inf
    %2837 = vmax.xlane.f32.xlu0 %v2836
    %v2838 = vpop.xlane.xlu0 %2837
    %v2839 = vsel %vm190, %v2834, -inf
    %2840 = vmax.xlane.f32.xlu0 %v2839
    %v2841 = vpop.xlane.xlu0 %2840
    %v2842 = vsub.f32 %v2831, %v2838
    %v2843 = vsub.f32 %v2834, %v2841
    %v2844 = vmul.f32 %v2842, 1.442695
    %v2845 = vpow.pop %v2844
    %v2846 = vmul.f32 %v2843, 1.442695
    %v2847 = vpow.pop %v2846
    %v2848 = vsel %vm190, %v2845, 0.0
    %2849 = vadd.xlane.f32.xlu0 %v2848
    %v2850 = vpop.xlane.xlu0 %2849
    %v2851 = vsel %vm190, %v2847, 0.0
    %2852 = vadd.xlane.f32.xlu0 %v2851
    %v2853 = vpop.xlane.xlu0 %2852
    %v2854 = vrcp.pop %v2850
    %v2855 = vmul.f32 %v2850, %v2854
    %v2856 = vsub.f32 1.0, %v2855
    %v2857 = vmul.f32 %v2854, %v2856
    %v2858 = vadd.f32 %v2854, %v2857
    %vm2859 = vweird.f32 %v2850
    %vm2860 = vweird.f32 %v2854
    %vm2861 = vmor %vm2859, %vm2860
    %v2862 = vsel %vm2861, %v2854, %v2858
    %v2863 = vand.u32 2147483647, %v2850
    %vm2864 = vcmp.eq.f32.partialorder %v2863, 8.507059e+37
    %v2865 = vand.u32 %v2850, 2147483648
    %v2866 = vor.u32 1.1754944e-38, %v2865
    %v2867 = vsel %vm2864, %v2866, %v2862
    %v2868 = vmul.f32 %v2845, %v2867
    %v2869 = vrcp.pop %v2853
    %v2870 = vmul.f32 %v2853, %v2869
    %v2871 = vsub.f32 1.0, %v2870
    %v2872 = vmul.f32 %v2869, %v2871
    %v2873 = vadd.f32 %v2869, %v2872
    %vm2874 = vweird.f32 %v2853
    %vm2875 = vweird.f32 %v2869
    %vm2876 = vmor %vm2874, %vm2875
    %v2877 = vsel %vm2876, %v2869, %v2873
    %v2878 = vand.u32 2147483647, %v2853
    %vm2879 = vcmp.eq.f32.partialorder %v2878, 8.507059e+37
    %v2880 = vand.u32 %v2853, 2147483648
    %v2881 = vor.u32 1.1754944e-38, %v2880
    %v2882 = vsel %vm2879, %v2881, %v2877
    %v2883 = vmul.f32 %v2847, %v2882
    %v2885 = vsel %vm190, %v2868, 0
    %v2888 = vsel %vm190, %v2883, 0
    %2890 = vmatpush.msra.mxu0 0.0
    %2891 = vmatpush.msra.mxu0 0.0
    %2892 = vmatpush.msra.mxu0 0.0
    %2893 = vmatpush.msra.mxu0 0.0
    %2894 = vmatpush.msra.mxu0 0.0
    %2895 = vmatpush.msra.mxu0 0.0
    %2896 = vmatpush.msra.mxu0 0.0
    %2897 = vmatpush.msra.mxu0 0.0
    %2898 = vmatpush.msra.mxu0 0.0
    %2899 = vmatpush.msra.mxu0 0.0
    %2900 = vmatpush.msra.mxu0 0.0
    %2901 = vmatpush.msra.mxu0 0.0
    %2902 = vmatpush.msra.mxu0 %v1508
    %2903 = vmatpush.msra.mxu0 %v1506
    %2904 = vmatpush.msra.mxu0 %v1504
    %2905 = vmatpush.msra.mxu0 %v1502
    %2906 = vmatmul.f32.gmra.mxu0 %v2885
    %v2907 = vpop.f32.mrf.mxu0
    %v2908 = vadd.f32 0.0, %v2907
    %2909 = vmatmul.f32.gmra.mxu0 %v2888
    %v2910 = vpop.f32.mrf.mxu0
    %v2911 = vadd.f32 0.0, %v2910
    %2912 = vdwg.mxu0
    %2915 = vrot.lane.b32.xlu0 %v2692, 8
    %v2916 = vpop.permute.xlu0 %2915
    %2917 = vrot.lane.b32.xlu0 %v2695, 8
    %v2918 = vpop.permute.xlu0 %2917
    %2923 = vrot.lane.b32.xlu0 %v2800, 16
    %v2924 = vpop.permute.xlu0 %2923
    %2925 = vrot.lane.b32.xlu0 %v2803, 16
    %v2926 = vpop.permute.xlu0 %2925
    %2931 = vrot.lane.b32.xlu0 %v2908, 24
    %v2932 = vpop.permute.xlu0 %2931
    %2933 = vrot.lane.b32.xlu0 %v2911, 24
    %v2934 = vpop.permute.xlu0 %2933
    %v2937 = vsel %vm370, %v2584, %v2916
    %v2938 = vsel %vm370, %v2587, %v2918
    %v2939 = vsel %vm402, %v2937, %v2924
    %v2940 = vsel %vm402, %v2938, %v2926
    %v2941 = vsel %vm876, %v2939, %v2932
    %v2942 = vsel %vm876, %v2940, %v2934
    %v2944 = vsel %vm190, %v2941, 0
    %v2947 = vsel %vm190, %v2942, 0
    %2949 = vmatpush.msra.mxu0 0.0
    %2950 = vmatpush.msra.mxu0 0.0
    %2951 = vmatpush.msra.mxu0 0.0
    %2952 = vmatpush.msra.mxu0 0.0
    %2953 = vmatpush.msra.mxu0 0.0
    %2954 = vmatpush.msra.mxu0 0.0
    %2955 = vmatpush.msra.mxu0 0.0
    %2956 = vmatpush.msra.mxu0 0.0
    %2957 = vmatpush.msra.mxu0 0.0
    %2958 = vmatpush.msra.mxu0 0.0
    %2959 = vmatpush.msra.mxu0 0.0
    %2960 = vmatpush.msra.mxu0 0.0
    %2961 = vmatpush.msra.mxu0 %v1580
    %2962 = vmatpush.msra.mxu0 %v1578
    %2963 = vmatpush.msra.mxu0 %v1576
    %2964 = vmatpush.msra.mxu0 %v1574
    %2965 = vmatmul.f32.gmra.mxu0 %v2944
    %v2966 = vpop.f32.mrf.mxu0
    %v2967 = vadd.f32 %v1572, %v2966
    %2968 = vmatmul.f32.gmra.mxu0 %v2947
    %v2969 = vpop.f32.mrf.mxu0
    %v2970 = vadd.f32 %v1572, %v2969
    %2971 = vdwg.mxu0
    %v2972 = vadd.f32 %v2450, %v2967
    %v2973 = vadd.f32 %v2451, %v2970
    %v2974 = vsel %vm190, %v2972, 0.0
    %2975 = vadd.xlane.f32.xlu0 %v2974
    %v2976 = vpop.xlane.xlu0 %2975
    %v2977 = vsel %vm190, %v2973, 0.0
    %2978 = vadd.xlane.f32.xlu0 %v2977
    %v2979 = vpop.xlane.xlu0 %2978
    %v2980 = vmul.f32 %v2976, %v935
    %v2981 = vmul.f32 %v2979, %v935
    %v2982 = vsub.f32 %v2972, %v2980
    %v2983 = vsub.f32 %v2973, %v2981
    %v2984 = vmul.f32 %v2982, %v2982
    %v2985 = vmul.f32 %v2983, %v2983
    %v2986 = vsel %vm190, %v2984, 0.0
    %2987 = vadd.xlane.f32.xlu0 %v2986
    %v2988 = vpop.xlane.xlu0 %2987
    %v2989 = vsel %vm190, %v2985, 0.0
    %2990 = vadd.xlane.f32.xlu0 %v2989
    %v2991 = vpop.xlane.xlu0 %2990
    %v2992 = vmul.f32 %v2988, %v935
    %v2993 = vmul.f32 %v2991, %v935
    %v2994 = vadd.f32 %v2992, 1e-05
    %v2995 = vadd.f32 %v2993, 1e-05
    %v2996 = vrsqrt.pop %v2994
    %v2997 = vmul.f32 %v2996, %v2994
    %v2998 = vmul.f32 %v2997, %v2996
    %v2999 = vmul.f32 0.5, %v2998
    %v3000 = vsub.f32 1.5, %v2999
    %v3001 = vmul.f32 %v2996, %v3000
    %vm3002 = vweird.f32 %v2994
    %vm3003 = vweird.f32 %v2996
    %vm3004 = vmor %vm3002, %vm3003
    %v3005 = vsel %vm3004, %v2996, %v3001
    %v3006 = vrsqrt.pop %v2995
    %v3007 = vmul.f32 %v3006, %v2995
    %v3008 = vmul.f32 %v3007, %v3006
    %v3009 = vmul.f32 0.5, %v3008
    %v3010 = vsub.f32 1.5, %v3009
    %v3011 = vmul.f32 %v3006, %v3010
    %vm3012 = vweird.f32 %v2995
    %vm3013 = vweird.f32 %v3006
    %vm3014 = vmor %vm3012, %vm3013
    %v3015 = vsel %vm3014, %v3006, %v3011
    %v3016 = vmul.f32 %v2982, %v3005
    %v3017 = vmul.f32 %v2983, %v3015
    %v3018 = vmul.f32 %v3016, %v1660
    %v3019 = vmul.f32 %v3017, %v1660
    %v3020 = vadd.f32 %v3018, %v1663
    %v3021 = vadd.f32 %v3019, %v1663
    %v3023 = vsel %vm190, %v3020, 0
    %v3026 = vsel %vm190, %v3021, 0
    %3028 = vmatpush.msra.mxu0 0.0
    %3029 = vmatpush.msra.mxu0 0.0
    %3030 = vmatpush.msra.mxu0 0.0
    %3031 = vmatpush.msra.mxu0 0.0
    %3032 = vmatpush.msra.mxu0 0.0
    %3033 = vmatpush.msra.mxu0 0.0
    %3034 = vmatpush.msra.mxu0 0.0
    %3035 = vmatpush.msra.mxu0 0.0
    %3036 = vmatpush.msra.mxu0 0.0
    %3037 = vmatpush.msra.mxu0 0.0
    %3038 = vmatpush.msra.mxu0 0.0
    %3039 = vmatpush.msra.mxu0 0.0
    %3040 = vmatpush.msra.mxu0 %v141
    %3041 = vmatpush.msra.mxu0 %v140
    %3042 = vmatpush.msra.mxu0 %v139
    %3043 = vmatpush.msra.mxu0 %v138
    %3044 = vmatmul.f32.gmra.mxu0 %v3023
    %v3045 = vpop.f32.mrf.mxu0
    %v3046 = vadd.f32 %v1666, %v3045
    %3047 = vmatmul.f32.gmra.mxu0 %v3026
    %v3048 = vpop.f32.mrf.mxu0
    %v3049 = vadd.f32 %v1666, %v3048
    %3050 = vdwg.mxu0
    %v3051 = vmax.f32 %v3046, 0.0
    %v3052 = vmax.f32 %v3049, 0.0
    %v3054 = vsel %vm1711, %v3051, 0
    %v3057 = vsel %vm1711, %v3052, 0
    %3059 = vmatpush.xpose.msra.mxu0 0.0
    %3060 = vmatpush.xpose.msra.mxu0 0.0
    %3061 = vmatpush.xpose.msra.mxu0 0.0
    %3062 = vmatpush.xpose.msra.mxu0 0.0
    %3063 = vmatpush.xpose.msra.mxu0 0.0
    %3064 = vmatpush.xpose.msra.mxu0 0.0
    %3065 = vmatpush.xpose.msra.mxu0 0.0
    %3066 = vmatpush.xpose.msra.mxu0 0.0
    %3067 = vmatpush.xpose.msra.mxu0 0.0
    %3068 = vmatpush.xpose.msra.mxu0 0.0
    %3069 = vmatpush.xpose.msra.mxu0 0.0
    %3070 = vmatpush.xpose.msra.mxu0 0.0
    %3071 = vmatpush.xpose.msra.mxu0 %v1724
    %3072 = vmatpush.xpose.msra.mxu0 %v1722
    %3073 = vmatpush.xpose.msra.mxu0 %v1720
    %3074 = vmatpush.xpose.msra.mxu0 %v1718
    %3075 = vmatmul.f32.gmra.mxu0 %v3054
    %v3076 = vpop.f32.mrf.mxu0
    %v3077 = vadd.f32 %v1698, %v3076
    %3078 = vmatmul.f32.gmra.mxu0 %v3057
    %v3079 = vpop.f32.mrf.mxu0
    %v3080 = vadd.f32 %v1698, %v3079
    %3081 = vdwg.mxu0
    %v3082 = vadd.f32 %v3020, %v3077
    %v3083 = vadd.f32 %v3021, %v3080
    %v3084 = vsel %vm190, %v3082, 0.0
    %3085 = vadd.xlane.f32.xlu0 %v3084
    %v3086 = vpop.xlane.xlu0 %3085
    %v3087 = vsel %vm190, %v3083, 0.0
    %3088 = vadd.xlane.f32.xlu0 %v3087
    %v3089 = vpop.xlane.xlu0 %3088
    %v3090 = vmul.f32 %v3086, %v935
    %v3091 = vmul.f32 %v3089, %v935
    %v3092 = vsub.f32 %v3082, %v3090
    %v3093 = vsub.f32 %v3083, %v3091
    %v3094 = vmul.f32 %v3092, %v3092
    %v3095 = vmul.f32 %v3093, %v3093
    %v3096 = vsel %vm190, %v3094, 0.0
    %3097 = vadd.xlane.f32.xlu0 %v3096
    %v3098 = vpop.xlane.xlu0 %3097
    %v3099 = vsel %vm190, %v3095, 0.0
    %3100 = vadd.xlane.f32.xlu0 %v3099
    %v3101 = vpop.xlane.xlu0 %3100
    %v3102 = vmul.f32 %v3098, %v935
    %v3103 = vmul.f32 %v3101, %v935
    %v3104 = vadd.f32 %v3102, 1e-05
    %v3105 = vadd.f32 %v3103, 1e-05
    %v3106 = vrsqrt.pop %v3104
    %v3107 = vmul.f32 %v3106, %v3104
    %v3108 = vmul.f32 %v3107, %v3106
    %v3109 = vmul.f32 0.5, %v3108
    %v3110 = vsub.f32 1.5, %v3109
    %v3111 = vmul.f32 %v3106, %v3110
    %vm3112 = vweird.f32 %v3104
    %vm3113 = vweird.f32 %v3106
    %vm3114 = vmor %vm3112, %vm3113
    %v3115 = vsel %vm3114, %v3106, %v3111
    %v3116 = vrsqrt.pop %v3105
    %v3117 = vmul.f32 %v3116, %v3105
    %v3118 = vmul.f32 %v3117, %v3116
    %v3119 = vmul.f32 0.5, %v3118
    %v3120 = vsub.f32 1.5, %v3119
    %v3121 = vmul.f32 %v3116, %v3120
    %vm3122 = vweird.f32 %v3105
    %vm3123 = vweird.f32 %v3116
    %vm3124 = vmor %vm3122, %vm3123
    %v3125 = vsel %vm3124, %v3116, %v3121
    %v3126 = vmul.f32 %v3092, %v3115
    %v3127 = vmul.f32 %v3093, %v3125
    %v3128 = vmul.f32 %v3126, %v1795
    %v3129 = vmul.f32 %v3127, %v1795
    %v3130 = vadd.f32 %v3128, %v1798
    %v3131 = vadd.f32 %v3129, %v1798
    %3132 = vst.msk [vmem:[#allocation13] sm:$0xff] %vm190, %v3130
    %3133 = vst.msk [vmem:[#allocation13 + $0x8] sm:$0xff] %vm190, %v3131
    // Predicated region
    $region50: #{tpu_custom_call.1} parent=1 // pred_check
      _
    $region51: #{tpu_custom_call.1} parent=1 // pred_check_branch
      %3135 = sbr.rel (0) target = $region53
    $region52: #{tpu_custom_call.1} parent=1 // pred_region
      %3137 = vsyncadd [#allocation4], 0
      %s3138 = sshll.u32 [#allocation13], 4
      %s3139 = int_to_ptr.vmem [resolvable:$true] %s3138
      %s3140 = sshll.u32 %s6, 4
      %s3141 = int_to_ptr.hbm [resolvable:$true] %s3140
      %3146 = dma.vmem_to_hbm [thread:$0]  %s3139, 256, %s3141, [#allocation4], 128, 128, 8
    $region53: #{tpu_custom_call.1} parent=1 // pred_fallthru
      _
    // Predicated region
    $region54: #{tpu_custom_call.1} parent=1 // pred_check
      _
    $region55: #{tpu_custom_call.1} parent=1 // pred_check_branch
      %3148 = sbr.rel (0) target = $region57
    $region56: #{tpu_custom_call.1} parent=1 // pred_region
      %3150 = dma.done [#allocation4], 256
    $region57: #{tpu_custom_call.1} parent=1 // pred_fallthru
      _
    %3151 = vsyncpa [#allocation3], 1
    %3152 = vsyncpa [#allocation6], 1
    %3153 = vsyncpa [#allocation9], 1
    %3154 = vsyncpa [#allocation12], 1
    %3155 = vsyncpa [#allocation4], 1

</llo_original>
